<compile_context>
chip_gen: v7x
topology: tpu7x:2x2x1
jax: 0.10.0
libtpu: 0.0.40
codegen_flags: <defaults>
</compile_context>

<pallas_src>
import functools

import jax
import jax.numpy as jnp
from jax.experimental import pallas as pl
from jax.experimental.pallas import tpu as pltpu


def _round_up(v, m):
    return ((v + m - 1) // m) * m


def _default_tco():
    # Two 128-row Cout blocks let v7x shard across its 2 TensorCores; single-TC
    # chips (v5e/v6e) prefer one full 256-row block (x DMA'd once, full MXU tile).
    try:
        kind = jax.devices()[0].device_kind.lower()
    except Exception:
        kind = ""
    return 128 if "v7" in kind else 256


def conv_bn_kernel(x_ref, w_ref, g_ref, b_ref, o_ref, *, hw_true):
    # 1x1 conv == MXU matmul: [TCo, Cin] @ [Cin, HWp], bf16 operands, f32 accumulate.
    y = jnp.dot(w_ref[...], x_ref[...], preferred_element_type=jnp.float32)

    # Training-mode BatchNorm over (N, H, W) per output channel.
    # Padded lanes of y are exact zeros (x lane-pad is zero), so the sums are
    # unaffected; divide by the true element count.
    inv_n = 1.0 / float(hw_true)
    s1 = jnp.sum(y, axis=1, keepdims=True)
    s2 = jnp.sum(y * y, axis=1, keepdims=True)
    mean = s1 * inv_n
    var = jnp.maximum(s2 * inv_n - mean * mean, 0.0)   # biased variance, clamped
    a = g_ref[...] * jax.lax.rsqrt(var + 1e-5)
    b = b_ref[...] - mean * a
    o_ref[...] = (y * a + b).astype(o_ref.dtype)


def mul_conv_bn(x, scale, w, gamma, beta, *, tco=None, lane=128,
                mxu_dtype=jnp.bfloat16):
    """x: [1, Cin, H, W]; scale: [1, Cin, 1, 1]; w: [Cout, Cin, 1, 1].

    Set mxu_dtype=jnp.float32 for a full-precision debug/validation path.
    """
    N, Cin, H, W = x.shape
    assert N == 1, "kernel handles the module's actual batch size (N=1)"
    Cout = w.shape[0]
    HW = H * W

    if tco is None:
        tco = _default_tco()

    hwp = _round_up(HW, lane)        # 196 -> 256, lane-dense output
    coutp = _round_up(Cout, tco)     # 200 -> 256

    f32 = jnp.float32
    # Fold the per-Cin scale into the weight (exact for 1x1 conv), pad+cast fused.
    ws = w.reshape(Cout, Cin).astype(f32) * scale.reshape(1, Cin).astype(f32)
    w2 = jnp.pad(ws, ((0, coutp - Cout), (0, 0))).astype(mxu_dtype)
    x2 = jnp.pad(x.reshape(Cin, HW).astype(f32), ((0, 0), (0, hwp - HW))).astype(mxu_dtype)
    g2 = jnp.pad(gamma.reshape(Cout, 1).astype(f32), ((0, coutp - Cout), (0, 0)))
    b2 = jnp.pad(beta.reshape(Cout, 1).astype(f32), ((0, coutp - Cout), (0, 0)))

    grid = (coutp // tco,)           # Cout-only grid; no reduction axis

    out = pl.pallas_call(
        functools.partial(conv_bn_kernel, hw_true=HW),
        out_shape=jax.ShapeDtypeStruct((coutp, hwp), jnp.float32),
        grid_spec=pltpu.PrefetchScalarGridSpec(
            num_scalar_prefetch=0,
            grid=grid,
            in_specs=[
                pl.BlockSpec((Cin, hwp), lambda i: (0, 0)),   # activations (full Cin)
                pl.BlockSpec((tco, Cin), lambda i: (i, 0)),   # scaled weights
                pl.BlockSpec((tco, 1), lambda i: (i, 0)),     # gamma
                pl.BlockSpec((tco, 1), lambda i: (i, 0)),     # beta
            ],
            out_specs=pl.BlockSpec((tco, hwp), lambda i: (i, 0)),
        ),
        compiler_params=pltpu.CompilerParams(
            dimension_semantics=("parallel",)),
    )(x2, w2, g2, b2)

    return out[:Cout, :HW].reshape(1, Cout, H, W).astype(x.dtype)


if __name__ == "__main__":
    # Shapes implied by the module: x418 [1,1200,14,14], x423 [1,1200,1,1],
    # Conv2d(1200, 200, kernel_size=1, bias=False), BatchNorm2d(200).
    N, Cin, Cout, H, W = 1, 1200, 200, 14, 14

    key = jax.random.PRNGKey(0)
    k1, k2, k3, k4, k5 = jax.random.split(key, 5)
    x418 = jax.random.normal(k1, (N, Cin, H, W), dtype=jnp.float32)
    x423 = jax.random.normal(k2, (N, Cin, 1, 1), dtype=jnp.float32)
    conv_w = jax.random.normal(k3, (Cout, Cin, 1, 1), dtype=jnp.float32) * 0.02
    bn_gamma = 1.0 + 0.1 * jax.random.normal(k4, (Cout,), dtype=jnp.float32)
    bn_beta = 0.1 * jax.random.normal(k5, (Cout,), dtype=jnp.float32)

    out = mul_conv_bn(x418, x423, conv_w, bn_gamma, bn_beta)
    out = jax.block_until_ready(out)

    # Reference in plain JAX (mul -> 1x1 conv -> training-mode BN), all f32.
    xm = x418 * x423
    y = jnp.einsum("oc,nchw->nohw", conv_w.reshape(Cout, Cin), xm)
    mean = y.mean(axis=(0, 2, 3), keepdims=True)
    var = ((y - mean) ** 2).mean(axis=(0, 2, 3), keepdims=True)
    ref = (y - mean) * jax.lax.rsqrt(var + 1e-5) * bn_gamma.reshape(1, Cout, 1, 1) \
        + bn_beta.reshape(1, Cout, 1, 1)

    assert out.shape == (N, Cout, H, W)
    # Kernel uses bf16 MXU operands with f32 accumulation; reference is pure f32.
    # (Pass mxu_dtype=jnp.float32 to mul_conv_bn for a tight-tolerance debug path.)
    assert jnp.allclose(out, ref, atol=2e-2, rtol=2e-2), "mismatch vs reference"

    print("KERNEL_OK")
</pallas_src>

<mosaic_0001>
module attributes {stable_mosaic.version = 11 : i64} {
  func.func @conv_bn_kernel(%arg0: i32, %arg1: memref<1200x256xbf16, #tpu.memory_space<vmem>>, %arg2: memref<256x1200xbf16, #tpu.memory_space<vmem>>, %arg3: memref<256x1xf32, #tpu.memory_space<vmem>>, %arg4: memref<256x1xf32, #tpu.memory_space<vmem>>, %arg5: memref<256x256xf32, #tpu.memory_space<vmem>>) attributes {dimension_semantics = [#tpu.dimension_semantics<parallel>], iteration_bounds = array<i64: 1>, scalar_prefetch = 0 : i64, scratch_operands = 0 : i64, tpu.core_type = #tpu.core_type<tc>, window_params = [{pipeline_mode = #tpu.pipeline_mode<synchronous>, transform_indices = @transform_0, window_bounds = array<i64: 1200, 256>}, {transform_indices = @transform_1, window_bounds = array<i64: 256, 1200>}, {transform_indices = @transform_2, window_bounds = array<i64: 256, 1>}, {transform_indices = @transform_3, window_bounds = array<i64: 256, 1>}, {transform_indices = @transform_4, window_bounds = array<i64: 256, 256>}]} {
    %c0 = arith.constant 0 : index
    %c0_0 = arith.constant 0 : index
    %0 = vector.load %arg2[%c0, %c0_0] : memref<256x1200xbf16, #tpu.memory_space<vmem>>, vector<256x1200xbf16>
    %c0_1 = arith.constant 0 : index
    %c0_2 = arith.constant 0 : index
    %1 = vector.load %arg1[%c0_1, %c0_2] : memref<1200x256xbf16, #tpu.memory_space<vmem>>, vector<1200x256xbf16>
    %cst = arith.constant dense<0.000000e+00> : vector<256x256xf32>
    %2 = tpu.matmul %0, %1, %cst {dimension_numbers = #tpu.dot_dimension_numbers<[1], [0], [0], [1], [0, 0, 1, 1], [], []>} : vector<256x1200xbf16>, vector<1200x256xbf16>, vector<256x256xf32> -> vector<256x256xf32>
    %cst_3 = arith.constant dense<0.000000e+00> : vector<256xf32>
    %3 = vector.multi_reduction <add>, %2, %cst_3 [1] : vector<256x256xf32> to vector<256xf32>
    %4 = vector.shape_cast %3 : vector<256xf32> to vector<256x1xf32>
    %5 = arith.mulf %2, %2 : vector<256x256xf32>
    %cst_4 = arith.constant dense<0.000000e+00> : vector<256xf32>
    %6 = vector.multi_reduction <add>, %5, %cst_4 [1] : vector<256x256xf32> to vector<256xf32>
    %7 = vector.shape_cast %6 : vector<256xf32> to vector<256x1xf32>
    %cst_5 = arith.constant 0.00510204071 : f32
    %8 = vector.broadcast %cst_5 : f32 to vector<256x1xf32>
    %9 = arith.mulf %4, %8 : vector<256x1xf32>
    %cst_6 = arith.constant 0.00510204071 : f32
    %10 = vector.broadcast %cst_6 : f32 to vector<256x1xf32>
    %11 = arith.mulf %7, %10 : vector<256x1xf32>
    %12 = arith.mulf %9, %9 : vector<256x1xf32>
    %13 = arith.subf %11, %12 : vector<256x1xf32>
    %cst_7 = arith.constant 0.000000e+00 : f32
    %14 = vector.broadcast %cst_7 : f32 to vector<256x1xf32>
    %15 = arith.maximumf %13, %14 : vector<256x1xf32>
    %c0_8 = arith.constant 0 : index
    %c0_9 = arith.constant 0 : index
    %16 = vector.load %arg3[%c0_8, %c0_9] : memref<256x1xf32, #tpu.memory_space<vmem>>, vector<256x1xf32>
    %cst_10 = arith.constant 9.99999974E-6 : f32
    %17 = vector.broadcast %cst_10 : f32 to vector<256x1xf32>
    %18 = arith.addf %15, %17 : vector<256x1xf32>
    %19 = math.rsqrt %18 : vector<256x1xf32>
    %20 = arith.mulf %16, %19 : vector<256x1xf32>
    %c0_11 = arith.constant 0 : index
    %c0_12 = arith.constant 0 : index
    %21 = vector.load %arg4[%c0_11, %c0_12] : memref<256x1xf32, #tpu.memory_space<vmem>>, vector<256x1xf32>
    %22 = arith.mulf %9, %20 : vector<256x1xf32>
    %23 = arith.subf %21, %22 : vector<256x1xf32>
    %24 = vector.broadcast %20 : vector<256x1xf32> to vector<256x256xf32>
    %25 = arith.mulf %2, %24 : vector<256x256xf32>
    %26 = vector.broadcast %23 : vector<256x1xf32> to vector<256x256xf32>
    %27 = arith.addf %25, %26 : vector<256x256xf32>
    %c0_13 = arith.constant 0 : index
    %c0_14 = arith.constant 0 : index
    %28 = vector.load %arg5[%c0_13, %c0_14] : memref<256x256xf32, #tpu.memory_space<vmem>>, vector<256x256xf32>
    tpu.vector_store %arg5[%c0_13, %c0_14], %27 {strides = array<i32>} : memref<256x256xf32, #tpu.memory_space<vmem>>, vector<256x256xf32>,
    return
  }
  func.func @transform_0(%arg0: i32) -> (i32, i32) {
    %c0_i32 = arith.constant 0 : i32
    %c0_i32_0 = arith.constant 0 : i32
    %c0_i32_1 = arith.constant 0 : i32
    return %c0_i32, %c0_i32_0 : i32, i32
  }
  func.func @transform_1(%arg0: i32) -> (i32, i32) {
    %c0_i32 = arith.constant 0 : i32
    %c0_i32_0 = arith.constant 0 : i32
    return %arg0, %c0_i32 : i32, i32
  }
  func.func @transform_2(%arg0: i32) -> (i32, i32) {
    %c0_i32 = arith.constant 0 : i32
    %c0_i32_0 = arith.constant 0 : i32
    return %arg0, %c0_i32 : i32, i32
  }
  func.func @transform_3(%arg0: i32) -> (i32, i32) {
    %c0_i32 = arith.constant 0 : i32
    %c0_i32_0 = arith.constant 0 : i32
    return %arg0, %c0_i32 : i32, i32
  }
  func.func @transform_4(%arg0: i32) -> (i32, i32) {
    %c0_i32 = arith.constant 0 : i32
    %c0_i32_0 = arith.constant 0 : i32
    return %arg0, %c0_i32 : i32, i32
  }
}

</mosaic_0001>

<llo_original>
// kernel: tpu_custom_call.1
$region0: #{tpu_custom_call.1}
  #allocation0 [shape = 'u32[]', space=smem, size = 0x4, offset = 0x4, fixed_abs, tag = 'smem constant byte address 0x4 - core index']
  #allocation1 [shape = 'u32[144,128]{1,0:T(1,128)}', space=vmem, size = 0x12000, scoped, tag = 'internal scratch']
  %s0 = inlined_call_operand.vmem [shape: bf16[1200,256], index: 0, kind: input, shape index: {}]
  %s1 = inlined_call_operand.vmem [shape: bf16[256,1200], index: 1, kind: input, shape index: {}]
  %s2 = inlined_call_operand.vmem [shape: f32[256,1], index: 2, kind: input, shape index: {}]
  %s3 = inlined_call_operand.vmem [shape: f32[256,1], index: 3, kind: input, shape index: {}]
  %s4 = inlined_call_operand.hbm [shape: f32[256,256], index: 4, kind: output, shape index: {}]
  %s5 = sld [smem:[#allocation0]]
  $region26: #{tpu_custom_call.1} parent=0
    _
  %s7 = ssub.s32 1, %s5
  %s8 = scalar_select 0, %s7, %s5
  $region1: #{tpu_custom_call.1} parent=0
    #allocation2 [shape = 'u8[262144]{0}', space=vmem, size = 0x40000, scoped, tag = 'output window, operand 0, single buffered']
    #allocation3 [shape = 's32[1]{0}', space=sflag, size = 0x4, scoped, tag = 'scoped memory for tpu_custom_call.1']
    %9 = vsyncpa [#allocation3], 0
    // Predicated region
    $region2: #{tpu_custom_call.1} parent=1 // pred_check
      _
    $region3: #{tpu_custom_call.1} parent=1 // pred_check_branch
      %11 = sbr.rel (0) target = $region5
    $region4: #{tpu_custom_call.1} parent=1 // pred_region
      _
    $region5: #{tpu_custom_call.1} parent=1 // pred_fallthru
      _
    // Predicated region
    $region6: #{tpu_custom_call.1} parent=1 // pred_check
      _
    $region7: #{tpu_custom_call.1} parent=1 // pred_check_branch
      %13 = sbr.rel (0) target = $region9
    $region8: #{tpu_custom_call.1} parent=1 // pred_region
      _
    $region9: #{tpu_custom_call.1} parent=1 // pred_fallthru
      _
    // Predicated region
    $region10: #{tpu_custom_call.1} parent=1 // pred_check
      _
    $region11: #{tpu_custom_call.1} parent=1 // pred_check_branch
      %15 = sbr.rel (0) target = $region13
    $region12: #{tpu_custom_call.1} parent=1 // pred_region
      _
    $region13: #{tpu_custom_call.1} parent=1 // pred_fallthru
      _
    // Predicated region
    $region14: #{tpu_custom_call.1} parent=1 // pred_check
      _
    $region15: #{tpu_custom_call.1} parent=1 // pred_check_branch
      %17 = sbr.rel (0) target = $region17
    $region16: #{tpu_custom_call.1} parent=1 // pred_region
      _
    $region17: #{tpu_custom_call.1} parent=1 // pred_fallthru
      _
    %v19 = vld [vmem:[%s1] sm:$0xff]
    %v20 = vld [vmem:[%s1 + $0x8] sm:$0xff]
    %v21 = vld [vmem:[%s1 + $0x10] sm:$0xff]
    %v22 = vld [vmem:[%s1 + $0x18] sm:$0xff]
    %v23 = vld [vmem:[%s1 + $0x20] sm:$0xff]
    %v24 = vld [vmem:[%s1 + $0x28] sm:$0xff]
    %v25 = vld [vmem:[%s1 + $0x30] sm:$0xff]
    %v26 = vld [vmem:[%s1 + $0x38] sm:$0xff]
    %v27 = vld [vmem:[%s1 + $0x40] sm:$0xff]
    %v28 = vld [vmem:[%s1 + $0x48] sm:$0xff]
    %v29 = vld [vmem:[%s1 + $0x50] sm:$0xff]
    %v30 = vld [vmem:[%s1 + $0x58] sm:$0xff]
    %v31 = vld [vmem:[%s1 + $0x60] sm:$0xff]
    %v32 = vld [vmem:[%s1 + $0x68] sm:$0xff]
    %v33 = vld [vmem:[%s1 + $0x70] sm:$0xff]
    %v34 = vld [vmem:[%s1 + $0x78] sm:$0xff]
    %v35 = vld [vmem:[%s1 + $0x80] sm:$0xff]
    %v36 = vld [vmem:[%s1 + $0x88] sm:$0xff]
    %v37 = vld [vmem:[%s1 + $0x90] sm:$0xff]
    %v38 = vld [vmem:[%s1 + $0x98] sm:$0xff]
    %v39 = vld [vmem:[%s1 + $0xa0] sm:$0xff]
    %v40 = vld [vmem:[%s1 + $0xa8] sm:$0xff]
    %v41 = vld [vmem:[%s1 + $0xb0] sm:$0xff]
    %v42 = vld [vmem:[%s1 + $0xb8] sm:$0xff]
    %v43 = vld [vmem:[%s1 + $0xc0] sm:$0xff]
    %v44 = vld [vmem:[%s1 + $0xc8] sm:$0xff]
    %v45 = vld [vmem:[%s1 + $0xd0] sm:$0xff]
    %v46 = vld [vmem:[%s1 + $0xd8] sm:$0xff]
    %v47 = vld [vmem:[%s1 + $0xe0] sm:$0xff]
    %v48 = vld [vmem:[%s1 + $0xe8] sm:$0xff]
    %v49 = vld [vmem:[%s1 + $0xf0] sm:$0xff]
    %v50 = vld [vmem:[%s1 + $0xf8] sm:$0xff]
    %v51 = vld [vmem:[%s1 + $0x100] sm:$0xff]
    %v52 = vld [vmem:[%s1 + $0x108] sm:$0xff]
    %v53 = vld [vmem:[%s1 + $0x110] sm:$0xff]
    %v54 = vld [vmem:[%s1 + $0x118] sm:$0xff]
    %v55 = vld [vmem:[%s1 + $0x120] sm:$0xff]
    %v56 = vld [vmem:[%s1 + $0x128] sm:$0xff]
    %v57 = vld [vmem:[%s1 + $0x130] sm:$0xff]
    %v58 = vld [vmem:[%s1 + $0x138] sm:$0xff]
    %v59 = vld [vmem:[%s1 + $0x140] sm:$0xff]
    %v60 = vld [vmem:[%s1 + $0x148] sm:$0xff]
    %v61 = vld [vmem:[%s1 + $0x150] sm:$0xff]
    %v62 = vld [vmem:[%s1 + $0x158] sm:$0xff]
    %v63 = vld [vmem:[%s1 + $0x160] sm:$0xff]
    %v64 = vld [vmem:[%s1 + $0x168] sm:$0xff]
    %v65 = vld [vmem:[%s1 + $0x170] sm:$0xff]
    %v66 = vld [vmem:[%s1 + $0x178] sm:$0xff]
    %v67 = vld [vmem:[%s1 + $0x180] sm:$0xff]
    %v68 = vld [vmem:[%s1 + $0x188] sm:$0xff]
    %v69 = vld [vmem:[%s1 + $0x190] sm:$0xff]
    %v70 = vld [vmem:[%s1 + $0x198] sm:$0xff]
    %v71 = vld [vmem:[%s1 + $0x1a0] sm:$0xff]
    %v72 = vld [vmem:[%s1 + $0x1a8] sm:$0xff]
    %v73 = vld [vmem:[%s1 + $0x1b0] sm:$0xff]
    %v74 = vld [vmem:[%s1 + $0x1b8] sm:$0xff]
    %v75 = vld [vmem:[%s1 + $0x1c0] sm:$0xff]
    %v76 = vld [vmem:[%s1 + $0x1c8] sm:$0xff]
    %v77 = vld [vmem:[%s1 + $0x1d0] sm:$0xff]
    %v78 = vld [vmem:[%s1 + $0x1d8] sm:$0xff]
    %v79 = vld [vmem:[%s1 + $0x1e0] sm:$0xff]
    %v80 = vld [vmem:[%s1 + $0x1e8] sm:$0xff]
    %v81 = vld [vmem:[%s1 + $0x1f0] sm:$0xff]
    %v82 = vld [vmem:[%s1 + $0x1f8] sm:$0xff]
    %v83 = vld [vmem:[%s1 + $0x200] sm:$0xff]
    %v84 = vld [vmem:[%s1 + $0x208] sm:$0xff]
    %v85 = vld [vmem:[%s1 + $0x210] sm:$0xff]
    %v86 = vld [vmem:[%s1 + $0x218] sm:$0xff]
    %v87 = vld [vmem:[%s1 + $0x220] sm:$0xff]
    %v88 = vld [vmem:[%s1 + $0x228] sm:$0xff]
    %v89 = vld [vmem:[%s1 + $0x230] sm:$0xff]
    %v90 = vld [vmem:[%s1 + $0x238] sm:$0xff]
    %v91 = vld [vmem:[%s1 + $0x240] sm:$0xff]
    %v92 = vld [vmem:[%s1 + $0x248] sm:$0xff]
    %v93 = vld [vmem:[%s1 + $0x250] sm:$0xff]
    %v94 = vld [vmem:[%s1 + $0x258] sm:$0xff]
    %v95 = vld [vmem:[%s1 + $0x260] sm:$0xff]
    %v96 = vld [vmem:[%s1 + $0x268] sm:$0xff]
    %v97 = vld [vmem:[%s1 + $0x270] sm:$0xff]
    %v98 = vld [vmem:[%s1 + $0x278] sm:$0xff]
    %v99 = vld [vmem:[%s1 + $0x280] sm:$0xff]
    %v100 = vld [vmem:[%s1 + $0x288] sm:$0xff]
    %v101 = vld [vmem:[%s1 + $0x290] sm:$0xff]
    %v102 = vld [vmem:[%s1 + $0x298] sm:$0xff]
    %v103 = vld [vmem:[%s1 + $0x2a0] sm:$0xff]
    %v104 = vld [vmem:[%s1 + $0x2a8] sm:$0xff]
    %v105 = vld [vmem:[%s1 + $0x2b0] sm:$0xff]
    %v106 = vld [vmem:[%s1 + $0x2b8] sm:$0xff]
    %v107 = vld [vmem:[%s1 + $0x2c0] sm:$0xff]
    %v108 = vld [vmem:[%s1 + $0x2c8] sm:$0xff]
    %v109 = vld [vmem:[%s1 + $0x2d0] sm:$0xff]
    %v110 = vld [vmem:[%s1 + $0x2d8] sm:$0xff]
    %v111 = vld [vmem:[%s1 + $0x2e0] sm:$0xff]
    %v112 = vld [vmem:[%s1 + $0x2e8] sm:$0xff]
    %v113 = vld [vmem:[%s1 + $0x2f0] sm:$0xff]
    %v114 = vld [vmem:[%s1 + $0x2f8] sm:$0xff]
    %v115 = vld [vmem:[%s1 + $0x300] sm:$0xff]
    %v116 = vld [vmem:[%s1 + $0x308] sm:$0xff]
    %v117 = vld [vmem:[%s1 + $0x310] sm:$0xff]
    %v118 = vld [vmem:[%s1 + $0x318] sm:$0xff]
    %v119 = vld [vmem:[%s1 + $0x320] sm:$0xff]
    %v120 = vld [vmem:[%s1 + $0x328] sm:$0xff]
    %v121 = vld [vmem:[%s1 + $0x330] sm:$0xff]
    %v122 = vld [vmem:[%s1 + $0x338] sm:$0xff]
    %v123 = vld [vmem:[%s1 + $0x340] sm:$0xff]
    %v124 = vld [vmem:[%s1 + $0x348] sm:$0xff]
    %v125 = vld [vmem:[%s1 + $0x350] sm:$0xff]
    %v126 = vld [vmem:[%s1 + $0x358] sm:$0xff]
    %v127 = vld [vmem:[%s1 + $0x360] sm:$0xff]
    %v128 = vld [vmem:[%s1 + $0x368] sm:$0xff]
    %v129 = vld [vmem:[%s1 + $0x370] sm:$0xff]
    %v130 = vld [vmem:[%s1 + $0x378] sm:$0xff]
    %v131 = vld [vmem:[%s1 + $0x380] sm:$0xff]
    %v132 = vld [vmem:[%s1 + $0x388] sm:$0xff]
    %v133 = vld [vmem:[%s1 + $0x390] sm:$0xff]
    %v134 = vld [vmem:[%s1 + $0x398] sm:$0xff]
    %v135 = vld [vmem:[%s1 + $0x3a0] sm:$0xff]
    %v136 = vld [vmem:[%s1 + $0x3a8] sm:$0xff]
    %v137 = vld [vmem:[%s1 + $0x3b0] sm:$0xff]
    %v138 = vld [vmem:[%s1 + $0x3b8] sm:$0xff]
    %v139 = vld [vmem:[%s1 + $0x3c0] sm:$0xff]
    %v140 = vld [vmem:[%s1 + $0x3c8] sm:$0xff]
    %v141 = vld [vmem:[%s1 + $0x3d0] sm:$0xff]
    %v142 = vld [vmem:[%s1 + $0x3d8] sm:$0xff]
    %v143 = vld [vmem:[%s1 + $0x3e0] sm:$0xff]
    %v144 = vld [vmem:[%s1 + $0x3e8] sm:$0xff]
    %v145 = vld [vmem:[%s1 + $0x3f0] sm:$0xff]
    %v146 = vld [vmem:[%s1 + $0x3f8] sm:$0xff]
    %v147 = vld [vmem:[%s1 + $0x400] sm:$0xff]
    %v148 = vld [vmem:[%s1 + $0x408] sm:$0xff]
    %v149 = vld [vmem:[%s1 + $0x410] sm:$0xff]
    %v150 = vld [vmem:[%s1 + $0x418] sm:$0xff]
    %v151 = vld [vmem:[%s1 + $0x420] sm:$0xff]
    %v152 = vld [vmem:[%s1 + $0x428] sm:$0xff]
    %v153 = vld [vmem:[%s1 + $0x430] sm:$0xff]
    %v154 = vld [vmem:[%s1 + $0x438] sm:$0xff]
    %v155 = vld [vmem:[%s1 + $0x440] sm:$0xff]
    %v156 = vld [vmem:[%s1 + $0x448] sm:$0xff]
    %v157 = vld [vmem:[%s1 + $0x450] sm:$0xff]
    %v158 = vld [vmem:[%s1 + $0x458] sm:$0xff]
    %v159 = vld [vmem:[%s1 + $0x460] sm:$0xff]
    %v160 = vld [vmem:[%s1 + $0x468] sm:$0xff]
    %v161 = vld [vmem:[%s1 + $0x470] sm:$0xff]
    %v162 = vld [vmem:[%s1 + $0x478] sm:$0xff]
    %v163 = vld [vmem:[%s1 + $0x480] sm:$0xff]
    %v164 = vld [vmem:[%s1 + $0x488] sm:$0xff]
    %v165 = vld [vmem:[%s1 + $0x490] sm:$0xff]
    %v166 = vld [vmem:[%s1 + $0x498] sm:$0xff]
    %v167 = vld [vmem:[%s1 + $0x4a0] sm:$0xff]
    %v168 = vld [vmem:[%s1 + $0x4a8] sm:$0xff]
    %v169 = vld [vmem:[%s1 + $0x4b0] sm:$0xff]
    %v170 = vld [vmem:[%s1 + $0x4b8] sm:$0xff]
    %v171 = vld [vmem:[%s1 + $0x4c0] sm:$0xff]
    %v172 = vld [vmem:[%s1 + $0x4c8] sm:$0xff]
    %v173 = vld [vmem:[%s1 + $0x4d0] sm:$0xff]
    %v174 = vld [vmem:[%s1 + $0x4d8] sm:$0xff]
    %v175 = vld [vmem:[%s1 + $0x4e0] sm:$0xff]
    %v176 = vld [vmem:[%s1 + $0x4e8] sm:$0xff]
    %v177 = vld [vmem:[%s1 + $0x4f0] sm:$0xff]
    %v178 = vld [vmem:[%s1 + $0x4f8] sm:$0xff]
    %v179 = vld [vmem:[%s0] sm:$0xff]
    %v180 = vld [vmem:[%s0 + $0x8] sm:$0xff]
    %v181 = vld [vmem:[%s0 + $0x10] sm:$0xff]
    %v182 = vld [vmem:[%s0 + $0x18] sm:$0xff]
    %v183 = vld [vmem:[%s0 + $0x20] sm:$0xff]
    %v184 = vld [vmem:[%s0 + $0x28] sm:$0xff]
    %v185 = vld [vmem:[%s0 + $0x30] sm:$0xff]
    %v186 = vld [vmem:[%s0 + $0x38] sm:$0xff]
    %v187 = vld [vmem:[%s0 + $0x40] sm:$0xff]
    %v188 = vld [vmem:[%s0 + $0x48] sm:$0xff]
    %v189 = vld [vmem:[%s0 + $0x50] sm:$0xff]
    %v190 = vld [vmem:[%s0 + $0x58] sm:$0xff]
    %v191 = vld [vmem:[%s0 + $0x60] sm:$0xff]
    %v192 = vld [vmem:[%s0 + $0x68] sm:$0xff]
    %v193 = vld [vmem:[%s0 + $0x70] sm:$0xff]
    %v194 = vld [vmem:[%s0 + $0x78] sm:$0xff]
    %v195 = vld [vmem:[%s0 + $0x80] sm:$0xff]
    %v196 = vld [vmem:[%s0 + $0x88] sm:$0xff]
    %v197 = vld [vmem:[%s0 + $0x90] sm:$0xff]
    %v198 = vld [vmem:[%s0 + $0x98] sm:$0xff]
    %v199 = vld [vmem:[%s0 + $0xa0] sm:$0xff]
    %v200 = vld [vmem:[%s0 + $0xa8] sm:$0xff]
    %v201 = vld [vmem:[%s0 + $0xb0] sm:$0xff]
    %v202 = vld [vmem:[%s0 + $0xb8] sm:$0xff]
    %v203 = vld [vmem:[%s0 + $0xc0] sm:$0xff]
    %v204 = vld [vmem:[%s0 + $0xc8] sm:$0xff]
    %v205 = vld [vmem:[%s0 + $0xd0] sm:$0xff]
    %v206 = vld [vmem:[%s0 + $0xd8] sm:$0xff]
    %v207 = vld [vmem:[%s0 + $0xe0] sm:$0xff]
    %v208 = vld [vmem:[%s0 + $0xe8] sm:$0xff]
    %v209 = vld [vmem:[%s0 + $0xf0] sm:$0xff]
    %v210 = vld [vmem:[%s0 + $0xf8] sm:$0xff]
    %v211 = vld [vmem:[%s0 + $0x100] sm:$0xff]
    %v212 = vld [vmem:[%s0 + $0x108] sm:$0xff]
    %v213 = vld [vmem:[%s0 + $0x110] sm:$0xff]
    %v214 = vld [vmem:[%s0 + $0x118] sm:$0xff]
    %v215 = vld [vmem:[%s0 + $0x120] sm:$0xff]
    %v216 = vld [vmem:[%s0 + $0x128] sm:$0xff]
    %v217 = vld [vmem:[%s0 + $0x130] sm:$0xff]
    %v218 = vld [vmem:[%s0 + $0x138] sm:$0xff]
    %v219 = vld [vmem:[%s0 + $0x140] sm:$0xff]
    %v220 = vld [vmem:[%s0 + $0x148] sm:$0xff]
    %v221 = vld [vmem:[%s0 + $0x150] sm:$0xff]
    %v222 = vld [vmem:[%s0 + $0x158] sm:$0xff]
    %v223 = vld [vmem:[%s0 + $0x160] sm:$0xff]
    %v224 = vld [vmem:[%s0 + $0x168] sm:$0xff]
    %v225 = vld [vmem:[%s0 + $0x170] sm:$0xff]
    %v226 = vld [vmem:[%s0 + $0x178] sm:$0xff]
    %v227 = vld [vmem:[%s0 + $0x180] sm:$0xff]
    %v228 = vld [vmem:[%s0 + $0x188] sm:$0xff]
    %v229 = vld [vmem:[%s0 + $0x190] sm:$0xff]
    %v230 = vld [vmem:[%s0 + $0x198] sm:$0xff]
    %v231 = vld [vmem:[%s0 + $0x1a0] sm:$0xff]
    %v232 = vld [vmem:[%s0 + $0x1a8] sm:$0xff]
    %v233 = vld [vmem:[%s0 + $0x1b0] sm:$0xff]
    %v234 = vld [vmem:[%s0 + $0x1b8] sm:$0xff]
    %v235 = vld [vmem:[%s0 + $0x1c0] sm:$0xff]
    %v236 = vld [vmem:[%s0 + $0x1c8] sm:$0xff]
    %v237 = vld [vmem:[%s0 + $0x1d0] sm:$0xff]
    %v238 = vld [vmem:[%s0 + $0x1d8] sm:$0xff]
    %v239 = vld [vmem:[%s0 + $0x1e0] sm:$0xff]
    %v240 = vld [vmem:[%s0 + $0x1e8] sm:$0xff]
    %v241 = vld [vmem:[%s0 + $0x1f0] sm:$0xff]
    %v242 = vld [vmem:[%s0 + $0x1f8] sm:$0xff]
    %v243 = vld [vmem:[%s0 + $0x200] sm:$0xff]
    %v244 = vld [vmem:[%s0 + $0x208] sm:$0xff]
    %v245 = vld [vmem:[%s0 + $0x210] sm:$0xff]
    %v246 = vld [vmem:[%s0 + $0x218] sm:$0xff]
    %v247 = vld [vmem:[%s0 + $0x220] sm:$0xff]
    %v248 = vld [vmem:[%s0 + $0x228] sm:$0xff]
    %v249 = vld [vmem:[%s0 + $0x230] sm:$0xff]
    %v250 = vld [vmem:[%s0 + $0x238] sm:$0xff]
    %v251 = vld [vmem:[%s0 + $0x240] sm:$0xff]
    %v252 = vld [vmem:[%s0 + $0x248] sm:$0xff]
    %v253 = vld [vmem:[%s0 + $0x250] sm:$0xff]
    %v254 = vld [vmem:[%s0 + $0x258] sm:$0xff]
    %v255 = vld [vmem:[%s0 + $0x260] sm:$0xff]
    %v256 = vld [vmem:[%s0 + $0x268] sm:$0xff]
    %v257 = vld [vmem:[%s0 + $0x270] sm:$0xff]
    %v258 = vld [vmem:[%s0 + $0x278] sm:$0xff]
    %v259 = vld [vmem:[%s0 + $0x280] sm:$0xff]
    %v260 = vld [vmem:[%s0 + $0x288] sm:$0xff]
    %v261 = vld [vmem:[%s0 + $0x290] sm:$0xff]
    %v262 = vld [vmem:[%s0 + $0x298] sm:$0xff]
    %v263 = vld [vmem:[%s0 + $0x2a0] sm:$0xff]
    %v264 = vld [vmem:[%s0 + $0x2a8] sm:$0xff]
    %v265 = vld [vmem:[%s0 + $0x2b0] sm:$0xff]
    %v266 = vld [vmem:[%s0 + $0x2b8] sm:$0xff]
    %v267 = vld [vmem:[%s0 + $0x2c0] sm:$0xff]
    %v268 = vld [vmem:[%s0 + $0x2c8] sm:$0xff]
    %v269 = vld [vmem:[%s0 + $0x2d0] sm:$0xff]
    %v270 = vld [vmem:[%s0 + $0x2d8] sm:$0xff]
    %v271 = vld [vmem:[%s0 + $0x2e0] sm:$0xff]
    %v272 = vld [vmem:[%s0 + $0x2e8] sm:$0xff]
    %v273 = vld [vmem:[%s0 + $0x2f0] sm:$0xff]
    %v274 = vld [vmem:[%s0 + $0x2f8] sm:$0xff]
    %v275 = vld [vmem:[%s0 + $0x300] sm:$0xff]
    %v276 = vld [vmem:[%s0 + $0x308] sm:$0xff]
    %v277 = vld [vmem:[%s0 + $0x310] sm:$0xff]
    %v278 = vld [vmem:[%s0 + $0x318] sm:$0xff]
    %v279 = vld [vmem:[%s0 + $0x320] sm:$0xff]
    %v280 = vld [vmem:[%s0 + $0x328] sm:$0xff]
    %v281 = vld [vmem:[%s0 + $0x330] sm:$0xff]
    %v282 = vld [vmem:[%s0 + $0x338] sm:$0xff]
    %v283 = vld [vmem:[%s0 + $0x340] sm:$0xff]
    %v284 = vld [vmem:[%s0 + $0x348] sm:$0xff]
    %v285 = vld [vmem:[%s0 + $0x350] sm:$0xff]
    %v286 = vld [vmem:[%s0 + $0x358] sm:$0xff]
    %v287 = vld [vmem:[%s0 + $0x360] sm:$0xff]
    %v288 = vld [vmem:[%s0 + $0x368] sm:$0xff]
    %v289 = vld [vmem:[%s0 + $0x370] sm:$0xff]
    %v290 = vld [vmem:[%s0 + $0x378] sm:$0xff]
    %v291 = vld [vmem:[%s0 + $0x380] sm:$0xff]
    %v292 = vld [vmem:[%s0 + $0x388] sm:$0xff]
    %v293 = vld [vmem:[%s0 + $0x390] sm:$0xff]
    %v294 = vld [vmem:[%s0 + $0x398] sm:$0xff]
    %v295 = vld [vmem:[%s0 + $0x3a0] sm:$0xff]
    %v296 = vld [vmem:[%s0 + $0x3a8] sm:$0xff]
    %v297 = vld [vmem:[%s0 + $0x3b0] sm:$0xff]
    %v298 = vld [vmem:[%s0 + $0x3b8] sm:$0xff]
    %v299 = vld [vmem:[%s0 + $0x3c0] sm:$0xff]
    %v300 = vld [vmem:[%s0 + $0x3c8] sm:$0xff]
    %v301 = vld [vmem:[%s0 + $0x3d0] sm:$0xff]
    %v302 = vld [vmem:[%s0 + $0x3d8] sm:$0xff]
    %v303 = vld [vmem:[%s0 + $0x3e0] sm:$0xff]
    %v304 = vld [vmem:[%s0 + $0x3e8] sm:$0xff]
    %v305 = vld [vmem:[%s0 + $0x3f0] sm:$0xff]
    %v306 = vld [vmem:[%s0 + $0x3f8] sm:$0xff]
    %v307 = vld [vmem:[%s0 + $0x400] sm:$0xff]
    %v308 = vld [vmem:[%s0 + $0x408] sm:$0xff]
    %v309 = vld [vmem:[%s0 + $0x410] sm:$0xff]
    %v310 = vld [vmem:[%s0 + $0x418] sm:$0xff]
    %v311 = vld [vmem:[%s0 + $0x420] sm:$0xff]
    %v312 = vld [vmem:[%s0 + $0x428] sm:$0xff]
    %v313 = vld [vmem:[%s0 + $0x430] sm:$0xff]
    %v314 = vld [vmem:[%s0 + $0x438] sm:$0xff]
    %v315 = vld [vmem:[%s0 + $0x440] sm:$0xff]
    %v316 = vld [vmem:[%s0 + $0x448] sm:$0xff]
    %v317 = vld [vmem:[%s0 + $0x450] sm:$0xff]
    %v318 = vld [vmem:[%s0 + $0x458] sm:$0xff]
    %v319 = vld [vmem:[%s0 + $0x460] sm:$0xff]
    %v320 = vld [vmem:[%s0 + $0x468] sm:$0xff]
    %v321 = vld [vmem:[%s0 + $0x470] sm:$0xff]
    %v322 = vld [vmem:[%s0 + $0x478] sm:$0xff]
    %v323 = vld [vmem:[%s0 + $0x480] sm:$0xff]
    %v324 = vld [vmem:[%s0 + $0x488] sm:$0xff]
    %v325 = vld [vmem:[%s0 + $0x490] sm:$0xff]
    %v326 = vld [vmem:[%s0 + $0x498] sm:$0xff]
    %v327 = vld [vmem:[%s0 + $0x4a0] sm:$0xff]
    %v328 = vld [vmem:[%s0 + $0x4a8] sm:$0xff]
    %v489 = vunpack.c.l.b16 %v19
    %v490 = vunpack.c.h.b16 %v19
    %v491 = vunpack.c.l.b16 %v20
    %v492 = vunpack.c.h.b16 %v20
    %v493 = vunpack.c.l.b16 %v21
    %v494 = vunpack.c.h.b16 %v21
    %v495 = vunpack.c.l.b16 %v22
    %v496 = vunpack.c.h.b16 %v22
    %v497 = vunpack.c.l.b16 %v23
    %v498 = vunpack.c.h.b16 %v23
    %v499 = vunpack.c.l.b16 %v24
    %v500 = vunpack.c.h.b16 %v24
    %v501 = vunpack.c.l.b16 %v25
    %v502 = vunpack.c.h.b16 %v25
    %v503 = vunpack.c.l.b16 %v26
    %v504 = vunpack.c.h.b16 %v26
    %v505 = vunpack.c.l.b16 %v27
    %v506 = vunpack.c.h.b16 %v27
    %v507 = vunpack.c.l.b16 %v28
    %v508 = vunpack.c.h.b16 %v28
    %v509 = vunpack.c.l.b16 %v29
    %v510 = vunpack.c.h.b16 %v29
    %v511 = vunpack.c.l.b16 %v30
    %v512 = vunpack.c.h.b16 %v30
    %v513 = vunpack.c.l.b16 %v31
    %v514 = vunpack.c.h.b16 %v31
    %v515 = vunpack.c.l.b16 %v32
    %v516 = vunpack.c.h.b16 %v32
    %v517 = vunpack.c.l.b16 %v33
    %v518 = vunpack.c.h.b16 %v33
    %v519 = vunpack.c.l.b16 %v34
    %v520 = vunpack.c.h.b16 %v34
    %v521 = vunpack.c.l.b16 %v35
    %v522 = vunpack.c.h.b16 %v35
    %v523 = vunpack.c.l.b16 %v36
    %v524 = vunpack.c.h.b16 %v36
    %v525 = vunpack.c.l.b16 %v37
    %v526 = vunpack.c.h.b16 %v37
    %v527 = vunpack.c.l.b16 %v38
    %v528 = vunpack.c.h.b16 %v38
    %v529 = vunpack.c.l.b16 %v39
    %v530 = vunpack.c.h.b16 %v39
    %v531 = vunpack.c.l.b16 %v40
    %v532 = vunpack.c.h.b16 %v40
    %v533 = vunpack.c.l.b16 %v41
    %v534 = vunpack.c.h.b16 %v41
    %v535 = vunpack.c.l.b16 %v42
    %v536 = vunpack.c.h.b16 %v42
    %v537 = vunpack.c.l.b16 %v43
    %v538 = vunpack.c.h.b16 %v43
    %v539 = vunpack.c.l.b16 %v44
    %v540 = vunpack.c.h.b16 %v44
    %v541 = vunpack.c.l.b16 %v45
    %v542 = vunpack.c.h.b16 %v45
    %v543 = vunpack.c.l.b16 %v46
    %v544 = vunpack.c.h.b16 %v46
    %v545 = vunpack.c.l.b16 %v47
    %v546 = vunpack.c.h.b16 %v47
    %v547 = vunpack.c.l.b16 %v48
    %v548 = vunpack.c.h.b16 %v48
    %v549 = vunpack.c.l.b16 %v49
    %v550 = vunpack.c.h.b16 %v49
    %v551 = vunpack.c.l.b16 %v50
    %v552 = vunpack.c.h.b16 %v50
    %v553 = vunpack.c.l.b16 %v51
    %v554 = vunpack.c.h.b16 %v51
    %v555 = vunpack.c.l.b16 %v52
    %v556 = vunpack.c.h.b16 %v52
    %v557 = vunpack.c.l.b16 %v53
    %v558 = vunpack.c.h.b16 %v53
    %v559 = vunpack.c.l.b16 %v54
    %v560 = vunpack.c.h.b16 %v54
    %v561 = vunpack.c.l.b16 %v55
    %v562 = vunpack.c.h.b16 %v55
    %v563 = vunpack.c.l.b16 %v56
    %v564 = vunpack.c.h.b16 %v56
    %v565 = vunpack.c.l.b16 %v57
    %v566 = vunpack.c.h.b16 %v57
    %v567 = vunpack.c.l.b16 %v58
    %v568 = vunpack.c.h.b16 %v58
    %v569 = vunpack.c.l.b16 %v59
    %v570 = vunpack.c.h.b16 %v59
    %v571 = vunpack.c.l.b16 %v60
    %v572 = vunpack.c.h.b16 %v60
    %v573 = vunpack.c.l.b16 %v61
    %v574 = vunpack.c.h.b16 %v61
    %v575 = vunpack.c.l.b16 %v62
    %v576 = vunpack.c.h.b16 %v62
    %v577 = vunpack.c.l.b16 %v63
    %v578 = vunpack.c.h.b16 %v63
    %v579 = vunpack.c.l.b16 %v64
    %v580 = vunpack.c.h.b16 %v64
    %v581 = vunpack.c.l.b16 %v65
    %v582 = vunpack.c.h.b16 %v65
    %v583 = vunpack.c.l.b16 %v66
    %v584 = vunpack.c.h.b16 %v66
    %v585 = vunpack.c.l.b16 %v67
    %v586 = vunpack.c.h.b16 %v67
    %v587 = vunpack.c.l.b16 %v68
    %v588 = vunpack.c.h.b16 %v68
    %v589 = vunpack.c.l.b16 %v69
    %v590 = vunpack.c.h.b16 %v69
    %v591 = vunpack.c.l.b16 %v70
    %v592 = vunpack.c.h.b16 %v70
    %v593 = vunpack.c.l.b16 %v71
    %v594 = vunpack.c.h.b16 %v71
    %v595 = vunpack.c.l.b16 %v72
    %v596 = vunpack.c.h.b16 %v72
    %v597 = vunpack.c.l.b16 %v73
    %v598 = vunpack.c.h.b16 %v73
    %v599 = vunpack.c.l.b16 %v74
    %v600 = vunpack.c.h.b16 %v74
    %v601 = vunpack.c.l.b16 %v75
    %v602 = vunpack.c.h.b16 %v75
    %v603 = vunpack.c.l.b16 %v76
    %v604 = vunpack.c.h.b16 %v76
    %v605 = vunpack.c.l.b16 %v77
    %v606 = vunpack.c.h.b16 %v77
    %v607 = vunpack.c.l.b16 %v78
    %v608 = vunpack.c.h.b16 %v78
    %v609 = vunpack.c.l.b16 %v79
    %v610 = vunpack.c.h.b16 %v79
    %v611 = vunpack.c.l.b16 %v80
    %v612 = vunpack.c.h.b16 %v80
    %v613 = vunpack.c.l.b16 %v81
    %v614 = vunpack.c.h.b16 %v81
    %v615 = vunpack.c.l.b16 %v82
    %v616 = vunpack.c.h.b16 %v82
    %v617 = vunpack.c.l.b16 %v83
    %v618 = vunpack.c.h.b16 %v83
    %v619 = vunpack.c.l.b16 %v84
    %v620 = vunpack.c.h.b16 %v84
    %v621 = vunpack.c.l.b16 %v85
    %v622 = vunpack.c.h.b16 %v85
    %v623 = vunpack.c.l.b16 %v86
    %v624 = vunpack.c.h.b16 %v86
    %v625 = vunpack.c.l.b16 %v87
    %v626 = vunpack.c.h.b16 %v87
    %v627 = vunpack.c.l.b16 %v88
    %v628 = vunpack.c.h.b16 %v88
    %v629 = vunpack.c.l.b16 %v89
    %v630 = vunpack.c.h.b16 %v89
    %v631 = vunpack.c.l.b16 %v90
    %v632 = vunpack.c.h.b16 %v90
    %v633 = vunpack.c.l.b16 %v91
    %v634 = vunpack.c.h.b16 %v91
    %v635 = vunpack.c.l.b16 %v92
    %v636 = vunpack.c.h.b16 %v92
    %v637 = vunpack.c.l.b16 %v93
    %v638 = vunpack.c.h.b16 %v93
    %v639 = vunpack.c.l.b16 %v94
    %v640 = vunpack.c.h.b16 %v94
    %v641 = vunpack.c.l.b16 %v95
    %v642 = vunpack.c.h.b16 %v95
    %v643 = vunpack.c.l.b16 %v96
    %v644 = vunpack.c.h.b16 %v96
    %v645 = vunpack.c.l.b16 %v97
    %v646 = vunpack.c.h.b16 %v97
    %v647 = vunpack.c.l.b16 %v98
    %v648 = vunpack.c.h.b16 %v98
    %v649 = vunpack.c.l.b16 %v99
    %v650 = vunpack.c.h.b16 %v99
    %v651 = vunpack.c.l.b16 %v100
    %v652 = vunpack.c.h.b16 %v100
    %v653 = vunpack.c.l.b16 %v101
    %v654 = vunpack.c.h.b16 %v101
    %v655 = vunpack.c.l.b16 %v102
    %v656 = vunpack.c.h.b16 %v102
    %v657 = vunpack.c.l.b16 %v103
    %v658 = vunpack.c.h.b16 %v103
    %v659 = vunpack.c.l.b16 %v104
    %v660 = vunpack.c.h.b16 %v104
    %v661 = vunpack.c.l.b16 %v105
    %v662 = vunpack.c.h.b16 %v105
    %v663 = vunpack.c.l.b16 %v106
    %v664 = vunpack.c.h.b16 %v106
    %v665 = vunpack.c.l.b16 %v107
    %v666 = vunpack.c.h.b16 %v107
    %v667 = vunpack.c.l.b16 %v108
    %v668 = vunpack.c.h.b16 %v108
    %v669 = vunpack.c.l.b16 %v109
    %v670 = vunpack.c.h.b16 %v109
    %v671 = vunpack.c.l.b16 %v110
    %v672 = vunpack.c.h.b16 %v110
    %v673 = vunpack.c.l.b16 %v111
    %v674 = vunpack.c.h.b16 %v111
    %v675 = vunpack.c.l.b16 %v112
    %v676 = vunpack.c.h.b16 %v112
    %v677 = vunpack.c.l.b16 %v113
    %v678 = vunpack.c.h.b16 %v113
    %v679 = vunpack.c.l.b16 %v114
    %v680 = vunpack.c.h.b16 %v114
    %v681 = vunpack.c.l.b16 %v115
    %v682 = vunpack.c.h.b16 %v115
    %v683 = vunpack.c.l.b16 %v116
    %v684 = vunpack.c.h.b16 %v116
    %v685 = vunpack.c.l.b16 %v117
    %v686 = vunpack.c.h.b16 %v117
    %v687 = vunpack.c.l.b16 %v118
    %v688 = vunpack.c.h.b16 %v118
    %v689 = vunpack.c.l.b16 %v119
    %v690 = vunpack.c.h.b16 %v119
    %v691 = vunpack.c.l.b16 %v120
    %v692 = vunpack.c.h.b16 %v120
    %v693 = vunpack.c.l.b16 %v121
    %v694 = vunpack.c.h.b16 %v121
    %v695 = vunpack.c.l.b16 %v122
    %v696 = vunpack.c.h.b16 %v122
    %v697 = vunpack.c.l.b16 %v123
    %v698 = vunpack.c.h.b16 %v123
    %v699 = vunpack.c.l.b16 %v124
    %v700 = vunpack.c.h.b16 %v124
    %v701 = vunpack.c.l.b16 %v125
    %v702 = vunpack.c.h.b16 %v125
    %v703 = vunpack.c.l.b16 %v126
    %v704 = vunpack.c.h.b16 %v126
    %v705 = vunpack.c.l.b16 %v127
    %v706 = vunpack.c.h.b16 %v127
    %v707 = vunpack.c.l.b16 %v128
    %v708 = vunpack.c.h.b16 %v128
    %v709 = vunpack.c.l.b16 %v129
    %v710 = vunpack.c.h.b16 %v129
    %v711 = vunpack.c.l.b16 %v130
    %v712 = vunpack.c.h.b16 %v130
    %v713 = vunpack.c.l.b16 %v131
    %v714 = vunpack.c.h.b16 %v131
    %v715 = vunpack.c.l.b16 %v132
    %v716 = vunpack.c.h.b16 %v132
    %v717 = vunpack.c.l.b16 %v133
    %v718 = vunpack.c.h.b16 %v133
    %v719 = vunpack.c.l.b16 %v134
    %v720 = vunpack.c.h.b16 %v134
    %v721 = vunpack.c.l.b16 %v135
    %v722 = vunpack.c.h.b16 %v135
    %v723 = vunpack.c.l.b16 %v136
    %v724 = vunpack.c.h.b16 %v136
    %v725 = vunpack.c.l.b16 %v137
    %v726 = vunpack.c.h.b16 %v137
    %v727 = vunpack.c.l.b16 %v138
    %v728 = vunpack.c.h.b16 %v138
    %v729 = vunpack.c.l.b16 %v139
    %v730 = vunpack.c.h.b16 %v139
    %v731 = vunpack.c.l.b16 %v140
    %v732 = vunpack.c.h.b16 %v140
    %v733 = vunpack.c.l.b16 %v141
    %v734 = vunpack.c.h.b16 %v141
    %v735 = vunpack.c.l.b16 %v142
    %v736 = vunpack.c.h.b16 %v142
    %v737 = vunpack.c.l.b16 %v143
    %v738 = vunpack.c.h.b16 %v143
    %v739 = vunpack.c.l.b16 %v144
    %v740 = vunpack.c.h.b16 %v144
    %v741 = vunpack.c.l.b16 %v145
    %v742 = vunpack.c.h.b16 %v145
    %v743 = vunpack.c.l.b16 %v146
    %v744 = vunpack.c.h.b16 %v146
    %v745 = vunpack.c.l.b16 %v147
    %v746 = vunpack.c.h.b16 %v147
    %v747 = vunpack.c.l.b16 %v148
    %v748 = vunpack.c.h.b16 %v148
    %v749 = vunpack.c.l.b16 %v149
    %v750 = vunpack.c.h.b16 %v149
    %v751 = vunpack.c.l.b16 %v150
    %v752 = vunpack.c.h.b16 %v150
    %v753 = vunpack.c.l.b16 %v151
    %v754 = vunpack.c.h.b16 %v151
    %v755 = vunpack.c.l.b16 %v152
    %v756 = vunpack.c.h.b16 %v152
    %v757 = vunpack.c.l.b16 %v153
    %v758 = vunpack.c.h.b16 %v153
    %v759 = vunpack.c.l.b16 %v154
    %v760 = vunpack.c.h.b16 %v154
    %v761 = vunpack.c.l.b16 %v155
    %v762 = vunpack.c.h.b16 %v155
    %v763 = vunpack.c.l.b16 %v156
    %v764 = vunpack.c.h.b16 %v156
    %v765 = vunpack.c.l.b16 %v157
    %v766 = vunpack.c.h.b16 %v157
    %v767 = vunpack.c.l.b16 %v158
    %v768 = vunpack.c.h.b16 %v158
    %v769 = vunpack.c.l.b16 %v159
    %v770 = vunpack.c.h.b16 %v159
    %v771 = vunpack.c.l.b16 %v160
    %v772 = vunpack.c.h.b16 %v160
    %v773 = vunpack.c.l.b16 %v161
    %v774 = vunpack.c.h.b16 %v161
    %v775 = vunpack.c.l.b16 %v162
    %v776 = vunpack.c.h.b16 %v162
    %v777 = vunpack.c.l.b16 %v163
    %v778 = vunpack.c.h.b16 %v163
    %v779 = vunpack.c.l.b16 %v164
    %v780 = vunpack.c.h.b16 %v164
    %v781 = vunpack.c.l.b16 %v165
    %v782 = vunpack.c.h.b16 %v165
    %v783 = vunpack.c.l.b16 %v166
    %v784 = vunpack.c.h.b16 %v166
    %v785 = vunpack.c.l.b16 %v167
    %v786 = vunpack.c.h.b16 %v167
    %v787 = vunpack.c.l.b16 %v168
    %v788 = vunpack.c.h.b16 %v168
    %v789 = vunpack.c.l.b16 %v169
    %v790 = vunpack.c.h.b16 %v169
    %v791 = vunpack.c.l.b16 %v170
    %v792 = vunpack.c.h.b16 %v170
    %v793 = vunpack.c.l.b16 %v171
    %v794 = vunpack.c.h.b16 %v171
    %v795 = vunpack.c.l.b16 %v172
    %v796 = vunpack.c.h.b16 %v172
    %v797 = vunpack.c.l.b16 %v173
    %v798 = vunpack.c.h.b16 %v173
    %v799 = vunpack.c.l.b16 %v174
    %v800 = vunpack.c.h.b16 %v174
    %v801 = vunpack.c.l.b16 %v175
    %v802 = vunpack.c.h.b16 %v175
    %v803 = vunpack.c.l.b16 %v176
    %v804 = vunpack.c.h.b16 %v176
    %v805 = vunpack.c.l.b16 %v177
    %v806 = vunpack.c.h.b16 %v177
    %v807 = vunpack.c.l.b16 %v178
    %v808 = vunpack.c.h.b16 %v178
    %v809 = vpack.c.b16 %v499, %v489
    %v810 = vpack.c.b16 %v500, %v490
    %v811 = vpack.c.b16 %v501, %v491
    %v812 = vpack.c.b16 %v502, %v492
    %v813 = vpack.c.b16 %v503, %v493
    %v814 = vpack.c.b16 %v504, %v494
    %v815 = vpack.c.b16 %v505, %v495
    %v816 = vpack.c.b16 %v506, %v496
    %v817 = vpack.c.b16 %v507, %v497
    %v818 = vpack.c.b16 %v508, %v498
    %v819 = vpack.c.b16 %v519, %v509
    %v820 = vpack.c.b16 %v520, %v510
    %v821 = vpack.c.b16 %v521, %v511
    %v822 = vpack.c.b16 %v522, %v512
    %v823 = vpack.c.b16 %v523, %v513
    %v824 = vpack.c.b16 %v524, %v514
    %v825 = vpack.c.b16 %v525, %v515
    %v826 = vpack.c.b16 %v526, %v516
    %v827 = vpack.c.b16 %v527, %v517
    %v828 = vpack.c.b16 %v528, %v518
    %v829 = vpack.c.b16 %v539, %v529
    %v830 = vpack.c.b16 %v540, %v530
    %v831 = vpack.c.b16 %v541, %v531
    %v832 = vpack.c.b16 %v542, %v532
    %v833 = vpack.c.b16 %v543, %v533
    %v834 = vpack.c.b16 %v544, %v534
    %v835 = vpack.c.b16 %v545, %v535
    %v836 = vpack.c.b16 %v546, %v536
    %v837 = vpack.c.b16 %v547, %v537
    %v838 = vpack.c.b16 %v548, %v538
    %v839 = vpack.c.b16 %v559, %v549
    %v840 = vpack.c.b16 %v560, %v550
    %v841 = vpack.c.b16 %v561, %v551
    %v842 = vpack.c.b16 %v562, %v552
    %v843 = vpack.c.b16 %v563, %v553
    %v844 = vpack.c.b16 %v564, %v554
    %v845 = vpack.c.b16 %v565, %v555
    %v846 = vpack.c.b16 %v566, %v556
    %v847 = vpack.c.b16 %v567, %v557
    %v848 = vpack.c.b16 %v568, %v558
    %v849 = vpack.c.b16 %v579, %v569
    %v850 = vpack.c.b16 %v580, %v570
    %v851 = vpack.c.b16 %v581, %v571
    %v852 = vpack.c.b16 %v582, %v572
    %v853 = vpack.c.b16 %v583, %v573
    %v854 = vpack.c.b16 %v584, %v574
    %v855 = vpack.c.b16 %v585, %v575
    %v856 = vpack.c.b16 %v586, %v576
    %v857 = vpack.c.b16 %v587, %v577
    %v858 = vpack.c.b16 %v588, %v578
    %v859 = vpack.c.b16 %v599, %v589
    %v860 = vpack.c.b16 %v600, %v590
    %v861 = vpack.c.b16 %v601, %v591
    %v862 = vpack.c.b16 %v602, %v592
    %v863 = vpack.c.b16 %v603, %v593
    %v864 = vpack.c.b16 %v604, %v594
    %v865 = vpack.c.b16 %v605, %v595
    %v866 = vpack.c.b16 %v606, %v596
    %v867 = vpack.c.b16 %v607, %v597
    %v868 = vpack.c.b16 %v608, %v598
    %v869 = vpack.c.b16 %v619, %v609
    %v870 = vpack.c.b16 %v620, %v610
    %v871 = vpack.c.b16 %v621, %v611
    %v872 = vpack.c.b16 %v622, %v612
    %v873 = vpack.c.b16 %v623, %v613
    %v874 = vpack.c.b16 %v624, %v614
    %v875 = vpack.c.b16 %v625, %v615
    %v876 = vpack.c.b16 %v626, %v616
    %v877 = vpack.c.b16 %v627, %v617
    %v878 = vpack.c.b16 %v628, %v618
    %v879 = vpack.c.b16 %v639, %v629
    %v880 = vpack.c.b16 %v640, %v630
    %v881 = vpack.c.b16 %v641, %v631
    %v882 = vpack.c.b16 %v642, %v632
    %v883 = vpack.c.b16 %v643, %v633
    %v884 = vpack.c.b16 %v644, %v634
    %v885 = vpack.c.b16 %v645, %v635
    %v886 = vpack.c.b16 %v646, %v636
    %v887 = vpack.c.b16 %v647, %v637
    %v888 = vpack.c.b16 %v648, %v638
    %v889 = vpack.c.b16 %v659, %v649
    %v890 = vpack.c.b16 %v660, %v650
    %v891 = vpack.c.b16 %v661, %v651
    %v892 = vpack.c.b16 %v662, %v652
    %v893 = vpack.c.b16 %v663, %v653
    %v894 = vpack.c.b16 %v664, %v654
    %v895 = vpack.c.b16 %v665, %v655
    %v896 = vpack.c.b16 %v666, %v656
    %v897 = vpack.c.b16 %v667, %v657
    %v898 = vpack.c.b16 %v668, %v658
    %v899 = vpack.c.b16 %v679, %v669
    %v900 = vpack.c.b16 %v680, %v670
    %v901 = vpack.c.b16 %v681, %v671
    %v902 = vpack.c.b16 %v682, %v672
    %v903 = vpack.c.b16 %v683, %v673
    %v904 = vpack.c.b16 %v684, %v674
    %v905 = vpack.c.b16 %v685, %v675
    %v906 = vpack.c.b16 %v686, %v676
    %v907 = vpack.c.b16 %v687, %v677
    %v908 = vpack.c.b16 %v688, %v678
    %v909 = vpack.c.b16 %v699, %v689
    %v910 = vpack.c.b16 %v700, %v690
    %v911 = vpack.c.b16 %v701, %v691
    %v912 = vpack.c.b16 %v702, %v692
    %v913 = vpack.c.b16 %v703, %v693
    %v914 = vpack.c.b16 %v704, %v694
    %v915 = vpack.c.b16 %v705, %v695
    %v916 = vpack.c.b16 %v706, %v696
    %v917 = vpack.c.b16 %v707, %v697
    %v918 = vpack.c.b16 %v708, %v698
    %v919 = vpack.c.b16 %v719, %v709
    %v920 = vpack.c.b16 %v720, %v710
    %v921 = vpack.c.b16 %v721, %v711
    %v922 = vpack.c.b16 %v722, %v712
    %v923 = vpack.c.b16 %v723, %v713
    %v924 = vpack.c.b16 %v724, %v714
    %v925 = vpack.c.b16 %v725, %v715
    %v926 = vpack.c.b16 %v726, %v716
    %v927 = vpack.c.b16 %v727, %v717
    %v928 = vpack.c.b16 %v728, %v718
    %v929 = vpack.c.b16 %v739, %v729
    %v930 = vpack.c.b16 %v740, %v730
    %v931 = vpack.c.b16 %v741, %v731
    %v932 = vpack.c.b16 %v742, %v732
    %v933 = vpack.c.b16 %v743, %v733
    %v934 = vpack.c.b16 %v744, %v734
    %v935 = vpack.c.b16 %v745, %v735
    %v936 = vpack.c.b16 %v746, %v736
    %v937 = vpack.c.b16 %v747, %v737
    %v938 = vpack.c.b16 %v748, %v738
    %v939 = vpack.c.b16 %v759, %v749
    %v940 = vpack.c.b16 %v760, %v750
    %v941 = vpack.c.b16 %v761, %v751
    %v942 = vpack.c.b16 %v762, %v752
    %v943 = vpack.c.b16 %v763, %v753
    %v944 = vpack.c.b16 %v764, %v754
    %v945 = vpack.c.b16 %v765, %v755
    %v946 = vpack.c.b16 %v766, %v756
    %v947 = vpack.c.b16 %v767, %v757
    %v948 = vpack.c.b16 %v768, %v758
    %v949 = vpack.c.b16 %v779, %v769
    %v950 = vpack.c.b16 %v780, %v770
    %v951 = vpack.c.b16 %v781, %v771
    %v952 = vpack.c.b16 %v782, %v772
    %v953 = vpack.c.b16 %v783, %v773
    %v954 = vpack.c.b16 %v784, %v774
    %v955 = vpack.c.b16 %v785, %v775
    %v956 = vpack.c.b16 %v786, %v776
    %v957 = vpack.c.b16 %v787, %v777
    %v958 = vpack.c.b16 %v788, %v778
    %v959 = vpack.c.b16 %v799, %v789
    %v960 = vpack.c.b16 %v800, %v790
    %v961 = vpack.c.b16 %v801, %v791
    %v962 = vpack.c.b16 %v802, %v792
    %v963 = vpack.c.b16 %v803, %v793
    %v964 = vpack.c.b16 %v804, %v794
    %v965 = vpack.c.b16 %v805, %v795
    %v966 = vpack.c.b16 %v806, %v796
    %v967 = vpack.c.b16 %v807, %v797
    %v968 = vpack.c.b16 %v808, %v798
    %v1263 = vunpack.c.l.b16 %v179
    %v1264 = vunpack.c.h.b16 %v179
    %v1265 = vunpack.c.l.b16 %v180
    %v1266 = vunpack.c.h.b16 %v180
    %v1267 = vunpack.c.l.b16 %v181
    %v1268 = vunpack.c.h.b16 %v181
    %v1269 = vunpack.c.l.b16 %v182
    %v1270 = vunpack.c.h.b16 %v182
    %v1271 = vunpack.c.l.b16 %v183
    %v1272 = vunpack.c.h.b16 %v183
    %v1273 = vunpack.c.l.b16 %v184
    %v1274 = vunpack.c.h.b16 %v184
    %v1275 = vunpack.c.l.b16 %v185
    %v1276 = vunpack.c.h.b16 %v185
    %v1277 = vunpack.c.l.b16 %v186
    %v1278 = vunpack.c.h.b16 %v186
    %v1279 = vunpack.c.l.b16 %v187
    %v1280 = vunpack.c.h.b16 %v187
    %v1281 = vunpack.c.l.b16 %v188
    %v1282 = vunpack.c.h.b16 %v188
    %v1283 = vunpack.c.l.b16 %v189
    %v1284 = vunpack.c.h.b16 %v189
    %v1285 = vunpack.c.l.b16 %v190
    %v1286 = vunpack.c.h.b16 %v190
    %v1287 = vunpack.c.l.b16 %v191
    %v1288 = vunpack.c.h.b16 %v191
    %v1289 = vunpack.c.l.b16 %v192
    %v1290 = vunpack.c.h.b16 %v192
    %v1291 = vunpack.c.l.b16 %v193
    %v1292 = vunpack.c.h.b16 %v193
    %v1293 = vunpack.c.l.b16 %v194
    %v1294 = vunpack.c.h.b16 %v194
    %v1295 = vunpack.c.l.b16 %v195
    %v1296 = vunpack.c.h.b16 %v195
    %v1297 = vunpack.c.l.b16 %v196
    %v1298 = vunpack.c.h.b16 %v196
    %v1299 = vunpack.c.l.b16 %v197
    %v1300 = vunpack.c.h.b16 %v197
    %v1301 = vunpack.c.l.b16 %v198
    %v1302 = vunpack.c.h.b16 %v198
    %v1303 = vunpack.c.l.b16 %v199
    %v1304 = vunpack.c.h.b16 %v199
    %v1305 = vunpack.c.l.b16 %v200
    %v1306 = vunpack.c.h.b16 %v200
    %v1307 = vunpack.c.l.b16 %v201
    %v1308 = vunpack.c.h.b16 %v201
    %v1309 = vunpack.c.l.b16 %v202
    %v1310 = vunpack.c.h.b16 %v202
    %v1311 = vunpack.c.l.b16 %v203
    %v1312 = vunpack.c.h.b16 %v203
    %v1313 = vunpack.c.l.b16 %v204
    %v1314 = vunpack.c.h.b16 %v204
    %v1315 = vunpack.c.l.b16 %v205
    %v1316 = vunpack.c.h.b16 %v205
    %v1317 = vunpack.c.l.b16 %v206
    %v1318 = vunpack.c.h.b16 %v206
    %v1319 = vunpack.c.l.b16 %v207
    %v1320 = vunpack.c.h.b16 %v207
    %v1321 = vunpack.c.l.b16 %v208
    %v1322 = vunpack.c.h.b16 %v208
    %v1323 = vunpack.c.l.b16 %v209
    %v1324 = vunpack.c.h.b16 %v209
    %v1325 = vunpack.c.l.b16 %v210
    %v1326 = vunpack.c.h.b16 %v210
    %v1327 = vunpack.c.l.b16 %v211
    %v1328 = vunpack.c.h.b16 %v211
    %v1329 = vunpack.c.l.b16 %v212
    %v1330 = vunpack.c.h.b16 %v212
    %v1331 = vunpack.c.l.b16 %v213
    %v1332 = vunpack.c.h.b16 %v213
    %v1333 = vunpack.c.l.b16 %v214
    %v1334 = vunpack.c.h.b16 %v214
    %v1335 = vunpack.c.l.b16 %v215
    %v1336 = vunpack.c.h.b16 %v215
    %v1337 = vunpack.c.l.b16 %v216
    %v1338 = vunpack.c.h.b16 %v216
    %v1339 = vunpack.c.l.b16 %v217
    %v1340 = vunpack.c.h.b16 %v217
    %v1341 = vunpack.c.l.b16 %v218
    %v1342 = vunpack.c.h.b16 %v218
    %v1343 = vunpack.c.l.b16 %v219
    %v1344 = vunpack.c.h.b16 %v219
    %v1345 = vunpack.c.l.b16 %v220
    %v1346 = vunpack.c.h.b16 %v220
    %v1347 = vunpack.c.l.b16 %v221
    %v1348 = vunpack.c.h.b16 %v221
    %v1349 = vunpack.c.l.b16 %v222
    %v1350 = vunpack.c.h.b16 %v222
    %v1351 = vunpack.c.l.b16 %v223
    %v1352 = vunpack.c.h.b16 %v223
    %v1353 = vunpack.c.l.b16 %v224
    %v1354 = vunpack.c.h.b16 %v224
    %v1355 = vunpack.c.l.b16 %v225
    %v1356 = vunpack.c.h.b16 %v225
    %v1357 = vunpack.c.l.b16 %v226
    %v1358 = vunpack.c.h.b16 %v226
    %v1359 = vunpack.c.l.b16 %v227
    %v1360 = vunpack.c.h.b16 %v227
    %v1361 = vunpack.c.l.b16 %v228
    %v1362 = vunpack.c.h.b16 %v228
    %v1363 = vunpack.c.l.b16 %v229
    %v1364 = vunpack.c.h.b16 %v229
    %v1365 = vunpack.c.l.b16 %v230
    %v1366 = vunpack.c.h.b16 %v230
    %v1367 = vunpack.c.l.b16 %v231
    %v1368 = vunpack.c.h.b16 %v231
    %v1369 = vunpack.c.l.b16 %v232
    %v1370 = vunpack.c.h.b16 %v232
    %v1371 = vunpack.c.l.b16 %v233
    %v1372 = vunpack.c.h.b16 %v233
    %v1373 = vunpack.c.l.b16 %v234
    %v1374 = vunpack.c.h.b16 %v234
    %v1375 = vunpack.c.l.b16 %v235
    %v1376 = vunpack.c.h.b16 %v235
    %v1377 = vunpack.c.l.b16 %v236
    %v1378 = vunpack.c.h.b16 %v236
    %v1379 = vunpack.c.l.b16 %v237
    %v1380 = vunpack.c.h.b16 %v237
    %v1381 = vunpack.c.l.b16 %v238
    %v1382 = vunpack.c.h.b16 %v238
    %v1383 = vunpack.c.l.b16 %v239
    %v1384 = vunpack.c.h.b16 %v239
    %v1385 = vunpack.c.l.b16 %v240
    %v1386 = vunpack.c.h.b16 %v240
    %v1387 = vunpack.c.l.b16 %v241
    %v1388 = vunpack.c.h.b16 %v241
    %v1389 = vunpack.c.l.b16 %v242
    %v1390 = vunpack.c.h.b16 %v242
    %v1391 = vunpack.c.l.b16 %v243
    %v1392 = vunpack.c.h.b16 %v243
    %v1393 = vunpack.c.l.b16 %v244
    %v1394 = vunpack.c.h.b16 %v244
    %v1395 = vunpack.c.l.b16 %v245
    %v1396 = vunpack.c.h.b16 %v245
    %v1397 = vunpack.c.l.b16 %v246
    %v1398 = vunpack.c.h.b16 %v246
    %v1399 = vunpack.c.l.b16 %v247
    %v1400 = vunpack.c.h.b16 %v247
    %v1401 = vunpack.c.l.b16 %v248
    %v1402 = vunpack.c.h.b16 %v248
    %v1403 = vunpack.c.l.b16 %v249
    %v1404 = vunpack.c.h.b16 %v249
    %v1405 = vunpack.c.l.b16 %v250
    %v1406 = vunpack.c.h.b16 %v250
    %v1407 = vunpack.c.l.b16 %v251
    %v1408 = vunpack.c.h.b16 %v251
    %v1409 = vunpack.c.l.b16 %v252
    %v1410 = vunpack.c.h.b16 %v252
    %v1411 = vunpack.c.l.b16 %v253
    %v1412 = vunpack.c.h.b16 %v253
    %v1413 = vunpack.c.l.b16 %v254
    %v1414 = vunpack.c.h.b16 %v254
    %v1415 = vunpack.c.l.b16 %v255
    %v1416 = vunpack.c.h.b16 %v255
    %v1417 = vunpack.c.l.b16 %v256
    %v1418 = vunpack.c.h.b16 %v256
    %v1419 = vunpack.c.l.b16 %v257
    %v1420 = vunpack.c.h.b16 %v257
    %v1421 = vunpack.c.l.b16 %v258
    %v1422 = vunpack.c.h.b16 %v258
    %v1423 = vunpack.c.l.b16 %v259
    %v1424 = vunpack.c.h.b16 %v259
    %v1425 = vunpack.c.l.b16 %v260
    %v1426 = vunpack.c.h.b16 %v260
    %v1427 = vunpack.c.l.b16 %v261
    %v1428 = vunpack.c.h.b16 %v261
    %v1429 = vunpack.c.l.b16 %v262
    %v1430 = vunpack.c.h.b16 %v262
    %v1431 = vunpack.c.l.b16 %v263
    %v1432 = vunpack.c.h.b16 %v263
    %v1433 = vunpack.c.l.b16 %v264
    %v1434 = vunpack.c.h.b16 %v264
    %v1435 = vunpack.c.l.b16 %v265
    %v1436 = vunpack.c.h.b16 %v265
    %v1437 = vunpack.c.l.b16 %v266
    %v1438 = vunpack.c.h.b16 %v266
    %v1439 = vunpack.c.l.b16 %v267
    %v1440 = vunpack.c.h.b16 %v267
    %v1441 = vunpack.c.l.b16 %v268
    %v1442 = vunpack.c.h.b16 %v268
    %v1443 = vunpack.c.l.b16 %v269
    %v1444 = vunpack.c.h.b16 %v269
    %v1445 = vunpack.c.l.b16 %v270
    %v1446 = vunpack.c.h.b16 %v270
    %v1447 = vunpack.c.l.b16 %v271
    %v1448 = vunpack.c.h.b16 %v271
    %v1449 = vunpack.c.l.b16 %v272
    %v1450 = vunpack.c.h.b16 %v272
    %v1451 = vunpack.c.l.b16 %v273
    %v1452 = vunpack.c.h.b16 %v273
    %v1453 = vunpack.c.l.b16 %v274
    %v1454 = vunpack.c.h.b16 %v274
    %v1455 = vunpack.c.l.b16 %v275
    %v1456 = vunpack.c.h.b16 %v275
    %v1457 = vunpack.c.l.b16 %v276
    %v1458 = vunpack.c.h.b16 %v276
    %v1459 = vunpack.c.l.b16 %v277
    %v1460 = vunpack.c.h.b16 %v277
    %v1461 = vunpack.c.l.b16 %v278
    %v1462 = vunpack.c.h.b16 %v278
    %v1463 = vunpack.c.l.b16 %v279
    %v1464 = vunpack.c.h.b16 %v279
    %v1465 = vunpack.c.l.b16 %v280
    %v1466 = vunpack.c.h.b16 %v280
    %v1467 = vunpack.c.l.b16 %v281
    %v1468 = vunpack.c.h.b16 %v281
    %v1469 = vunpack.c.l.b16 %v282
    %v1470 = vunpack.c.h.b16 %v282
    %v1471 = vunpack.c.l.b16 %v283
    %v1472 = vunpack.c.h.b16 %v283
    %v1473 = vunpack.c.l.b16 %v284
    %v1474 = vunpack.c.h.b16 %v284
    %v1475 = vunpack.c.l.b16 %v285
    %v1476 = vunpack.c.h.b16 %v285
    %v1477 = vunpack.c.l.b16 %v286
    %v1478 = vunpack.c.h.b16 %v286
    %v1479 = vunpack.c.l.b16 %v287
    %v1480 = vunpack.c.h.b16 %v287
    %v1481 = vunpack.c.l.b16 %v288
    %v1482 = vunpack.c.h.b16 %v288
    %v1483 = vunpack.c.l.b16 %v289
    %v1484 = vunpack.c.h.b16 %v289
    %v1485 = vunpack.c.l.b16 %v290
    %v1486 = vunpack.c.h.b16 %v290
    %v1487 = vunpack.c.l.b16 %v291
    %v1488 = vunpack.c.h.b16 %v291
    %v1489 = vunpack.c.l.b16 %v292
    %v1490 = vunpack.c.h.b16 %v292
    %v1491 = vunpack.c.l.b16 %v293
    %v1492 = vunpack.c.h.b16 %v293
    %v1493 = vunpack.c.l.b16 %v294
    %v1494 = vunpack.c.h.b16 %v294
    %v1495 = vunpack.c.l.b16 %v295
    %v1496 = vunpack.c.h.b16 %v295
    %v1497 = vunpack.c.l.b16 %v296
    %v1498 = vunpack.c.h.b16 %v296
    %v1499 = vunpack.c.l.b16 %v297
    %v1500 = vunpack.c.h.b16 %v297
    %v1501 = vunpack.c.l.b16 %v298
    %v1502 = vunpack.c.h.b16 %v298
    %v1503 = vunpack.c.l.b16 %v299
    %v1504 = vunpack.c.h.b16 %v299
    %v1505 = vunpack.c.l.b16 %v300
    %v1506 = vunpack.c.h.b16 %v300
    %v1507 = vunpack.c.l.b16 %v301
    %v1508 = vunpack.c.h.b16 %v301
    %v1509 = vunpack.c.l.b16 %v302
    %v1510 = vunpack.c.h.b16 %v302
    %v1511 = vunpack.c.l.b16 %v303
    %v1512 = vunpack.c.h.b16 %v303
    %v1513 = vunpack.c.l.b16 %v304
    %v1514 = vunpack.c.h.b16 %v304
    %v1515 = vunpack.c.l.b16 %v305
    %v1516 = vunpack.c.h.b16 %v305
    %v1517 = vunpack.c.l.b16 %v306
    %v1518 = vunpack.c.h.b16 %v306
    %v1519 = vunpack.c.l.b16 %v307
    %v1520 = vunpack.c.h.b16 %v307
    %v1521 = vunpack.c.l.b16 %v308
    %v1522 = vunpack.c.h.b16 %v308
    %v1523 = vunpack.c.l.b16 %v309
    %v1524 = vunpack.c.h.b16 %v309
    %v1525 = vunpack.c.l.b16 %v310
    %v1526 = vunpack.c.h.b16 %v310
    %v1527 = vunpack.c.l.b16 %v311
    %v1528 = vunpack.c.h.b16 %v311
    %v1529 = vunpack.c.l.b16 %v312
    %v1530 = vunpack.c.h.b16 %v312
    %v1531 = vunpack.c.l.b16 %v313
    %v1532 = vunpack.c.h.b16 %v313
    %v1533 = vunpack.c.l.b16 %v314
    %v1534 = vunpack.c.h.b16 %v314
    %v1535 = vunpack.c.l.b16 %v315
    %v1536 = vunpack.c.h.b16 %v315
    %v1537 = vunpack.c.l.b16 %v316
    %v1538 = vunpack.c.h.b16 %v316
    %v1539 = vunpack.c.l.b16 %v317
    %v1540 = vunpack.c.h.b16 %v317
    %v1541 = vunpack.c.l.b16 %v318
    %v1542 = vunpack.c.h.b16 %v318
    %v1543 = vunpack.c.l.b16 %v319
    %v1544 = vunpack.c.h.b16 %v319
    %v1545 = vunpack.c.l.b16 %v320
    %v1546 = vunpack.c.h.b16 %v320
    %v1547 = vunpack.c.l.b16 %v321
    %v1548 = vunpack.c.h.b16 %v321
    %v1549 = vunpack.c.l.b16 %v322
    %v1550 = vunpack.c.h.b16 %v322
    %v1551 = vunpack.c.l.b16 %v323
    %v1552 = vunpack.c.h.b16 %v323
    %v1553 = vunpack.c.l.b16 %v324
    %v1554 = vunpack.c.h.b16 %v324
    %v1555 = vunpack.c.l.b16 %v325
    %v1556 = vunpack.c.h.b16 %v325
    %v1557 = vunpack.c.l.b16 %v326
    %v1558 = vunpack.c.h.b16 %v326
    %v1559 = vunpack.c.l.b16 %v327
    %v1560 = vunpack.c.h.b16 %v327
    %v1561 = vunpack.c.l.b16 %v328
    %v1562 = vunpack.c.h.b16 %v328
    %v1563 = vpack.c.b16 %v1265, %v1263
    %v1564 = vpack.c.b16 %v1266, %v1264
    %v1565 = vpack.c.b16 %v1269, %v1267
    %v1566 = vpack.c.b16 %v1270, %v1268
    %v1567 = vpack.c.b16 %v1273, %v1271
    %v1568 = vpack.c.b16 %v1274, %v1272
    %v1569 = vpack.c.b16 %v1277, %v1275
    %v1570 = vpack.c.b16 %v1278, %v1276
    %v1571 = vpack.c.b16 %v1281, %v1279
    %v1572 = vpack.c.b16 %v1282, %v1280
    %v1573 = vpack.c.b16 %v1285, %v1283
    %v1574 = vpack.c.b16 %v1286, %v1284
    %v1575 = vpack.c.b16 %v1289, %v1287
    %v1576 = vpack.c.b16 %v1290, %v1288
    %v1577 = vpack.c.b16 %v1293, %v1291
    %v1578 = vpack.c.b16 %v1294, %v1292
    %v1579 = vpack.c.b16 %v1297, %v1295
    %v1580 = vpack.c.b16 %v1298, %v1296
    %v1581 = vpack.c.b16 %v1301, %v1299
    %v1582 = vpack.c.b16 %v1302, %v1300
    %v1583 = vpack.c.b16 %v1305, %v1303
    %v1584 = vpack.c.b16 %v1306, %v1304
    %v1585 = vpack.c.b16 %v1309, %v1307
    %v1586 = vpack.c.b16 %v1310, %v1308
    %v1587 = vpack.c.b16 %v1313, %v1311
    %v1588 = vpack.c.b16 %v1314, %v1312
    %v1589 = vpack.c.b16 %v1317, %v1315
    %v1590 = vpack.c.b16 %v1318, %v1316
    %v1591 = vpack.c.b16 %v1321, %v1319
    %v1592 = vpack.c.b16 %v1322, %v1320
    %v1593 = vpack.c.b16 %v1325, %v1323
    %v1594 = vpack.c.b16 %v1326, %v1324
    %v1595 = vpack.c.b16 %v1329, %v1327
    %v1596 = vpack.c.b16 %v1330, %v1328
    %v1597 = vpack.c.b16 %v1333, %v1331
    %v1598 = vpack.c.b16 %v1334, %v1332
    %v1599 = vpack.c.b16 %v1337, %v1335
    %v1600 = vpack.c.b16 %v1338, %v1336
    %v1601 = vpack.c.b16 %v1341, %v1339
    %v1602 = vpack.c.b16 %v1342, %v1340
    %v1603 = vpack.c.b16 %v1345, %v1343
    %v1604 = vpack.c.b16 %v1346, %v1344
    %v1605 = vpack.c.b16 %v1349, %v1347
    %v1606 = vpack.c.b16 %v1350, %v1348
    %v1607 = vpack.c.b16 %v1353, %v1351
    %v1608 = vpack.c.b16 %v1354, %v1352
    %v1609 = vpack.c.b16 %v1357, %v1355
    %v1610 = vpack.c.b16 %v1358, %v1356
    %v1611 = vpack.c.b16 %v1361, %v1359
    %v1612 = vpack.c.b16 %v1362, %v1360
    %v1613 = vpack.c.b16 %v1365, %v1363
    %v1614 = vpack.c.b16 %v1366, %v1364
    %v1615 = vpack.c.b16 %v1369, %v1367
    %v1616 = vpack.c.b16 %v1370, %v1368
    %v1617 = vpack.c.b16 %v1373, %v1371
    %v1618 = vpack.c.b16 %v1374, %v1372
    %v1619 = vpack.c.b16 %v1377, %v1375
    %v1620 = vpack.c.b16 %v1378, %v1376
    %v1621 = vpack.c.b16 %v1381, %v1379
    %v1622 = vpack.c.b16 %v1382, %v1380
    %v1623 = vpack.c.b16 %v1385, %v1383
    %v1624 = vpack.c.b16 %v1386, %v1384
    %v1625 = vpack.c.b16 %v1389, %v1387
    %v1626 = vpack.c.b16 %v1390, %v1388
    %v1627 = vpack.c.b16 %v1393, %v1391
    %v1628 = vpack.c.b16 %v1394, %v1392
    %v1629 = vpack.c.b16 %v1397, %v1395
    %v1630 = vpack.c.b16 %v1398, %v1396
    %v1631 = vpack.c.b16 %v1401, %v1399
    %v1632 = vpack.c.b16 %v1402, %v1400
    %v1633 = vpack.c.b16 %v1405, %v1403
    %v1634 = vpack.c.b16 %v1406, %v1404
    %v1635 = vpack.c.b16 %v1409, %v1407
    %v1636 = vpack.c.b16 %v1410, %v1408
    %v1637 = vpack.c.b16 %v1413, %v1411
    %v1638 = vpack.c.b16 %v1414, %v1412
    %v1639 = vpack.c.b16 %v1417, %v1415
    %v1640 = vpack.c.b16 %v1418, %v1416
    %v1641 = vpack.c.b16 %v1421, %v1419
    %v1642 = vpack.c.b16 %v1422, %v1420
    %v1643 = vpack.c.b16 %v1425, %v1423
    %v1644 = vpack.c.b16 %v1426, %v1424
    %v1645 = vpack.c.b16 %v1429, %v1427
    %v1646 = vpack.c.b16 %v1430, %v1428
    %v1647 = vpack.c.b16 %v1433, %v1431
    %v1648 = vpack.c.b16 %v1434, %v1432
    %v1649 = vpack.c.b16 %v1437, %v1435
    %v1650 = vpack.c.b16 %v1438, %v1436
    %v1651 = vpack.c.b16 %v1441, %v1439
    %v1652 = vpack.c.b16 %v1442, %v1440
    %v1653 = vpack.c.b16 %v1445, %v1443
    %v1654 = vpack.c.b16 %v1446, %v1444
    %v1655 = vpack.c.b16 %v1449, %v1447
    %v1656 = vpack.c.b16 %v1450, %v1448
    %v1657 = vpack.c.b16 %v1453, %v1451
    %v1658 = vpack.c.b16 %v1454, %v1452
    %v1659 = vpack.c.b16 %v1457, %v1455
    %v1660 = vpack.c.b16 %v1458, %v1456
    %v1661 = vpack.c.b16 %v1461, %v1459
    %v1662 = vpack.c.b16 %v1462, %v1460
    %v1663 = vpack.c.b16 %v1465, %v1463
    %v1664 = vpack.c.b16 %v1466, %v1464
    %v1665 = vpack.c.b16 %v1469, %v1467
    %v1666 = vpack.c.b16 %v1470, %v1468
    %v1667 = vpack.c.b16 %v1473, %v1471
    %v1668 = vpack.c.b16 %v1474, %v1472
    %v1669 = vpack.c.b16 %v1477, %v1475
    %v1670 = vpack.c.b16 %v1478, %v1476
    %v1671 = vpack.c.b16 %v1481, %v1479
    %v1672 = vpack.c.b16 %v1482, %v1480
    %v1673 = vpack.c.b16 %v1485, %v1483
    %v1674 = vpack.c.b16 %v1486, %v1484
    %v1675 = vpack.c.b16 %v1489, %v1487
    %v1676 = vpack.c.b16 %v1490, %v1488
    %v1677 = vpack.c.b16 %v1493, %v1491
    %v1678 = vpack.c.b16 %v1494, %v1492
    %v1679 = vpack.c.b16 %v1497, %v1495
    %v1680 = vpack.c.b16 %v1498, %v1496
    %v1681 = vpack.c.b16 %v1501, %v1499
    %v1682 = vpack.c.b16 %v1502, %v1500
    %v1683 = vpack.c.b16 %v1505, %v1503
    %v1684 = vpack.c.b16 %v1506, %v1504
    %v1685 = vpack.c.b16 %v1509, %v1507
    %v1686 = vpack.c.b16 %v1510, %v1508
    %v1687 = vpack.c.b16 %v1513, %v1511
    %v1688 = vpack.c.b16 %v1514, %v1512
    %v1689 = vpack.c.b16 %v1517, %v1515
    %v1690 = vpack.c.b16 %v1518, %v1516
    %v1691 = vpack.c.b16 %v1521, %v1519
    %v1692 = vpack.c.b16 %v1522, %v1520
    %v1693 = vpack.c.b16 %v1525, %v1523
    %v1694 = vpack.c.b16 %v1526, %v1524
    %v1695 = vpack.c.b16 %v1529, %v1527
    %v1696 = vpack.c.b16 %v1530, %v1528
    %v1697 = vpack.c.b16 %v1533, %v1531
    %v1698 = vpack.c.b16 %v1534, %v1532
    %v1699 = vpack.c.b16 %v1537, %v1535
    %v1700 = vpack.c.b16 %v1538, %v1536
    %v1701 = vpack.c.b16 %v1541, %v1539
    %v1702 = vpack.c.b16 %v1542, %v1540
    %v1703 = vpack.c.b16 %v1545, %v1543
    %v1704 = vpack.c.b16 %v1546, %v1544
    %v1705 = vpack.c.b16 %v1549, %v1547
    %v1706 = vpack.c.b16 %v1550, %v1548
    %v1707 = vpack.c.b16 %v1553, %v1551
    %v1708 = vpack.c.b16 %v1554, %v1552
    %v1709 = vpack.c.b16 %v1557, %v1555
    %v1710 = vpack.c.b16 %v1558, %v1556
    %v1711 = vpack.c.b16 %v1561, %v1559
    %v1712 = vpack.c.b16 %v1562, %v1560
    %vm1863 = vcmask 392192
    %v1865 = vsel %vm1863, %v818, 0
    %v1868 = vsel %vm1863, %v828, 0
    %v1871 = vsel %vm1863, %v838, 0
    %v1874 = vsel %vm1863, %v848, 0
    %v1877 = vsel %vm1863, %v858, 0
    %v1880 = vsel %vm1863, %v868, 0
    %v1883 = vsel %vm1863, %v878, 0
    %v1886 = vsel %vm1863, %v888, 0
    %v1889 = vsel %vm1863, %v898, 0
    %v1892 = vsel %vm1863, %v908, 0
    %v1895 = vsel %vm1863, %v918, 0
    %v1898 = vsel %vm1863, %v928, 0
    %v1901 = vsel %vm1863, %v938, 0
    %v1904 = vsel %vm1863, %v948, 0
    %v1907 = vsel %vm1863, %v958, 0
    %v1910 = vsel %vm1863, %v968, 0
    %1912 = vmatprep.subr.bf16.mxu0 %v1564
    %1913 = vmatpush1.bf16.msra.mxu0 %v1563
    %1914 = vmatprep.subr.bf16.mxu0 %v1566
    %1915 = vmatpush1.bf16.msra.mxu0 %v1565
    %1916 = vmatprep.subr.bf16.mxu0 %v1568
    %1917 = vmatpush1.bf16.msra.mxu0 %v1567
    %1918 = vmatprep.subr.bf16.mxu0 %v1570
    %1919 = vmatpush1.bf16.msra.mxu0 %v1569
    %1920 = vmatprep.subr.bf16.mxu0 %v1572
    %1921 = vmatpush1.bf16.msra.mxu0 %v1571
    %1922 = vmatprep.subr.bf16.mxu0 %v1574
    %1923 = vmatpush1.bf16.msra.mxu0 %v1573
    %1924 = vmatprep.subr.bf16.mxu0 %v1576
    %1925 = vmatpush1.bf16.msra.mxu0 %v1575
    %1926 = vmatprep.subr.bf16.mxu0 %v1578
    %1927 = vmatpush1.bf16.msra.mxu0 %v1577
    %1928 = vmatprep.subr.bf16.mxu0 %v1580
    %1929 = vmatpush1.bf16.msra.mxu0 %v1579
    %1930 = vmatprep.subr.bf16.mxu0 %v1582
    %1931 = vmatpush1.bf16.msra.mxu0 %v1581
    %1932 = vmatprep.subr.bf16.mxu0 %v1584
    %1933 = vmatpush1.bf16.msra.mxu0 %v1583
    %1934 = vmatprep.subr.bf16.mxu0 %v1586
    %1935 = vmatpush1.bf16.msra.mxu0 %v1585
    %1936 = vmatprep.subr.bf16.mxu0 %v1588
    %1937 = vmatpush1.bf16.msra.mxu0 %v1587
    %1938 = vmatprep.subr.bf16.mxu0 %v1590
    %1939 = vmatpush1.bf16.msra.mxu0 %v1589
    %1940 = vmatprep.subr.bf16.mxu0 %v1592
    %1941 = vmatpush1.bf16.msra.mxu0 %v1591
    %1942 = vmatprep.subr.bf16.mxu0 %v1594
    %1943 = vmatpush1.bf16.msra.mxu0 %v1593
    %1944 = vmatprep.mubr.bf16.mxu0 %v810
    %1945 = vmatmul.mubr.bf16.gmra.mrb[0].mxu0 %v809
    %v1946 = vpop.f32.mrb[0].mxu0
    %v1947 = vadd.f32 0.0, %v1946
    %v1948 = vpop.f32.mrb[0].mxu0
    %v1949 = vadd.f32 0.0, %v1948
    %v1950 = vpop.f32.mrb[0].mxu0
    %v1951 = vadd.f32 0.0, %v1950
    %v1952 = vpop.f32.mrb[0].mxu0
    %v1953 = vadd.f32 0.0, %v1952
    %1954 = vmatprep.mubr.bf16.mxu0 %v820
    %1955 = vmatmul.mubr.bf16.gmra.mrb[0].mxu0 %v819
    %v1956 = vpop.f32.mrb[0].mxu0
    %v1957 = vadd.f32 0.0, %v1956
    %v1958 = vpop.f32.mrb[0].mxu0
    %v1959 = vadd.f32 0.0, %v1958
    %v1960 = vpop.f32.mrb[0].mxu0
    %v1961 = vadd.f32 0.0, %v1960
    %v1962 = vpop.f32.mrb[0].mxu0
    %v1963 = vadd.f32 0.0, %v1962
    %1964 = vmatprep.mubr.bf16.mxu0 %v830
    %1965 = vmatmul.mubr.bf16.gmra.mrb[0].mxu0 %v829
    %v1966 = vpop.f32.mrb[0].mxu0
    %v1967 = vadd.f32 0.0, %v1966
    %v1968 = vpop.f32.mrb[0].mxu0
    %v1969 = vadd.f32 0.0, %v1968
    %v1970 = vpop.f32.mrb[0].mxu0
    %v1971 = vadd.f32 0.0, %v1970
    %v1972 = vpop.f32.mrb[0].mxu0
    %v1973 = vadd.f32 0.0, %v1972
    %1974 = vmatprep.mubr.bf16.mxu0 %v840
    %1975 = vmatmul.mubr.bf16.gmra.mrb[0].mxu0 %v839
    %v1976 = vpop.f32.mrb[0].mxu0
    %v1977 = vadd.f32 0.0, %v1976
    %v1978 = vpop.f32.mrb[0].mxu0
    %v1979 = vadd.f32 0.0, %v1978
    %v1980 = vpop.f32.mrb[0].mxu0
    %v1981 = vadd.f32 0.0, %v1980
    %v1982 = vpop.f32.mrb[0].mxu0
    %v1983 = vadd.f32 0.0, %v1982
    %1984 = vmatprep.mubr.bf16.mxu0 %v850
    %1985 = vmatmul.mubr.bf16.gmra.mrb[0].mxu0 %v849
    %v1986 = vpop.f32.mrb[0].mxu0
    %v1987 = vadd.f32 0.0, %v1986
    %v1988 = vpop.f32.mrb[0].mxu0
    %v1989 = vadd.f32 0.0, %v1988
    %v1990 = vpop.f32.mrb[0].mxu0
    %v1991 = vadd.f32 0.0, %v1990
    %v1992 = vpop.f32.mrb[0].mxu0
    %v1993 = vadd.f32 0.0, %v1992
    %1994 = vmatprep.mubr.bf16.mxu0 %v860
    %1995 = vmatmul.mubr.bf16.gmra.mrb[0].mxu0 %v859
    %v1996 = vpop.f32.mrb[0].mxu0
    %v1997 = vadd.f32 0.0, %v1996
    %v1998 = vpop.f32.mrb[0].mxu0
    %v1999 = vadd.f32 0.0, %v1998
    %v2000 = vpop.f32.mrb[0].mxu0
    %v2001 = vadd.f32 0.0, %v2000
    %v2002 = vpop.f32.mrb[0].mxu0
    %v2003 = vadd.f32 0.0, %v2002
    %2004 = vmatprep.mubr.bf16.mxu0 %v870
    %2005 = vmatmul.mubr.bf16.gmra.mrb[0].mxu0 %v869
    %v2006 = vpop.f32.mrb[0].mxu0
    %v2007 = vadd.f32 0.0, %v2006
    %v2008 = vpop.f32.mrb[0].mxu0
    %v2009 = vadd.f32 0.0, %v2008
    %v2010 = vpop.f32.mrb[0].mxu0
    %v2011 = vadd.f32 0.0, %v2010
    %v2012 = vpop.f32.mrb[0].mxu0
    %v2013 = vadd.f32 0.0, %v2012
    %2014 = vmatprep.mubr.bf16.mxu0 %v880
    %2015 = vmatmul.mubr.bf16.gmra.mrb[0].mxu0 %v879
    %v2016 = vpop.f32.mrb[0].mxu0
    %v2017 = vadd.f32 0.0, %v2016
    %v2018 = vpop.f32.mrb[0].mxu0
    %v2019 = vadd.f32 0.0, %v2018
    %v2020 = vpop.f32.mrb[0].mxu0
    %v2021 = vadd.f32 0.0, %v2020
    %v2022 = vpop.f32.mrb[0].mxu0
    %v2023 = vadd.f32 0.0, %v2022
    %2024 = vmatprep.mubr.bf16.mxu0 %v890
    %2025 = vmatmul.mubr.bf16.gmra.mrb[0].mxu0 %v889
    %v2026 = vpop.f32.mrb[0].mxu0
    %v2027 = vadd.f32 0.0, %v2026
    %v2028 = vpop.f32.mrb[0].mxu0
    %v2029 = vadd.f32 0.0, %v2028
    %v2030 = vpop.f32.mrb[0].mxu0
    %v2031 = vadd.f32 0.0, %v2030
    %v2032 = vpop.f32.mrb[0].mxu0
    %v2033 = vadd.f32 0.0, %v2032
    %2034 = vmatprep.mubr.bf16.mxu0 %v900
    %2035 = vmatmul.mubr.bf16.gmra.mrb[0].mxu0 %v899
    %v2036 = vpop.f32.mrb[0].mxu0
    %v2037 = vadd.f32 0.0, %v2036
    %v2038 = vpop.f32.mrb[0].mxu0
    %v2039 = vadd.f32 0.0, %v2038
    %v2040 = vpop.f32.mrb[0].mxu0
    %v2041 = vadd.f32 0.0, %v2040
    %v2042 = vpop.f32.mrb[0].mxu0
    %v2043 = vadd.f32 0.0, %v2042
    %2044 = vmatprep.mubr.bf16.mxu0 %v910
    %2045 = vmatmul.mubr.bf16.gmra.mrb[0].mxu0 %v909
    %v2046 = vpop.f32.mrb[0].mxu0
    %v2047 = vadd.f32 0.0, %v2046
    %v2048 = vpop.f32.mrb[0].mxu0
    %v2049 = vadd.f32 0.0, %v2048
    %v2050 = vpop.f32.mrb[0].mxu0
    %v2051 = vadd.f32 0.0, %v2050
    %v2052 = vpop.f32.mrb[0].mxu0
    %v2053 = vadd.f32 0.0, %v2052
    %2054 = vmatprep.mubr.bf16.mxu0 %v920
    %2055 = vmatmul.mubr.bf16.gmra.mrb[0].mxu0 %v919
    %v2056 = vpop.f32.mrb[0].mxu0
    %v2057 = vadd.f32 0.0, %v2056
    %v2058 = vpop.f32.mrb[0].mxu0
    %v2059 = vadd.f32 0.0, %v2058
    %v2060 = vpop.f32.mrb[0].mxu0
    %v2061 = vadd.f32 0.0, %v2060
    %v2062 = vpop.f32.mrb[0].mxu0
    %v2063 = vadd.f32 0.0, %v2062
    %2064 = vmatprep.mubr.bf16.mxu0 %v930
    %2065 = vmatmul.mubr.bf16.gmra.mrb[0].mxu0 %v929
    %v2066 = vpop.f32.mrb[0].mxu0
    %v2067 = vadd.f32 0.0, %v2066
    %v2068 = vpop.f32.mrb[0].mxu0
    %v2069 = vadd.f32 0.0, %v2068
    %v2070 = vpop.f32.mrb[0].mxu0
    %v2071 = vadd.f32 0.0, %v2070
    %v2072 = vpop.f32.mrb[0].mxu0
    %v2073 = vadd.f32 0.0, %v2072
    %2074 = vmatprep.mubr.bf16.mxu0 %v940
    %2075 = vmatmul.mubr.bf16.gmra.mrb[0].mxu0 %v939
    %v2076 = vpop.f32.mrb[0].mxu0
    %v2077 = vadd.f32 0.0, %v2076
    %v2078 = vpop.f32.mrb[0].mxu0
    %v2079 = vadd.f32 0.0, %v2078
    %v2080 = vpop.f32.mrb[0].mxu0
    %v2081 = vadd.f32 0.0, %v2080
    %v2082 = vpop.f32.mrb[0].mxu0
    %v2083 = vadd.f32 0.0, %v2082
    %2084 = vmatprep.mubr.bf16.mxu0 %v950
    %2085 = vmatmul.mubr.bf16.gmra.mrb[0].mxu0 %v949
    %v2086 = vpop.f32.mrb[0].mxu0
    %v2087 = vadd.f32 0.0, %v2086
    %v2088 = vpop.f32.mrb[0].mxu0
    %v2089 = vadd.f32 0.0, %v2088
    %v2090 = vpop.f32.mrb[0].mxu0
    %v2091 = vadd.f32 0.0, %v2090
    %v2092 = vpop.f32.mrb[0].mxu0
    %v2093 = vadd.f32 0.0, %v2092
    %2094 = vmatprep.mubr.bf16.mxu0 %v960
    %2095 = vmatmul.mubr.bf16.gmra.mrb[0].mxu0 %v959
    %v2096 = vpop.f32.mrb[0].mxu0
    %v2097 = vadd.f32 0.0, %v2096
    %v2098 = vpop.f32.mrb[0].mxu0
    %v2099 = vadd.f32 0.0, %v2098
    %v2100 = vpop.f32.mrb[0].mxu0
    %v2101 = vadd.f32 0.0, %v2100
    %v2102 = vpop.f32.mrb[0].mxu0
    %v2103 = vadd.f32 0.0, %v2102
    %2104 = vdwg.mxu0
    %2105 = vmatprep.subr.bf16.mxu0 %v1596
    %2106 = vmatpush1.bf16.msra.mxu0 %v1595
    %2107 = vmatprep.subr.bf16.mxu0 %v1598
    %2108 = vmatpush1.bf16.msra.mxu0 %v1597
    %2109 = vmatprep.subr.bf16.mxu0 %v1600
    %2110 = vmatpush1.bf16.msra.mxu0 %v1599
    %2111 = vmatprep.subr.bf16.mxu0 %v1602
    %2112 = vmatpush1.bf16.msra.mxu0 %v1601
    %2113 = vmatprep.subr.bf16.mxu0 %v1604
    %2114 = vmatpush1.bf16.msra.mxu0 %v1603
    %2115 = vmatprep.subr.bf16.mxu0 %v1606
    %2116 = vmatpush1.bf16.msra.mxu0 %v1605
    %2117 = vmatprep.subr.bf16.mxu0 %v1608
    %2118 = vmatpush1.bf16.msra.mxu0 %v1607
    %2119 = vmatprep.subr.bf16.mxu0 %v1610
    %2120 = vmatpush1.bf16.msra.mxu0 %v1609
    %2121 = vmatprep.subr.bf16.mxu0 %v1612
    %2122 = vmatpush1.bf16.msra.mxu0 %v1611
    %2123 = vmatprep.subr.bf16.mxu0 %v1614
    %2124 = vmatpush1.bf16.msra.mxu0 %v1613
    %2125 = vmatprep.subr.bf16.mxu0 %v1616
    %2126 = vmatpush1.bf16.msra.mxu0 %v1615
    %2127 = vmatprep.subr.bf16.mxu0 %v1618
    %2128 = vmatpush1.bf16.msra.mxu0 %v1617
    %2129 = vmatprep.subr.bf16.mxu0 %v1620
    %2130 = vmatpush1.bf16.msra.mxu0 %v1619
    %2131 = vmatprep.subr.bf16.mxu0 %v1622
    %2132 = vmatpush1.bf16.msra.mxu0 %v1621
    %2133 = vmatprep.subr.bf16.mxu0 %v1624
    %2134 = vmatpush1.bf16.msra.mxu0 %v1623
    %2135 = vmatprep.subr.bf16.mxu0 %v1626
    %2136 = vmatpush1.bf16.msra.mxu0 %v1625
    %2137 = vmatprep.mubr.bf16.mxu0 %v812
    %2138 = vmatmul.mubr.bf16.gmra.mrb[0].mxu0 %v811
    %v2139 = vpop.f32.mrb[0].mxu0
    %v2140 = vadd.f32 %v1947, %v2139
    %v2141 = vpop.f32.mrb[0].mxu0
    %v2142 = vadd.f32 %v1949, %v2141
    %v2143 = vpop.f32.mrb[0].mxu0
    %v2144 = vadd.f32 %v1951, %v2143
    %v2145 = vpop.f32.mrb[0].mxu0
    %v2146 = vadd.f32 %v1953, %v2145
    %2147 = vmatprep.mubr.bf16.mxu0 %v822
    %2148 = vmatmul.mubr.bf16.gmra.mrb[0].mxu0 %v821
    %v2149 = vpop.f32.mrb[0].mxu0
    %v2150 = vadd.f32 %v1957, %v2149
    %v2151 = vpop.f32.mrb[0].mxu0
    %v2152 = vadd.f32 %v1959, %v2151
    %v2153 = vpop.f32.mrb[0].mxu0
    %v2154 = vadd.f32 %v1961, %v2153
    %v2155 = vpop.f32.mrb[0].mxu0
    %v2156 = vadd.f32 %v1963, %v2155
    %2157 = vmatprep.mubr.bf16.mxu0 %v832
    %2158 = vmatmul.mubr.bf16.gmra.mrb[0].mxu0 %v831
    %v2159 = vpop.f32.mrb[0].mxu0
    %v2160 = vadd.f32 %v1967, %v2159
    %v2161 = vpop.f32.mrb[0].mxu0
    %v2162 = vadd.f32 %v1969, %v2161
    %v2163 = vpop.f32.mrb[0].mxu0
    %v2164 = vadd.f32 %v1971, %v2163
    %v2165 = vpop.f32.mrb[0].mxu0
    %v2166 = vadd.f32 %v1973, %v2165
    %2167 = vmatprep.mubr.bf16.mxu0 %v842
    %2168 = vmatmul.mubr.bf16.gmra.mrb[0].mxu0 %v841
    %v2169 = vpop.f32.mrb[0].mxu0
    %v2170 = vadd.f32 %v1977, %v2169
    %v2171 = vpop.f32.mrb[0].mxu0
    %v2172 = vadd.f32 %v1979, %v2171
    %v2173 = vpop.f32.mrb[0].mxu0
    %v2174 = vadd.f32 %v1981, %v2173
    %v2175 = vpop.f32.mrb[0].mxu0
    %v2176 = vadd.f32 %v1983, %v2175
    %2177 = vmatprep.mubr.bf16.mxu0 %v852
    %2178 = vmatmul.mubr.bf16.gmra.mrb[0].mxu0 %v851
    %v2179 = vpop.f32.mrb[0].mxu0
    %v2180 = vadd.f32 %v1987, %v2179
    %v2181 = vpop.f32.mrb[0].mxu0
    %v2182 = vadd.f32 %v1989, %v2181
    %v2183 = vpop.f32.mrb[0].mxu0
    %v2184 = vadd.f32 %v1991, %v2183
    %v2185 = vpop.f32.mrb[0].mxu0
    %v2186 = vadd.f32 %v1993, %v2185
    %2187 = vmatprep.mubr.bf16.mxu0 %v862
    %2188 = vmatmul.mubr.bf16.gmra.mrb[0].mxu0 %v861
    %v2189 = vpop.f32.mrb[0].mxu0
    %v2190 = vadd.f32 %v1997, %v2189
    %v2191 = vpop.f32.mrb[0].mxu0
    %v2192 = vadd.f32 %v1999, %v2191
    %v2193 = vpop.f32.mrb[0].mxu0
    %v2194 = vadd.f32 %v2001, %v2193
    %v2195 = vpop.f32.mrb[0].mxu0
    %v2196 = vadd.f32 %v2003, %v2195
    %2197 = vmatprep.mubr.bf16.mxu0 %v872
    %2198 = vmatmul.mubr.bf16.gmra.mrb[0].mxu0 %v871
    %v2199 = vpop.f32.mrb[0].mxu0
    %v2200 = vadd.f32 %v2007, %v2199
    %v2201 = vpop.f32.mrb[0].mxu0
    %v2202 = vadd.f32 %v2009, %v2201
    %v2203 = vpop.f32.mrb[0].mxu0
    %v2204 = vadd.f32 %v2011, %v2203
    %v2205 = vpop.f32.mrb[0].mxu0
    %v2206 = vadd.f32 %v2013, %v2205
    %2207 = vmatprep.mubr.bf16.mxu0 %v882
    %2208 = vmatmul.mubr.bf16.gmra.mrb[0].mxu0 %v881
    %v2209 = vpop.f32.mrb[0].mxu0
    %v2210 = vadd.f32 %v2017, %v2209
    %v2211 = vpop.f32.mrb[0].mxu0
    %v2212 = vadd.f32 %v2019, %v2211
    %v2213 = vpop.f32.mrb[0].mxu0
    %v2214 = vadd.f32 %v2021, %v2213
    %v2215 = vpop.f32.mrb[0].mxu0
    %v2216 = vadd.f32 %v2023, %v2215
    %2217 = vmatprep.mubr.bf16.mxu0 %v892
    %2218 = vmatmul.mubr.bf16.gmra.mrb[0].mxu0 %v891
    %v2219 = vpop.f32.mrb[0].mxu0
    %v2220 = vadd.f32 %v2027, %v2219
    %v2221 = vpop.f32.mrb[0].mxu0
    %v2222 = vadd.f32 %v2029, %v2221
    %v2223 = vpop.f32.mrb[0].mxu0
    %v2224 = vadd.f32 %v2031, %v2223
    %v2225 = vpop.f32.mrb[0].mxu0
    %v2226 = vadd.f32 %v2033, %v2225
    %2227 = vmatprep.mubr.bf16.mxu0 %v902
    %2228 = vmatmul.mubr.bf16.gmra.mrb[0].mxu0 %v901
    %v2229 = vpop.f32.mrb[0].mxu0
    %v2230 = vadd.f32 %v2037, %v2229
    %v2231 = vpop.f32.mrb[0].mxu0
    %v2232 = vadd.f32 %v2039, %v2231
    %v2233 = vpop.f32.mrb[0].mxu0
    %v2234 = vadd.f32 %v2041, %v2233
    %v2235 = vpop.f32.mrb[0].mxu0
    %v2236 = vadd.f32 %v2043, %v2235
    %2237 = vmatprep.mubr.bf16.mxu0 %v912
    %2238 = vmatmul.mubr.bf16.gmra.mrb[0].mxu0 %v911
    %v2239 = vpop.f32.mrb[0].mxu0
    %v2240 = vadd.f32 %v2047, %v2239
    %v2241 = vpop.f32.mrb[0].mxu0
    %v2242 = vadd.f32 %v2049, %v2241
    %v2243 = vpop.f32.mrb[0].mxu0
    %v2244 = vadd.f32 %v2051, %v2243
    %v2245 = vpop.f32.mrb[0].mxu0
    %v2246 = vadd.f32 %v2053, %v2245
    %2247 = vmatprep.mubr.bf16.mxu0 %v922
    %2248 = vmatmul.mubr.bf16.gmra.mrb[0].mxu0 %v921
    %v2249 = vpop.f32.mrb[0].mxu0
    %v2250 = vadd.f32 %v2057, %v2249
    %v2251 = vpop.f32.mrb[0].mxu0
    %v2252 = vadd.f32 %v2059, %v2251
    %v2253 = vpop.f32.mrb[0].mxu0
    %v2254 = vadd.f32 %v2061, %v2253
    %v2255 = vpop.f32.mrb[0].mxu0
    %v2256 = vadd.f32 %v2063, %v2255
    %2257 = vmatprep.mubr.bf16.mxu0 %v932
    %2258 = vmatmul.mubr.bf16.gmra.mrb[0].mxu0 %v931
    %v2259 = vpop.f32.mrb[0].mxu0
    %v2260 = vadd.f32 %v2067, %v2259
    %v2261 = vpop.f32.mrb[0].mxu0
    %v2262 = vadd.f32 %v2069, %v2261
    %v2263 = vpop.f32.mrb[0].mxu0
    %v2264 = vadd.f32 %v2071, %v2263
    %v2265 = vpop.f32.mrb[0].mxu0
    %v2266 = vadd.f32 %v2073, %v2265
    %2267 = vmatprep.mubr.bf16.mxu0 %v942
    %2268 = vmatmul.mubr.bf16.gmra.mrb[0].mxu0 %v941
    %v2269 = vpop.f32.mrb[0].mxu0
    %v2270 = vadd.f32 %v2077, %v2269
    %v2271 = vpop.f32.mrb[0].mxu0
    %v2272 = vadd.f32 %v2079, %v2271
    %v2273 = vpop.f32.mrb[0].mxu0
    %v2274 = vadd.f32 %v2081, %v2273
    %v2275 = vpop.f32.mrb[0].mxu0
    %v2276 = vadd.f32 %v2083, %v2275
    %2277 = vmatprep.mubr.bf16.mxu0 %v952
    %2278 = vmatmul.mubr.bf16.gmra.mrb[0].mxu0 %v951
    %v2279 = vpop.f32.mrb[0].mxu0
    %v2280 = vadd.f32 %v2087, %v2279
    %v2281 = vpop.f32.mrb[0].mxu0
    %v2282 = vadd.f32 %v2089, %v2281
    %v2283 = vpop.f32.mrb[0].mxu0
    %v2284 = vadd.f32 %v2091, %v2283
    %v2285 = vpop.f32.mrb[0].mxu0
    %v2286 = vadd.f32 %v2093, %v2285
    %2287 = vmatprep.mubr.bf16.mxu0 %v962
    %2288 = vmatmul.mubr.bf16.gmra.mrb[0].mxu0 %v961
    %v2289 = vpop.f32.mrb[0].mxu0
    %v2290 = vadd.f32 %v2097, %v2289
    %v2291 = vpop.f32.mrb[0].mxu0
    %v2292 = vadd.f32 %v2099, %v2291
    %v2293 = vpop.f32.mrb[0].mxu0
    %v2294 = vadd.f32 %v2101, %v2293
    %v2295 = vpop.f32.mrb[0].mxu0
    %v2296 = vadd.f32 %v2103, %v2295
    %2297 = vdwg.mxu0
    %2298 = vmatprep.subr.bf16.mxu0 %v1628
    %2299 = vmatpush1.bf16.msra.mxu0 %v1627
    %2300 = vmatprep.subr.bf16.mxu0 %v1630
    %2301 = vmatpush1.bf16.msra.mxu0 %v1629
    %2302 = vmatprep.subr.bf16.mxu0 %v1632
    %2303 = vmatpush1.bf16.msra.mxu0 %v1631
    %2304 = vmatprep.subr.bf16.mxu0 %v1634
    %2305 = vmatpush1.bf16.msra.mxu0 %v1633
    %2306 = vmatprep.subr.bf16.mxu0 %v1636
    %2307 = vmatpush1.bf16.msra.mxu0 %v1635
    %2308 = vmatprep.subr.bf16.mxu0 %v1638
    %2309 = vmatpush1.bf16.msra.mxu0 %v1637
    %2310 = vmatprep.subr.bf16.mxu0 %v1640
    %2311 = vmatpush1.bf16.msra.mxu0 %v1639
    %2312 = vmatprep.subr.bf16.mxu0 %v1642
    %2313 = vmatpush1.bf16.msra.mxu0 %v1641
    %2314 = vmatprep.subr.bf16.mxu0 %v1644
    %2315 = vmatpush1.bf16.msra.mxu0 %v1643
    %2316 = vmatprep.subr.bf16.mxu0 %v1646
    %2317 = vmatpush1.bf16.msra.mxu0 %v1645
    %2318 = vmatprep.subr.bf16.mxu0 %v1648
    %2319 = vmatpush1.bf16.msra.mxu0 %v1647
    %2320 = vmatprep.subr.bf16.mxu0 %v1650
    %2321 = vmatpush1.bf16.msra.mxu0 %v1649
    %2322 = vmatprep.subr.bf16.mxu0 %v1652
    %2323 = vmatpush1.bf16.msra.mxu0 %v1651
    %2324 = vmatprep.subr.bf16.mxu0 %v1654
    %2325 = vmatpush1.bf16.msra.mxu0 %v1653
    %2326 = vmatprep.subr.bf16.mxu0 %v1656
    %2327 = vmatpush1.bf16.msra.mxu0 %v1655
    %2328 = vmatprep.subr.bf16.mxu0 %v1658
    %2329 = vmatpush1.bf16.msra.mxu0 %v1657
    %2330 = vmatprep.mubr.bf16.mxu0 %v814
    %2331 = vmatmul.mubr.bf16.gmra.mrb[0].mxu0 %v813
    %v2332 = vpop.f32.mrb[0].mxu0
    %v2333 = vadd.f32 %v2140, %v2332
    %v2334 = vpop.f32.mrb[0].mxu0
    %v2335 = vadd.f32 %v2142, %v2334
    %v2336 = vpop.f32.mrb[0].mxu0
    %v2337 = vadd.f32 %v2144, %v2336
    %v2338 = vpop.f32.mrb[0].mxu0
    %v2339 = vadd.f32 %v2146, %v2338
    %2340 = vmatprep.mubr.bf16.mxu0 %v824
    %2341 = vmatmul.mubr.bf16.gmra.mrb[0].mxu0 %v823
    %v2342 = vpop.f32.mrb[0].mxu0
    %v2343 = vadd.f32 %v2150, %v2342
    %v2344 = vpop.f32.mrb[0].mxu0
    %v2345 = vadd.f32 %v2152, %v2344
    %v2346 = vpop.f32.mrb[0].mxu0
    %v2347 = vadd.f32 %v2154, %v2346
    %v2348 = vpop.f32.mrb[0].mxu0
    %v2349 = vadd.f32 %v2156, %v2348
    %2350 = vmatprep.mubr.bf16.mxu0 %v834
    %2351 = vmatmul.mubr.bf16.gmra.mrb[0].mxu0 %v833
    %v2352 = vpop.f32.mrb[0].mxu0
    %v2353 = vadd.f32 %v2160, %v2352
    %v2354 = vpop.f32.mrb[0].mxu0
    %v2355 = vadd.f32 %v2162, %v2354
    %v2356 = vpop.f32.mrb[0].mxu0
    %v2357 = vadd.f32 %v2164, %v2356
    %v2358 = vpop.f32.mrb[0].mxu0
    %v2359 = vadd.f32 %v2166, %v2358
    %2360 = vmatprep.mubr.bf16.mxu0 %v844
    %2361 = vmatmul.mubr.bf16.gmra.mrb[0].mxu0 %v843
    %v2362 = vpop.f32.mrb[0].mxu0
    %v2363 = vadd.f32 %v2170, %v2362
    %v2364 = vpop.f32.mrb[0].mxu0
    %v2365 = vadd.f32 %v2172, %v2364
    %v2366 = vpop.f32.mrb[0].mxu0
    %v2367 = vadd.f32 %v2174, %v2366
    %v2368 = vpop.f32.mrb[0].mxu0
    %v2369 = vadd.f32 %v2176, %v2368
    %2370 = vmatprep.mubr.bf16.mxu0 %v854
    %2371 = vmatmul.mubr.bf16.gmra.mrb[0].mxu0 %v853
    %v2372 = vpop.f32.mrb[0].mxu0
    %v2373 = vadd.f32 %v2180, %v2372
    %v2374 = vpop.f32.mrb[0].mxu0
    %v2375 = vadd.f32 %v2182, %v2374
    %v2376 = vpop.f32.mrb[0].mxu0
    %v2377 = vadd.f32 %v2184, %v2376
    %v2378 = vpop.f32.mrb[0].mxu0
    %v2379 = vadd.f32 %v2186, %v2378
    %2380 = vmatprep.mubr.bf16.mxu0 %v864
    %2381 = vmatmul.mubr.bf16.gmra.mrb[0].mxu0 %v863
    %v2382 = vpop.f32.mrb[0].mxu0
    %v2383 = vadd.f32 %v2190, %v2382
    %v2384 = vpop.f32.mrb[0].mxu0
    %v2385 = vadd.f32 %v2192, %v2384
    %v2386 = vpop.f32.mrb[0].mxu0
    %v2387 = vadd.f32 %v2194, %v2386
    %v2388 = vpop.f32.mrb[0].mxu0
    %v2389 = vadd.f32 %v2196, %v2388
    %2390 = vmatprep.mubr.bf16.mxu0 %v874
    %2391 = vmatmul.mubr.bf16.gmra.mrb[0].mxu0 %v873
    %v2392 = vpop.f32.mrb[0].mxu0
    %v2393 = vadd.f32 %v2200, %v2392
    %v2394 = vpop.f32.mrb[0].mxu0
    %v2395 = vadd.f32 %v2202, %v2394
    %v2396 = vpop.f32.mrb[0].mxu0
    %v2397 = vadd.f32 %v2204, %v2396
    %v2398 = vpop.f32.mrb[0].mxu0
    %v2399 = vadd.f32 %v2206, %v2398
    %2400 = vmatprep.mubr.bf16.mxu0 %v884
    %2401 = vmatmul.mubr.bf16.gmra.mrb[0].mxu0 %v883
    %v2402 = vpop.f32.mrb[0].mxu0
    %v2403 = vadd.f32 %v2210, %v2402
    %v2404 = vpop.f32.mrb[0].mxu0
    %v2405 = vadd.f32 %v2212, %v2404
    %v2406 = vpop.f32.mrb[0].mxu0
    %v2407 = vadd.f32 %v2214, %v2406
    %v2408 = vpop.f32.mrb[0].mxu0
    %v2409 = vadd.f32 %v2216, %v2408
    %2410 = vmatprep.mubr.bf16.mxu0 %v894
    %2411 = vmatmul.mubr.bf16.gmra.mrb[0].mxu0 %v893
    %v2412 = vpop.f32.mrb[0].mxu0
    %v2413 = vadd.f32 %v2220, %v2412
    %v2414 = vpop.f32.mrb[0].mxu0
    %v2415 = vadd.f32 %v2222, %v2414
    %v2416 = vpop.f32.mrb[0].mxu0
    %v2417 = vadd.f32 %v2224, %v2416
    %v2418 = vpop.f32.mrb[0].mxu0
    %v2419 = vadd.f32 %v2226, %v2418
    %2420 = vmatprep.mubr.bf16.mxu0 %v904
    %2421 = vmatmul.mubr.bf16.gmra.mrb[0].mxu0 %v903
    %v2422 = vpop.f32.mrb[0].mxu0
    %v2423 = vadd.f32 %v2230, %v2422
    %v2424 = vpop.f32.mrb[0].mxu0
    %v2425 = vadd.f32 %v2232, %v2424
    %v2426 = vpop.f32.mrb[0].mxu0
    %v2427 = vadd.f32 %v2234, %v2426
    %v2428 = vpop.f32.mrb[0].mxu0
    %v2429 = vadd.f32 %v2236, %v2428
    %2430 = vmatprep.mubr.bf16.mxu0 %v914
    %2431 = vmatmul.mubr.bf16.gmra.mrb[0].mxu0 %v913
    %v2432 = vpop.f32.mrb[0].mxu0
    %v2433 = vadd.f32 %v2240, %v2432
    %v2434 = vpop.f32.mrb[0].mxu0
    %v2435 = vadd.f32 %v2242, %v2434
    %v2436 = vpop.f32.mrb[0].mxu0
    %v2437 = vadd.f32 %v2244, %v2436
    %v2438 = vpop.f32.mrb[0].mxu0
    %v2439 = vadd.f32 %v2246, %v2438
    %2440 = vmatprep.mubr.bf16.mxu0 %v924
    %2441 = vmatmul.mubr.bf16.gmra.mrb[0].mxu0 %v923
    %v2442 = vpop.f32.mrb[0].mxu0
    %v2443 = vadd.f32 %v2250, %v2442
    %v2444 = vpop.f32.mrb[0].mxu0
    %v2445 = vadd.f32 %v2252, %v2444
    %v2446 = vpop.f32.mrb[0].mxu0
    %v2447 = vadd.f32 %v2254, %v2446
    %v2448 = vpop.f32.mrb[0].mxu0
    %v2449 = vadd.f32 %v2256, %v2448
    %2450 = vmatprep.mubr.bf16.mxu0 %v934
    %2451 = vmatmul.mubr.bf16.gmra.mrb[0].mxu0 %v933
    %v2452 = vpop.f32.mrb[0].mxu0
    %v2453 = vadd.f32 %v2260, %v2452
    %v2454 = vpop.f32.mrb[0].mxu0
    %v2455 = vadd.f32 %v2262, %v2454
    %v2456 = vpop.f32.mrb[0].mxu0
    %v2457 = vadd.f32 %v2264, %v2456
    %v2458 = vpop.f32.mrb[0].mxu0
    %v2459 = vadd.f32 %v2266, %v2458
    %2460 = vmatprep.mubr.bf16.mxu0 %v944
    %2461 = vmatmul.mubr.bf16.gmra.mrb[0].mxu0 %v943
    %v2462 = vpop.f32.mrb[0].mxu0
    %v2463 = vadd.f32 %v2270, %v2462
    %v2464 = vpop.f32.mrb[0].mxu0
    %v2465 = vadd.f32 %v2272, %v2464
    %v2466 = vpop.f32.mrb[0].mxu0
    %v2467 = vadd.f32 %v2274, %v2466
    %v2468 = vpop.f32.mrb[0].mxu0
    %v2469 = vadd.f32 %v2276, %v2468
    %2470 = vmatprep.mubr.bf16.mxu0 %v954
    %2471 = vmatmul.mubr.bf16.gmra.mrb[0].mxu0 %v953
    %v2472 = vpop.f32.mrb[0].mxu0
    %v2473 = vadd.f32 %v2280, %v2472
    %v2474 = vpop.f32.mrb[0].mxu0
    %v2475 = vadd.f32 %v2282, %v2474
    %v2476 = vpop.f32.mrb[0].mxu0
    %v2477 = vadd.f32 %v2284, %v2476
    %v2478 = vpop.f32.mrb[0].mxu0
    %v2479 = vadd.f32 %v2286, %v2478
    %2480 = vmatprep.mubr.bf16.mxu0 %v964
    %2481 = vmatmul.mubr.bf16.gmra.mrb[0].mxu0 %v963
    %v2482 = vpop.f32.mrb[0].mxu0
    %v2483 = vadd.f32 %v2290, %v2482
    %v2484 = vpop.f32.mrb[0].mxu0
    %v2485 = vadd.f32 %v2292, %v2484
    %v2486 = vpop.f32.mrb[0].mxu0
    %v2487 = vadd.f32 %v2294, %v2486
    %v2488 = vpop.f32.mrb[0].mxu0
    %v2489 = vadd.f32 %v2296, %v2488
    %2490 = vdwg.mxu0
    %2491 = vmatprep.subr.bf16.mxu0 %v1660
    %2492 = vmatpush1.bf16.msra.mxu0 %v1659
    %2493 = vmatprep.subr.bf16.mxu0 %v1662
    %2494 = vmatpush1.bf16.msra.mxu0 %v1661
    %2495 = vmatprep.subr.bf16.mxu0 %v1664
    %2496 = vmatpush1.bf16.msra.mxu0 %v1663
    %2497 = vmatprep.subr.bf16.mxu0 %v1666
    %2498 = vmatpush1.bf16.msra.mxu0 %v1665
    %2499 = vmatprep.subr.bf16.mxu0 %v1668
    %2500 = vmatpush1.bf16.msra.mxu0 %v1667
    %2501 = vmatprep.subr.bf16.mxu0 %v1670
    %2502 = vmatpush1.bf16.msra.mxu0 %v1669
    %2503 = vmatprep.subr.bf16.mxu0 %v1672
    %2504 = vmatpush1.bf16.msra.mxu0 %v1671
    %2505 = vmatprep.subr.bf16.mxu0 %v1674
    %2506 = vmatpush1.bf16.msra.mxu0 %v1673
    %2507 = vmatprep.subr.bf16.mxu0 %v1676
    %2508 = vmatpush1.bf16.msra.mxu0 %v1675
    %2509 = vmatprep.subr.bf16.mxu0 %v1678
    %2510 = vmatpush1.bf16.msra.mxu0 %v1677
    %2511 = vmatprep.subr.bf16.mxu0 %v1680
    %2512 = vmatpush1.bf16.msra.mxu0 %v1679
    %2513 = vmatprep.subr.bf16.mxu0 %v1682
    %2514 = vmatpush1.bf16.msra.mxu0 %v1681
    %2515 = vmatprep.subr.bf16.mxu0 %v1684
    %2516 = vmatpush1.bf16.msra.mxu0 %v1683
    %2517 = vmatprep.subr.bf16.mxu0 %v1686
    %2518 = vmatpush1.bf16.msra.mxu0 %v1685
    %2519 = vmatprep.subr.bf16.mxu0 %v1688
    %2520 = vmatpush1.bf16.msra.mxu0 %v1687
    %2521 = vmatprep.subr.bf16.mxu0 %v1690
    %2522 = vmatpush1.bf16.msra.mxu0 %v1689
    %2523 = vmatprep.mubr.bf16.mxu0 %v816
    %2524 = vmatmul.mubr.bf16.gmra.mrb[0].mxu0 %v815
    %v2525 = vpop.f32.mrb[0].mxu0
    %v2526 = vadd.f32 %v2333, %v2525
    %v2527 = vpop.f32.mrb[0].mxu0
    %v2528 = vadd.f32 %v2335, %v2527
    %v2529 = vpop.f32.mrb[0].mxu0
    %v2530 = vadd.f32 %v2337, %v2529
    %v2531 = vpop.f32.mrb[0].mxu0
    %v2532 = vadd.f32 %v2339, %v2531
    %2533 = vmatprep.mubr.bf16.mxu0 %v826
    %2534 = vmatmul.mubr.bf16.gmra.mrb[0].mxu0 %v825
    %v2535 = vpop.f32.mrb[0].mxu0
    %v2536 = vadd.f32 %v2343, %v2535
    %v2537 = vpop.f32.mrb[0].mxu0
    %v2538 = vadd.f32 %v2345, %v2537
    %v2539 = vpop.f32.mrb[0].mxu0
    %v2540 = vadd.f32 %v2347, %v2539
    %v2541 = vpop.f32.mrb[0].mxu0
    %v2542 = vadd.f32 %v2349, %v2541
    %2543 = vmatprep.mubr.bf16.mxu0 %v836
    %2544 = vmatmul.mubr.bf16.gmra.mrb[0].mxu0 %v835
    %v2545 = vpop.f32.mrb[0].mxu0
    %v2546 = vadd.f32 %v2353, %v2545
    %v2547 = vpop.f32.mrb[0].mxu0
    %v2548 = vadd.f32 %v2355, %v2547
    %v2549 = vpop.f32.mrb[0].mxu0
    %v2550 = vadd.f32 %v2357, %v2549
    %v2551 = vpop.f32.mrb[0].mxu0
    %v2552 = vadd.f32 %v2359, %v2551
    %2553 = vmatprep.mubr.bf16.mxu0 %v846
    %2554 = vmatmul.mubr.bf16.gmra.mrb[0].mxu0 %v845
    %v2555 = vpop.f32.mrb[0].mxu0
    %v2556 = vadd.f32 %v2363, %v2555
    %v2557 = vpop.f32.mrb[0].mxu0
    %v2558 = vadd.f32 %v2365, %v2557
    %v2559 = vpop.f32.mrb[0].mxu0
    %v2560 = vadd.f32 %v2367, %v2559
    %v2561 = vpop.f32.mrb[0].mxu0
    %v2562 = vadd.f32 %v2369, %v2561
    %2563 = vmatprep.mubr.bf16.mxu0 %v856
    %2564 = vmatmul.mubr.bf16.gmra.mrb[0].mxu0 %v855
    %v2565 = vpop.f32.mrb[0].mxu0
    %v2566 = vadd.f32 %v2373, %v2565
    %v2567 = vpop.f32.mrb[0].mxu0
    %v2568 = vadd.f32 %v2375, %v2567
    %v2569 = vpop.f32.mrb[0].mxu0
    %v2570 = vadd.f32 %v2377, %v2569
    %v2571 = vpop.f32.mrb[0].mxu0
    %v2572 = vadd.f32 %v2379, %v2571
    %2573 = vmatprep.mubr.bf16.mxu0 %v866
    %2574 = vmatmul.mubr.bf16.gmra.mrb[0].mxu0 %v865
    %v2575 = vpop.f32.mrb[0].mxu0
    %v2576 = vadd.f32 %v2383, %v2575
    %v2577 = vpop.f32.mrb[0].mxu0
    %v2578 = vadd.f32 %v2385, %v2577
    %v2579 = vpop.f32.mrb[0].mxu0
    %v2580 = vadd.f32 %v2387, %v2579
    %v2581 = vpop.f32.mrb[0].mxu0
    %v2582 = vadd.f32 %v2389, %v2581
    %2583 = vmatprep.mubr.bf16.mxu0 %v876
    %2584 = vmatmul.mubr.bf16.gmra.mrb[0].mxu0 %v875
    %v2585 = vpop.f32.mrb[0].mxu0
    %v2586 = vadd.f32 %v2393, %v2585
    %v2587 = vpop.f32.mrb[0].mxu0
    %v2588 = vadd.f32 %v2395, %v2587
    %v2589 = vpop.f32.mrb[0].mxu0
    %v2590 = vadd.f32 %v2397, %v2589
    %v2591 = vpop.f32.mrb[0].mxu0
    %v2592 = vadd.f32 %v2399, %v2591
    %2593 = vmatprep.mubr.bf16.mxu0 %v886
    %2594 = vmatmul.mubr.bf16.gmra.mrb[0].mxu0 %v885
    %v2595 = vpop.f32.mrb[0].mxu0
    %v2596 = vadd.f32 %v2403, %v2595
    %v2597 = vpop.f32.mrb[0].mxu0
    %v2598 = vadd.f32 %v2405, %v2597
    %v2599 = vpop.f32.mrb[0].mxu0
    %v2600 = vadd.f32 %v2407, %v2599
    %v2601 = vpop.f32.mrb[0].mxu0
    %v2602 = vadd.f32 %v2409, %v2601
    %2603 = vmatprep.mubr.bf16.mxu0 %v896
    %2604 = vmatmul.mubr.bf16.gmra.mrb[0].mxu0 %v895
    %v2605 = vpop.f32.mrb[0].mxu0
    %v2606 = vadd.f32 %v2413, %v2605
    %v2607 = vpop.f32.mrb[0].mxu0
    %v2608 = vadd.f32 %v2415, %v2607
    %v2609 = vpop.f32.mrb[0].mxu0
    %v2610 = vadd.f32 %v2417, %v2609
    %v2611 = vpop.f32.mrb[0].mxu0
    %v2612 = vadd.f32 %v2419, %v2611
    %2613 = vmatprep.mubr.bf16.mxu0 %v906
    %2614 = vmatmul.mubr.bf16.gmra.mrb[0].mxu0 %v905
    %v2615 = vpop.f32.mrb[0].mxu0
    %v2616 = vadd.f32 %v2423, %v2615
    %v2617 = vpop.f32.mrb[0].mxu0
    %v2618 = vadd.f32 %v2425, %v2617
    %v2619 = vpop.f32.mrb[0].mxu0
    %v2620 = vadd.f32 %v2427, %v2619
    %v2621 = vpop.f32.mrb[0].mxu0
    %v2622 = vadd.f32 %v2429, %v2621
    %2623 = vmatprep.mubr.bf16.mxu0 %v916
    %2624 = vmatmul.mubr.bf16.gmra.mrb[0].mxu0 %v915
    %v2625 = vpop.f32.mrb[0].mxu0
    %v2626 = vadd.f32 %v2433, %v2625
    %v2627 = vpop.f32.mrb[0].mxu0
    %v2628 = vadd.f32 %v2435, %v2627
    %v2629 = vpop.f32.mrb[0].mxu0
    %v2630 = vadd.f32 %v2437, %v2629
    %v2631 = vpop.f32.mrb[0].mxu0
    %v2632 = vadd.f32 %v2439, %v2631
    %2633 = vmatprep.mubr.bf16.mxu0 %v926
    %2634 = vmatmul.mubr.bf16.gmra.mrb[0].mxu0 %v925
    %v2635 = vpop.f32.mrb[0].mxu0
    %v2636 = vadd.f32 %v2443, %v2635
    %v2637 = vpop.f32.mrb[0].mxu0
    %v2638 = vadd.f32 %v2445, %v2637
    %v2639 = vpop.f32.mrb[0].mxu0
    %v2640 = vadd.f32 %v2447, %v2639
    %v2641 = vpop.f32.mrb[0].mxu0
    %v2642 = vadd.f32 %v2449, %v2641
    %2643 = vmatprep.mubr.bf16.mxu0 %v936
    %2644 = vmatmul.mubr.bf16.gmra.mrb[0].mxu0 %v935
    %v2645 = vpop.f32.mrb[0].mxu0
    %v2646 = vadd.f32 %v2453, %v2645
    %v2647 = vpop.f32.mrb[0].mxu0
    %v2648 = vadd.f32 %v2455, %v2647
    %v2649 = vpop.f32.mrb[0].mxu0
    %v2650 = vadd.f32 %v2457, %v2649
    %v2651 = vpop.f32.mrb[0].mxu0
    %v2652 = vadd.f32 %v2459, %v2651
    %2653 = vmatprep.mubr.bf16.mxu0 %v946
    %2654 = vmatmul.mubr.bf16.gmra.mrb[0].mxu0 %v945
    %v2655 = vpop.f32.mrb[0].mxu0
    %v2656 = vadd.f32 %v2463, %v2655
    %v2657 = vpop.f32.mrb[0].mxu0
    %v2658 = vadd.f32 %v2465, %v2657
    %v2659 = vpop.f32.mrb[0].mxu0
    %v2660 = vadd.f32 %v2467, %v2659
    %v2661 = vpop.f32.mrb[0].mxu0
    %v2662 = vadd.f32 %v2469, %v2661
    %2663 = vmatprep.mubr.bf16.mxu0 %v956
    %2664 = vmatmul.mubr.bf16.gmra.mrb[0].mxu0 %v955
    %v2665 = vpop.f32.mrb[0].mxu0
    %v2666 = vadd.f32 %v2473, %v2665
    %v2667 = vpop.f32.mrb[0].mxu0
    %v2668 = vadd.f32 %v2475, %v2667
    %v2669 = vpop.f32.mrb[0].mxu0
    %v2670 = vadd.f32 %v2477, %v2669
    %v2671 = vpop.f32.mrb[0].mxu0
    %v2672 = vadd.f32 %v2479, %v2671
    %2673 = vmatprep.mubr.bf16.mxu0 %v966
    %2674 = vmatmul.mubr.bf16.gmra.mrb[0].mxu0 %v965
    %v2675 = vpop.f32.mrb[0].mxu0
    %v2676 = vadd.f32 %v2483, %v2675
    %v2677 = vpop.f32.mrb[0].mxu0
    %v2678 = vadd.f32 %v2485, %v2677
    %v2679 = vpop.f32.mrb[0].mxu0
    %v2680 = vadd.f32 %v2487, %v2679
    %v2681 = vpop.f32.mrb[0].mxu0
    %v2682 = vadd.f32 %v2489, %v2681
    %2683 = vdwg.mxu0
    %2684 = vmatprep.subr.bf16.mxu0 %v1692
    %2685 = vmatpush1.bf16.msra.mxu0 %v1691
    %2686 = vmatprep.subr.bf16.mxu0 %v1694
    %2687 = vmatpush1.bf16.msra.mxu0 %v1693
    %2688 = vmatprep.subr.bf16.mxu0 %v1696
    %2689 = vmatpush1.bf16.msra.mxu0 %v1695
    %2690 = vmatprep.subr.bf16.mxu0 %v1698
    %2691 = vmatpush1.bf16.msra.mxu0 %v1697
    %2692 = vmatprep.subr.bf16.mxu0 %v1700
    %2693 = vmatpush1.bf16.msra.mxu0 %v1699
    %2694 = vmatprep.subr.bf16.mxu0 %v1702
    %2695 = vmatpush1.bf16.msra.mxu0 %v1701
    %2696 = vmatprep.subr.bf16.mxu0 %v1704
    %2697 = vmatpush1.bf16.msra.mxu0 %v1703
    %2698 = vmatprep.subr.bf16.mxu0 %v1706
    %2699 = vmatpush1.bf16.msra.mxu0 %v1705
    %2700 = vmatprep.subr.bf16.mxu0 %v1708
    %2701 = vmatpush1.bf16.msra.mxu0 %v1707
    %2702 = vmatprep.subr.bf16.mxu0 %v1710
    %2703 = vmatpush1.bf16.msra.mxu0 %v1709
    %2704 = vmatprep.subr.bf16.mxu0 %v1712
    %2705 = vmatpush1.bf16.msra.mxu0 %v1711
    %2706 = vmatprep.subr.bf16.mxu0 0
    %2707 = vmatpush1.bf16.msra.mxu0 0
    %2708 = vmatprep.subr.bf16.mxu0 0
    %2709 = vmatpush1.bf16.msra.mxu0 0
    %2710 = vmatprep.subr.bf16.mxu0 0
    %2711 = vmatpush1.bf16.msra.mxu0 0
    %2712 = vmatprep.subr.bf16.mxu0 0
    %2713 = vmatpush1.bf16.msra.mxu0 0
    %2714 = vmatprep.subr.bf16.mxu0 0
    %2715 = vmatpush1.bf16.msra.mxu0 0
    %2716 = vmatprep.mubr.bf16.mxu0 %v1865
    %2717 = vmatmul.mubr.bf16.gmra.mrb[0].mxu0 %v817
    %v2718 = vpop.f32.mrb[0].mxu0
    %v2719 = vadd.f32 %v2526, %v2718
    %v2720 = vpop.f32.mrb[0].mxu0
    %v2721 = vadd.f32 %v2528, %v2720
    %v2722 = vpop.f32.mrb[0].mxu0
    %v2723 = vadd.f32 %v2530, %v2722
    %v2724 = vpop.f32.mrb[0].mxu0
    %v2725 = vadd.f32 %v2532, %v2724
    %2726 = vmatprep.mubr.bf16.mxu0 %v1868
    %2727 = vmatmul.mubr.bf16.gmra.mrb[0].mxu0 %v827
    %v2728 = vpop.f32.mrb[0].mxu0
    %v2729 = vadd.f32 %v2536, %v2728
    %v2730 = vpop.f32.mrb[0].mxu0
    %v2731 = vadd.f32 %v2538, %v2730
    %v2732 = vpop.f32.mrb[0].mxu0
    %v2733 = vadd.f32 %v2540, %v2732
    %v2734 = vpop.f32.mrb[0].mxu0
    %v2735 = vadd.f32 %v2542, %v2734
    %2736 = vmatprep.mubr.bf16.mxu0 %v1871
    %2737 = vmatmul.mubr.bf16.gmra.mrb[0].mxu0 %v837
    %v2738 = vpop.f32.mrb[0].mxu0
    %v2739 = vadd.f32 %v2546, %v2738
    %v2740 = vpop.f32.mrb[0].mxu0
    %v2741 = vadd.f32 %v2548, %v2740
    %v2742 = vpop.f32.mrb[0].mxu0
    %v2743 = vadd.f32 %v2550, %v2742
    %v2744 = vpop.f32.mrb[0].mxu0
    %v2745 = vadd.f32 %v2552, %v2744
    %2746 = vmatprep.mubr.bf16.mxu0 %v1874
    %2747 = vmatmul.mubr.bf16.gmra.mrb[0].mxu0 %v847
    %v2748 = vpop.f32.mrb[0].mxu0
    %v2749 = vadd.f32 %v2556, %v2748
    %v2750 = vpop.f32.mrb[0].mxu0
    %v2751 = vadd.f32 %v2558, %v2750
    %v2752 = vpop.f32.mrb[0].mxu0
    %v2753 = vadd.f32 %v2560, %v2752
    %v2754 = vpop.f32.mrb[0].mxu0
    %v2755 = vadd.f32 %v2562, %v2754
    %2756 = vmatprep.mubr.bf16.mxu0 %v1877
    %2757 = vmatmul.mubr.bf16.gmra.mrb[0].mxu0 %v857
    %v2758 = vpop.f32.mrb[0].mxu0
    %v2759 = vadd.f32 %v2566, %v2758
    %v2760 = vpop.f32.mrb[0].mxu0
    %v2761 = vadd.f32 %v2568, %v2760
    %v2762 = vpop.f32.mrb[0].mxu0
    %v2763 = vadd.f32 %v2570, %v2762
    %v2764 = vpop.f32.mrb[0].mxu0
    %v2765 = vadd.f32 %v2572, %v2764
    %2766 = vmatprep.mubr.bf16.mxu0 %v1880
    %2767 = vmatmul.mubr.bf16.gmra.mrb[0].mxu0 %v867
    %v2768 = vpop.f32.mrb[0].mxu0
    %v2769 = vadd.f32 %v2576, %v2768
    %v2770 = vpop.f32.mrb[0].mxu0
    %v2771 = vadd.f32 %v2578, %v2770
    %v2772 = vpop.f32.mrb[0].mxu0
    %v2773 = vadd.f32 %v2580, %v2772
    %v2774 = vpop.f32.mrb[0].mxu0
    %v2775 = vadd.f32 %v2582, %v2774
    %2776 = vmatprep.mubr.bf16.mxu0 %v1883
    %2777 = vmatmul.mubr.bf16.gmra.mrb[0].mxu0 %v877
    %v2778 = vpop.f32.mrb[0].mxu0
    %v2779 = vadd.f32 %v2586, %v2778
    %v2780 = vpop.f32.mrb[0].mxu0
    %v2781 = vadd.f32 %v2588, %v2780
    %v2782 = vpop.f32.mrb[0].mxu0
    %v2783 = vadd.f32 %v2590, %v2782
    %v2784 = vpop.f32.mrb[0].mxu0
    %v2785 = vadd.f32 %v2592, %v2784
    %2786 = vmatprep.mubr.bf16.mxu0 %v1886
    %2787 = vmatmul.mubr.bf16.gmra.mrb[0].mxu0 %v887
    %v2788 = vpop.f32.mrb[0].mxu0
    %v2789 = vadd.f32 %v2596, %v2788
    %v2790 = vpop.f32.mrb[0].mxu0
    %v2791 = vadd.f32 %v2598, %v2790
    %v2792 = vpop.f32.mrb[0].mxu0
    %v2793 = vadd.f32 %v2600, %v2792
    %v2794 = vpop.f32.mrb[0].mxu0
    %v2795 = vadd.f32 %v2602, %v2794
    %2796 = vmatprep.mubr.bf16.mxu0 %v1889
    %2797 = vmatmul.mubr.bf16.gmra.mrb[0].mxu0 %v897
    %v2798 = vpop.f32.mrb[0].mxu0
    %v2799 = vadd.f32 %v2606, %v2798
    %v2800 = vpop.f32.mrb[0].mxu0
    %v2801 = vadd.f32 %v2608, %v2800
    %v2802 = vpop.f32.mrb[0].mxu0
    %v2803 = vadd.f32 %v2610, %v2802
    %v2804 = vpop.f32.mrb[0].mxu0
    %v2805 = vadd.f32 %v2612, %v2804
    %2806 = vmatprep.mubr.bf16.mxu0 %v1892
    %2807 = vmatmul.mubr.bf16.gmra.mrb[0].mxu0 %v907
    %v2808 = vpop.f32.mrb[0].mxu0
    %v2809 = vadd.f32 %v2616, %v2808
    %v2810 = vpop.f32.mrb[0].mxu0
    %v2811 = vadd.f32 %v2618, %v2810
    %v2812 = vpop.f32.mrb[0].mxu0
    %v2813 = vadd.f32 %v2620, %v2812
    %v2814 = vpop.f32.mrb[0].mxu0
    %v2815 = vadd.f32 %v2622, %v2814
    %2816 = vmatprep.mubr.bf16.mxu0 %v1895
    %2817 = vmatmul.mubr.bf16.gmra.mrb[0].mxu0 %v917
    %v2818 = vpop.f32.mrb[0].mxu0
    %v2819 = vadd.f32 %v2626, %v2818
    %v2820 = vpop.f32.mrb[0].mxu0
    %v2821 = vadd.f32 %v2628, %v2820
    %v2822 = vpop.f32.mrb[0].mxu0
    %v2823 = vadd.f32 %v2630, %v2822
    %v2824 = vpop.f32.mrb[0].mxu0
    %v2825 = vadd.f32 %v2632, %v2824
    %2826 = vmatprep.mubr.bf16.mxu0 %v1898
    %2827 = vmatmul.mubr.bf16.gmra.mrb[0].mxu0 %v927
    %v2828 = vpop.f32.mrb[0].mxu0
    %v2829 = vadd.f32 %v2636, %v2828
    %v2830 = vpop.f32.mrb[0].mxu0
    %v2831 = vadd.f32 %v2638, %v2830
    %v2832 = vpop.f32.mrb[0].mxu0
    %v2833 = vadd.f32 %v2640, %v2832
    %v2834 = vpop.f32.mrb[0].mxu0
    %v2835 = vadd.f32 %v2642, %v2834
    %2836 = vmatprep.mubr.bf16.mxu0 %v1901
    %2837 = vmatmul.mubr.bf16.gmra.mrb[0].mxu0 %v937
    %v2838 = vpop.f32.mrb[0].mxu0
    %v2839 = vadd.f32 %v2646, %v2838
    %v2840 = vpop.f32.mrb[0].mxu0
    %v2841 = vadd.f32 %v2648, %v2840
    %v2842 = vpop.f32.mrb[0].mxu0
    %v2843 = vadd.f32 %v2650, %v2842
    %v2844 = vpop.f32.mrb[0].mxu0
    %v2845 = vadd.f32 %v2652, %v2844
    %2846 = vmatprep.mubr.bf16.mxu0 %v1904
    %2847 = vmatmul.mubr.bf16.gmra.mrb[0].mxu0 %v947
    %v2848 = vpop.f32.mrb[0].mxu0
    %v2849 = vadd.f32 %v2656, %v2848
    %v2850 = vpop.f32.mrb[0].mxu0
    %v2851 = vadd.f32 %v2658, %v2850
    %v2852 = vpop.f32.mrb[0].mxu0
    %v2853 = vadd.f32 %v2660, %v2852
    %v2854 = vpop.f32.mrb[0].mxu0
    %v2855 = vadd.f32 %v2662, %v2854
    %2856 = vmatprep.mubr.bf16.mxu0 %v1907
    %2857 = vmatmul.mubr.bf16.gmra.mrb[0].mxu0 %v957
    %v2858 = vpop.f32.mrb[0].mxu0
    %v2859 = vadd.f32 %v2666, %v2858
    %v2860 = vpop.f32.mrb[0].mxu0
    %v2861 = vadd.f32 %v2668, %v2860
    %v2862 = vpop.f32.mrb[0].mxu0
    %v2863 = vadd.f32 %v2670, %v2862
    %v2864 = vpop.f32.mrb[0].mxu0
    %v2865 = vadd.f32 %v2672, %v2864
    %2866 = vmatprep.mubr.bf16.mxu0 %v1910
    %2867 = vmatmul.mubr.bf16.gmra.mrb[0].mxu0 %v967
    %v2868 = vpop.f32.mrb[0].mxu0
    %v2869 = vadd.f32 %v2676, %v2868
    %v2870 = vpop.f32.mrb[0].mxu0
    %v2871 = vadd.f32 %v2678, %v2870
    %v2872 = vpop.f32.mrb[0].mxu0
    %v2873 = vadd.f32 %v2680, %v2872
    %v2874 = vpop.f32.mrb[0].mxu0
    %v2875 = vadd.f32 %v2682, %v2874
    %2876 = vdwg.mxu0
    %v2877 = vadd.f32 %v2719, %v2721
    %2878 = vadd.xlane.f32.xlu0 %v2877
    %v2879 = vpop.xlane.xlu0 %2878
    %v2880 = vadd.f32 %v2723, %v2725
    %2881 = vadd.xlane.f32.xlu0 %v2880
    %v2882 = vpop.xlane.xlu0 %2881
    %v2883 = vadd.f32 %v2729, %v2731
    %2884 = vadd.xlane.f32.xlu0 %v2883
    %v2885 = vpop.xlane.xlu0 %2884
    %v2886 = vadd.f32 %v2733, %v2735
    %2887 = vadd.xlane.f32.xlu0 %v2886
    %v2888 = vpop.xlane.xlu0 %2887
    %v2889 = vadd.f32 %v2739, %v2741
    %2890 = vadd.xlane.f32.xlu0 %v2889
    %v2891 = vpop.xlane.xlu0 %2890
    %v2892 = vadd.f32 %v2743, %v2745
    %2893 = vadd.xlane.f32.xlu0 %v2892
    %v2894 = vpop.xlane.xlu0 %2893
    %v2895 = vadd.f32 %v2749, %v2751
    %2896 = vadd.xlane.f32.xlu0 %v2895
    %v2897 = vpop.xlane.xlu0 %2896
    %v2898 = vadd.f32 %v2753, %v2755
    %2899 = vadd.xlane.f32.xlu0 %v2898
    %v2900 = vpop.xlane.xlu0 %2899
    %v2901 = vadd.f32 %v2759, %v2761
    %2902 = vadd.xlane.f32.xlu0 %v2901
    %v2903 = vpop.xlane.xlu0 %2902
    %v2904 = vadd.f32 %v2763, %v2765
    %2905 = vadd.xlane.f32.xlu0 %v2904
    %v2906 = vpop.xlane.xlu0 %2905
    %v2907 = vadd.f32 %v2769, %v2771
    %2908 = vadd.xlane.f32.xlu0 %v2907
    %v2909 = vpop.xlane.xlu0 %2908
    %v2910 = vadd.f32 %v2773, %v2775
    %2911 = vadd.xlane.f32.xlu0 %v2910
    %v2912 = vpop.xlane.xlu0 %2911
    %v2913 = vadd.f32 %v2779, %v2781
    %2914 = vadd.xlane.f32.xlu0 %v2913
    %v2915 = vpop.xlane.xlu0 %2914
    %v2916 = vadd.f32 %v2783, %v2785
    %2917 = vadd.xlane.f32.xlu0 %v2916
    %v2918 = vpop.xlane.xlu0 %2917
    %v2919 = vadd.f32 %v2789, %v2791
    %2920 = vadd.xlane.f32.xlu0 %v2919
    %v2921 = vpop.xlane.xlu0 %2920
    %v2922 = vadd.f32 %v2793, %v2795
    %2923 = vadd.xlane.f32.xlu0 %v2922
    %v2924 = vpop.xlane.xlu0 %2923
    %v2925 = vadd.f32 %v2799, %v2801
    %2926 = vadd.xlane.f32.xlu0 %v2925
    %v2927 = vpop.xlane.xlu0 %2926
    %v2928 = vadd.f32 %v2803, %v2805
    %2929 = vadd.xlane.f32.xlu0 %v2928
    %v2930 = vpop.xlane.xlu0 %2929
    %v2931 = vadd.f32 %v2809, %v2811
    %2932 = vadd.xlane.f32.xlu0 %v2931
    %v2933 = vpop.xlane.xlu0 %2932
    %v2934 = vadd.f32 %v2813, %v2815
    %2935 = vadd.xlane.f32.xlu0 %v2934
    %v2936 = vpop.xlane.xlu0 %2935
    %v2937 = vadd.f32 %v2819, %v2821
    %2938 = vadd.xlane.f32.xlu0 %v2937
    %v2939 = vpop.xlane.xlu0 %2938
    %v2940 = vadd.f32 %v2823, %v2825
    %2941 = vadd.xlane.f32.xlu0 %v2940
    %v2942 = vpop.xlane.xlu0 %2941
    %v2943 = vadd.f32 %v2829, %v2831
    %2944 = vadd.xlane.f32.xlu0 %v2943
    %v2945 = vpop.xlane.xlu0 %2944
    %v2946 = vadd.f32 %v2833, %v2835
    %2947 = vadd.xlane.f32.xlu0 %v2946
    %v2948 = vpop.xlane.xlu0 %2947
    %v2949 = vadd.f32 %v2839, %v2841
    %2950 = vadd.xlane.f32.xlu0 %v2949
    %v2951 = vpop.xlane.xlu0 %2950
    %v2952 = vadd.f32 %v2843, %v2845
    %2953 = vadd.xlane.f32.xlu0 %v2952
    %v2954 = vpop.xlane.xlu0 %2953
    %v2955 = vadd.f32 %v2849, %v2851
    %2956 = vadd.xlane.f32.xlu0 %v2955
    %v2957 = vpop.xlane.xlu0 %2956
    %v2958 = vadd.f32 %v2853, %v2855
    %2959 = vadd.xlane.f32.xlu0 %v2958
    %v2960 = vpop.xlane.xlu0 %2959
    %v2961 = vadd.f32 %v2859, %v2861
    %2962 = vadd.xlane.f32.xlu0 %v2961
    %v2963 = vpop.xlane.xlu0 %2962
    %v2964 = vadd.f32 %v2863, %v2865
    %2965 = vadd.xlane.f32.xlu0 %v2964
    %v2966 = vpop.xlane.xlu0 %2965
    %v2967 = vadd.f32 %v2869, %v2871
    %2968 = vadd.xlane.f32.xlu0 %v2967
    %v2969 = vpop.xlane.xlu0 %2968
    %v2970 = vadd.f32 %v2873, %v2875
    %2971 = vadd.xlane.f32.xlu0 %v2970
    %v2972 = vpop.xlane.xlu0 %2971
    %v2973 = vmul.f32 %v2719, %v2719
    %v2974 = vmul.f32 %v2721, %v2721
    %v2975 = vmul.f32 %v2723, %v2723
    %v2976 = vmul.f32 %v2725, %v2725
    %v2977 = vmul.f32 %v2729, %v2729
    %v2978 = vmul.f32 %v2731, %v2731
    %v2979 = vmul.f32 %v2733, %v2733
    %v2980 = vmul.f32 %v2735, %v2735
    %v2981 = vmul.f32 %v2739, %v2739
    %v2982 = vmul.f32 %v2741, %v2741
    %v2983 = vmul.f32 %v2743, %v2743
    %v2984 = vmul.f32 %v2745, %v2745
    %v2985 = vmul.f32 %v2749, %v2749
    %v2986 = vmul.f32 %v2751, %v2751
    %v2987 = vmul.f32 %v2753, %v2753
    %v2988 = vmul.f32 %v2755, %v2755
    %v2989 = vmul.f32 %v2759, %v2759
    %v2990 = vmul.f32 %v2761, %v2761
    %v2991 = vmul.f32 %v2763, %v2763
    %v2992 = vmul.f32 %v2765, %v2765
    %v2993 = vmul.f32 %v2769, %v2769
    %v2994 = vmul.f32 %v2771, %v2771
    %v2995 = vmul.f32 %v2773, %v2773
    %v2996 = vmul.f32 %v2775, %v2775
    %v2997 = vmul.f32 %v2779, %v2779
    %v2998 = vmul.f32 %v2781, %v2781
    %v2999 = vmul.f32 %v2783, %v2783
    %v3000 = vmul.f32 %v2785, %v2785
    %v3001 = vmul.f32 %v2789, %v2789
    %v3002 = vmul.f32 %v2791, %v2791
    %v3003 = vmul.f32 %v2793, %v2793
    %v3004 = vmul.f32 %v2795, %v2795
    %v3005 = vmul.f32 %v2799, %v2799
    %v3006 = vmul.f32 %v2801, %v2801
    %v3007 = vmul.f32 %v2803, %v2803
    %v3008 = vmul.f32 %v2805, %v2805
    %v3009 = vmul.f32 %v2809, %v2809
    %v3010 = vmul.f32 %v2811, %v2811
    %v3011 = vmul.f32 %v2813, %v2813
    %v3012 = vmul.f32 %v2815, %v2815
    %v3013 = vmul.f32 %v2819, %v2819
    %v3014 = vmul.f32 %v2821, %v2821
    %v3015 = vmul.f32 %v2823, %v2823
    %v3016 = vmul.f32 %v2825, %v2825
    %v3017 = vmul.f32 %v2829, %v2829
    %v3018 = vmul.f32 %v2831, %v2831
    %v3019 = vmul.f32 %v2833, %v2833
    %v3020 = vmul.f32 %v2835, %v2835
    %v3021 = vmul.f32 %v2839, %v2839
    %v3022 = vmul.f32 %v2841, %v2841
    %v3023 = vmul.f32 %v2843, %v2843
    %v3024 = vmul.f32 %v2845, %v2845
    %v3025 = vmul.f32 %v2849, %v2849
    %v3026 = vmul.f32 %v2851, %v2851
    %v3027 = vmul.f32 %v2853, %v2853
    %v3028 = vmul.f32 %v2855, %v2855
    %v3029 = vmul.f32 %v2859, %v2859
    %v3030 = vmul.f32 %v2861, %v2861
    %v3031 = vmul.f32 %v2863, %v2863
    %v3032 = vmul.f32 %v2865, %v2865
    %v3033 = vmul.f32 %v2869, %v2869
    %v3034 = vmul.f32 %v2871, %v2871
    %v3035 = vmul.f32 %v2873, %v2873
    %v3036 = vmul.f32 %v2875, %v2875
    %v3037 = vadd.f32 %v2973, %v2974
    %3038 = vadd.xlane.f32.xlu0 %v3037
    %v3039 = vpop.xlane.xlu0 %3038
    %v3040 = vadd.f32 %v2975, %v2976
    %3041 = vadd.xlane.f32.xlu0 %v3040
    %v3042 = vpop.xlane.xlu0 %3041
    %v3043 = vadd.f32 %v2977, %v2978
    %3044 = vadd.xlane.f32.xlu0 %v3043
    %v3045 = vpop.xlane.xlu0 %3044
    %v3046 = vadd.f32 %v2979, %v2980
    %3047 = vadd.xlane.f32.xlu0 %v3046
    %v3048 = vpop.xlane.xlu0 %3047
    %v3049 = vadd.f32 %v2981, %v2982
    %3050 = vadd.xlane.f32.xlu0 %v3049
    %v3051 = vpop.xlane.xlu0 %3050
    %v3052 = vadd.f32 %v2983, %v2984
    %3053 = vadd.xlane.f32.xlu0 %v3052
    %v3054 = vpop.xlane.xlu0 %3053
    %v3055 = vadd.f32 %v2985, %v2986
    %3056 = vadd.xlane.f32.xlu0 %v3055
    %v3057 = vpop.xlane.xlu0 %3056
    %v3058 = vadd.f32 %v2987, %v2988
    %3059 = vadd.xlane.f32.xlu0 %v3058
    %v3060 = vpop.xlane.xlu0 %3059
    %v3061 = vadd.f32 %v2989, %v2990
    %3062 = vadd.xlane.f32.xlu0 %v3061
    %v3063 = vpop.xlane.xlu0 %3062
    %v3064 = vadd.f32 %v2991, %v2992
    %3065 = vadd.xlane.f32.xlu0 %v3064
    %v3066 = vpop.xlane.xlu0 %3065
    %v3067 = vadd.f32 %v2993, %v2994
    %3068 = vadd.xlane.f32.xlu0 %v3067
    %v3069 = vpop.xlane.xlu0 %3068
    %v3070 = vadd.f32 %v2995, %v2996
    %3071 = vadd.xlane.f32.xlu0 %v3070
    %v3072 = vpop.xlane.xlu0 %3071
    %v3073 = vadd.f32 %v2997, %v2998
    %3074 = vadd.xlane.f32.xlu0 %v3073
    %v3075 = vpop.xlane.xlu0 %3074
    %v3076 = vadd.f32 %v2999, %v3000
    %3077 = vadd.xlane.f32.xlu0 %v3076
    %v3078 = vpop.xlane.xlu0 %3077
    %v3079 = vadd.f32 %v3001, %v3002
    %3080 = vadd.xlane.f32.xlu0 %v3079
    %v3081 = vpop.xlane.xlu0 %3080
    %v3082 = vadd.f32 %v3003, %v3004
    %3083 = vadd.xlane.f32.xlu0 %v3082
    %v3084 = vpop.xlane.xlu0 %3083
    %v3085 = vadd.f32 %v3005, %v3006
    %3086 = vadd.xlane.f32.xlu0 %v3085
    %v3087 = vpop.xlane.xlu0 %3086
    %v3088 = vadd.f32 %v3007, %v3008
    %3089 = vadd.xlane.f32.xlu0 %v3088
    %v3090 = vpop.xlane.xlu0 %3089
    %v3091 = vadd.f32 %v3009, %v3010
    %3092 = vadd.xlane.f32.xlu0 %v3091
    %v3093 = vpop.xlane.xlu0 %3092
    %v3094 = vadd.f32 %v3011, %v3012
    %3095 = vadd.xlane.f32.xlu0 %v3094
    %v3096 = vpop.xlane.xlu0 %3095
    %v3097 = vadd.f32 %v3013, %v3014
    %3098 = vadd.xlane.f32.xlu0 %v3097
    %v3099 = vpop.xlane.xlu0 %3098
    %v3100 = vadd.f32 %v3015, %v3016
    %3101 = vadd.xlane.f32.xlu0 %v3100
    %v3102 = vpop.xlane.xlu0 %3101
    %v3103 = vadd.f32 %v3017, %v3018
    %3104 = vadd.xlane.f32.xlu0 %v3103
    %v3105 = vpop.xlane.xlu0 %3104
    %v3106 = vadd.f32 %v3019, %v3020
    %3107 = vadd.xlane.f32.xlu0 %v3106
    %v3108 = vpop.xlane.xlu0 %3107
    %v3109 = vadd.f32 %v3021, %v3022
    %3110 = vadd.xlane.f32.xlu0 %v3109
    %v3111 = vpop.xlane.xlu0 %3110
    %v3112 = vadd.f32 %v3023, %v3024
    %3113 = vadd.xlane.f32.xlu0 %v3112
    %v3114 = vpop.xlane.xlu0 %3113
    %v3115 = vadd.f32 %v3025, %v3026
    %3116 = vadd.xlane.f32.xlu0 %v3115
    %v3117 = vpop.xlane.xlu0 %3116
    %v3118 = vadd.f32 %v3027, %v3028
    %3119 = vadd.xlane.f32.xlu0 %v3118
    %v3120 = vpop.xlane.xlu0 %3119
    %v3121 = vadd.f32 %v3029, %v3030
    %3122 = vadd.xlane.f32.xlu0 %v3121
    %v3123 = vpop.xlane.xlu0 %3122
    %v3124 = vadd.f32 %v3031, %v3032
    %3125 = vadd.xlane.f32.xlu0 %v3124
    %v3126 = vpop.xlane.xlu0 %3125
    %v3127 = vadd.f32 %v3033, %v3034
    %3128 = vadd.xlane.f32.xlu0 %v3127
    %v3129 = vpop.xlane.xlu0 %3128
    %v3130 = vadd.f32 %v3035, %v3036
    %3131 = vadd.xlane.f32.xlu0 %v3130
    %v3132 = vpop.xlane.xlu0 %3131
    %v3133 = vmul.f32 %v2879, 0.0051020407
    %v3134 = vmul.f32 %v2882, 0.0051020407
    %v3135 = vmul.f32 %v2885, 0.0051020407
    %v3136 = vmul.f32 %v2888, 0.0051020407
    %v3137 = vmul.f32 %v2891, 0.0051020407
    %v3138 = vmul.f32 %v2894, 0.0051020407
    %v3139 = vmul.f32 %v2897, 0.0051020407
    %v3140 = vmul.f32 %v2900, 0.0051020407
    %v3141 = vmul.f32 %v2903, 0.0051020407
    %v3142 = vmul.f32 %v2906, 0.0051020407
    %v3143 = vmul.f32 %v2909, 0.0051020407
    %v3144 = vmul.f32 %v2912, 0.0051020407
    %v3145 = vmul.f32 %v2915, 0.0051020407
    %v3146 = vmul.f32 %v2918, 0.0051020407
    %v3147 = vmul.f32 %v2921, 0.0051020407
    %v3148 = vmul.f32 %v2924, 0.0051020407
    %v3149 = vmul.f32 %v2927, 0.0051020407
    %v3150 = vmul.f32 %v2930, 0.0051020407
    %v3151 = vmul.f32 %v2933, 0.0051020407
    %v3152 = vmul.f32 %v2936, 0.0051020407
    %v3153 = vmul.f32 %v2939, 0.0051020407
    %v3154 = vmul.f32 %v2942, 0.0051020407
    %v3155 = vmul.f32 %v2945, 0.0051020407
    %v3156 = vmul.f32 %v2948, 0.0051020407
    %v3157 = vmul.f32 %v2951, 0.0051020407
    %v3158 = vmul.f32 %v2954, 0.0051020407
    %v3159 = vmul.f32 %v2957, 0.0051020407
    %v3160 = vmul.f32 %v2960, 0.0051020407
    %v3161 = vmul.f32 %v2963, 0.0051020407
    %v3162 = vmul.f32 %v2966, 0.0051020407
    %v3163 = vmul.f32 %v2969, 0.0051020407
    %v3164 = vmul.f32 %v2972, 0.0051020407
    %v3165 = vmul.f32 %v3039, 0.0051020407
    %v3166 = vmul.f32 %v3042, 0.0051020407
    %v3167 = vmul.f32 %v3045, 0.0051020407
    %v3168 = vmul.f32 %v3048, 0.0051020407
    %v3169 = vmul.f32 %v3051, 0.0051020407
    %v3170 = vmul.f32 %v3054, 0.0051020407
    %v3171 = vmul.f32 %v3057, 0.0051020407
    %v3172 = vmul.f32 %v3060, 0.0051020407
    %v3173 = vmul.f32 %v3063, 0.0051020407
    %v3174 = vmul.f32 %v3066, 0.0051020407
    %v3175 = vmul.f32 %v3069, 0.0051020407
    %v3176 = vmul.f32 %v3072, 0.0051020407
    %v3177 = vmul.f32 %v3075, 0.0051020407
    %v3178 = vmul.f32 %v3078, 0.0051020407
    %v3179 = vmul.f32 %v3081, 0.0051020407
    %v3180 = vmul.f32 %v3084, 0.0051020407
    %v3181 = vmul.f32 %v3087, 0.0051020407
    %v3182 = vmul.f32 %v3090, 0.0051020407
    %v3183 = vmul.f32 %v3093, 0.0051020407
    %v3184 = vmul.f32 %v3096, 0.0051020407
    %v3185 = vmul.f32 %v3099, 0.0051020407
    %v3186 = vmul.f32 %v3102, 0.0051020407
    %v3187 = vmul.f32 %v3105, 0.0051020407
    %v3188 = vmul.f32 %v3108, 0.0051020407
    %v3189 = vmul.f32 %v3111, 0.0051020407
    %v3190 = vmul.f32 %v3114, 0.0051020407
    %v3191 = vmul.f32 %v3117, 0.0051020407
    %v3192 = vmul.f32 %v3120, 0.0051020407
    %v3193 = vmul.f32 %v3123, 0.0051020407
    %v3194 = vmul.f32 %v3126, 0.0051020407
    %v3195 = vmul.f32 %v3129, 0.0051020407
    %v3196 = vmul.f32 %v3132, 0.0051020407
    %v3197 = vmul.f32 %v3133, %v3133
    %v3198 = vmul.f32 %v3134, %v3134
    %v3199 = vmul.f32 %v3135, %v3135
    %v3200 = vmul.f32 %v3136, %v3136
    %v3201 = vmul.f32 %v3137, %v3137
    %v3202 = vmul.f32 %v3138, %v3138
    %v3203 = vmul.f32 %v3139, %v3139
    %v3204 = vmul.f32 %v3140, %v3140
    %v3205 = vmul.f32 %v3141, %v3141
    %v3206 = vmul.f32 %v3142, %v3142
    %v3207 = vmul.f32 %v3143, %v3143
    %v3208 = vmul.f32 %v3144, %v3144
    %v3209 = vmul.f32 %v3145, %v3145
    %v3210 = vmul.f32 %v3146, %v3146
    %v3211 = vmul.f32 %v3147, %v3147
    %v3212 = vmul.f32 %v3148, %v3148
    %v3213 = vmul.f32 %v3149, %v3149
    %v3214 = vmul.f32 %v3150, %v3150
    %v3215 = vmul.f32 %v3151, %v3151
    %v3216 = vmul.f32 %v3152, %v3152
    %v3217 = vmul.f32 %v3153, %v3153
    %v3218 = vmul.f32 %v3154, %v3154
    %v3219 = vmul.f32 %v3155, %v3155
    %v3220 = vmul.f32 %v3156, %v3156
    %v3221 = vmul.f32 %v3157, %v3157
    %v3222 = vmul.f32 %v3158, %v3158
    %v3223 = vmul.f32 %v3159, %v3159
    %v3224 = vmul.f32 %v3160, %v3160
    %v3225 = vmul.f32 %v3161, %v3161
    %v3226 = vmul.f32 %v3162, %v3162
    %v3227 = vmul.f32 %v3163, %v3163
    %v3228 = vmul.f32 %v3164, %v3164
    %v3229 = vsub.f32 %v3165, %v3197
    %v3230 = vsub.f32 %v3166, %v3198
    %v3231 = vsub.f32 %v3167, %v3199
    %v3232 = vsub.f32 %v3168, %v3200
    %v3233 = vsub.f32 %v3169, %v3201
    %v3234 = vsub.f32 %v3170, %v3202
    %v3235 = vsub.f32 %v3171, %v3203
    %v3236 = vsub.f32 %v3172, %v3204
    %v3237 = vsub.f32 %v3173, %v3205
    %v3238 = vsub.f32 %v3174, %v3206
    %v3239 = vsub.f32 %v3175, %v3207
    %v3240 = vsub.f32 %v3176, %v3208
    %v3241 = vsub.f32 %v3177, %v3209
    %v3242 = vsub.f32 %v3178, %v3210
    %v3243 = vsub.f32 %v3179, %v3211
    %v3244 = vsub.f32 %v3180, %v3212
    %v3245 = vsub.f32 %v3181, %v3213
    %v3246 = vsub.f32 %v3182, %v3214
    %v3247 = vsub.f32 %v3183, %v3215
    %v3248 = vsub.f32 %v3184, %v3216
    %v3249 = vsub.f32 %v3185, %v3217
    %v3250 = vsub.f32 %v3186, %v3218
    %v3251 = vsub.f32 %v3187, %v3219
    %v3252 = vsub.f32 %v3188, %v3220
    %v3253 = vsub.f32 %v3189, %v3221
    %v3254 = vsub.f32 %v3190, %v3222
    %v3255 = vsub.f32 %v3191, %v3223
    %v3256 = vsub.f32 %v3192, %v3224
    %v3257 = vsub.f32 %v3193, %v3225
    %v3258 = vsub.f32 %v3194, %v3226
    %v3259 = vsub.f32 %v3195, %v3227
    %v3260 = vsub.f32 %v3196, %v3228
    %v3261 = vmax.f32 %v3229, 0.0
    %v3262 = vmax.f32 %v3230, 0.0
    %v3263 = vmax.f32 %v3231, 0.0
    %v3264 = vmax.f32 %v3232, 0.0
    %v3265 = vmax.f32 %v3233, 0.0
    %v3266 = vmax.f32 %v3234, 0.0
    %v3267 = vmax.f32 %v3235, 0.0
    %v3268 = vmax.f32 %v3236, 0.0
    %v3269 = vmax.f32 %v3237, 0.0
    %v3270 = vmax.f32 %v3238, 0.0
    %v3271 = vmax.f32 %v3239, 0.0
    %v3272 = vmax.f32 %v3240, 0.0
    %v3273 = vmax.f32 %v3241, 0.0
    %v3274 = vmax.f32 %v3242, 0.0
    %v3275 = vmax.f32 %v3243, 0.0
    %v3276 = vmax.f32 %v3244, 0.0
    %v3277 = vmax.f32 %v3245, 0.0
    %v3278 = vmax.f32 %v3246, 0.0
    %v3279 = vmax.f32 %v3247, 0.0
    %v3280 = vmax.f32 %v3248, 0.0
    %v3281 = vmax.f32 %v3249, 0.0
    %v3282 = vmax.f32 %v3250, 0.0
    %v3283 = vmax.f32 %v3251, 0.0
    %v3284 = vmax.f32 %v3252, 0.0
    %v3285 = vmax.f32 %v3253, 0.0
    %v3286 = vmax.f32 %v3254, 0.0
    %v3287 = vmax.f32 %v3255, 0.0
    %v3288 = vmax.f32 %v3256, 0.0
    %v3289 = vmax.f32 %v3257, 0.0
    %v3290 = vmax.f32 %v3258, 0.0
    %v3291 = vmax.f32 %v3259, 0.0
    %v3292 = vmax.f32 %v3260, 0.0
    %v3293 = vld [vmem:[%s2] sm:$0xff]
    %v3294 = vld [vmem:[%s2 + $0x8] sm:$0xff]
    %v3295 = vld [vmem:[%s2 + $0x10] sm:$0xff]
    %v3296 = vld [vmem:[%s2 + $0x18] sm:$0xff]
    %v3297 = vld [vmem:[%s2 + $0x20] sm:$0xff]
    %v3298 = vld [vmem:[%s2 + $0x28] sm:$0xff]
    %v3299 = vld [vmem:[%s2 + $0x30] sm:$0xff]
    %v3300 = vld [vmem:[%s2 + $0x38] sm:$0xff]
    %v3301 = vld [vmem:[%s2 + $0x40] sm:$0xff]
    %v3302 = vld [vmem:[%s2 + $0x48] sm:$0xff]
    %v3303 = vld [vmem:[%s2 + $0x50] sm:$0xff]
    %v3304 = vld [vmem:[%s2 + $0x58] sm:$0xff]
    %v3305 = vld [vmem:[%s2 + $0x60] sm:$0xff]
    %v3306 = vld [vmem:[%s2 + $0x68] sm:$0xff]
    %v3307 = vld [vmem:[%s2 + $0x70] sm:$0xff]
    %v3308 = vld [vmem:[%s2 + $0x78] sm:$0xff]
    %v3309 = vld [vmem:[%s2 + $0x80] sm:$0xff]
    %v3310 = vld [vmem:[%s2 + $0x88] sm:$0xff]
    %v3311 = vld [vmem:[%s2 + $0x90] sm:$0xff]
    %v3312 = vld [vmem:[%s2 + $0x98] sm:$0xff]
    %v3313 = vld [vmem:[%s2 + $0xa0] sm:$0xff]
    %v3314 = vld [vmem:[%s2 + $0xa8] sm:$0xff]
    %v3315 = vld [vmem:[%s2 + $0xb0] sm:$0xff]
    %v3316 = vld [vmem:[%s2 + $0xb8] sm:$0xff]
    %v3317 = vld [vmem:[%s2 + $0xc0] sm:$0xff]
    %v3318 = vld [vmem:[%s2 + $0xc8] sm:$0xff]
    %v3319 = vld [vmem:[%s2 + $0xd0] sm:$0xff]
    %v3320 = vld [vmem:[%s2 + $0xd8] sm:$0xff]
    %v3321 = vld [vmem:[%s2 + $0xe0] sm:$0xff]
    %v3322 = vld [vmem:[%s2 + $0xe8] sm:$0xff]
    %v3323 = vld [vmem:[%s2 + $0xf0] sm:$0xff]
    %v3324 = vld [vmem:[%s2 + $0xf8] sm:$0xff]
    %v3325 = vadd.f32 %v3261, 1e-05
    %v3326 = vadd.f32 %v3262, 1e-05
    %v3327 = vadd.f32 %v3263, 1e-05
    %v3328 = vadd.f32 %v3264, 1e-05
    %v3329 = vadd.f32 %v3265, 1e-05
    %v3330 = vadd.f32 %v3266, 1e-05
    %v3331 = vadd.f32 %v3267, 1e-05
    %v3332 = vadd.f32 %v3268, 1e-05
    %v3333 = vadd.f32 %v3269, 1e-05
    %v3334 = vadd.f32 %v3270, 1e-05
    %v3335 = vadd.f32 %v3271, 1e-05
    %v3336 = vadd.f32 %v3272, 1e-05
    %v3337 = vadd.f32 %v3273, 1e-05
    %v3338 = vadd.f32 %v3274, 1e-05
    %v3339 = vadd.f32 %v3275, 1e-05
    %v3340 = vadd.f32 %v3276, 1e-05
    %v3341 = vadd.f32 %v3277, 1e-05
    %v3342 = vadd.f32 %v3278, 1e-05
    %v3343 = vadd.f32 %v3279, 1e-05
    %v3344 = vadd.f32 %v3280, 1e-05
    %v3345 = vadd.f32 %v3281, 1e-05
    %v3346 = vadd.f32 %v3282, 1e-05
    %v3347 = vadd.f32 %v3283, 1e-05
    %v3348 = vadd.f32 %v3284, 1e-05
    %v3349 = vadd.f32 %v3285, 1e-05
    %v3350 = vadd.f32 %v3286, 1e-05
    %v3351 = vadd.f32 %v3287, 1e-05
    %v3352 = vadd.f32 %v3288, 1e-05
    %v3353 = vadd.f32 %v3289, 1e-05
    %v3354 = vadd.f32 %v3290, 1e-05
    %v3355 = vadd.f32 %v3291, 1e-05
    %v3356 = vadd.f32 %v3292, 1e-05
    %v3357 = vrsqrt.pop %v3325
    %v3358 = vrsqrt.pop %v3326
    %v3359 = vrsqrt.pop %v3327
    %v3360 = vrsqrt.pop %v3328
    %v3361 = vrsqrt.pop %v3329
    %v3362 = vrsqrt.pop %v3330
    %v3363 = vrsqrt.pop %v3331
    %v3364 = vrsqrt.pop %v3332
    %v3365 = vrsqrt.pop %v3333
    %v3366 = vrsqrt.pop %v3334
    %v3367 = vrsqrt.pop %v3335
    %v3368 = vrsqrt.pop %v3336
    %v3369 = vrsqrt.pop %v3337
    %v3370 = vrsqrt.pop %v3338
    %v3371 = vrsqrt.pop %v3339
    %v3372 = vrsqrt.pop %v3340
    %v3373 = vrsqrt.pop %v3341
    %v3374 = vrsqrt.pop %v3342
    %v3375 = vrsqrt.pop %v3343
    %v3376 = vrsqrt.pop %v3344
    %v3377 = vrsqrt.pop %v3345
    %v3378 = vrsqrt.pop %v3346
    %v3379 = vrsqrt.pop %v3347
    %v3380 = vrsqrt.pop %v3348
    %v3381 = vrsqrt.pop %v3349
    %v3382 = vrsqrt.pop %v3350
    %v3383 = vrsqrt.pop %v3351
    %v3384 = vrsqrt.pop %v3352
    %v3385 = vrsqrt.pop %v3353
    %v3386 = vrsqrt.pop %v3354
    %v3387 = vrsqrt.pop %v3355
    %v3388 = vrsqrt.pop %v3356
    %v3389 = vmul.f32 %v3293, %v3357
    %v3390 = vmul.f32 %v3294, %v3358
    %v3391 = vmul.f32 %v3295, %v3359
    %v3392 = vmul.f32 %v3296, %v3360
    %v3393 = vmul.f32 %v3297, %v3361
    %v3394 = vmul.f32 %v3298, %v3362
    %v3395 = vmul.f32 %v3299, %v3363
    %v3396 = vmul.f32 %v3300, %v3364
    %v3397 = vmul.f32 %v3301, %v3365
    %v3398 = vmul.f32 %v3302, %v3366
    %v3399 = vmul.f32 %v3303, %v3367
    %v3400 = vmul.f32 %v3304, %v3368
    %v3401 = vmul.f32 %v3305, %v3369
    %v3402 = vmul.f32 %v3306, %v3370
    %v3403 = vmul.f32 %v3307, %v3371
    %v3404 = vmul.f32 %v3308, %v3372
    %v3405 = vmul.f32 %v3309, %v3373
    %v3406 = vmul.f32 %v3310, %v3374
    %v3407 = vmul.f32 %v3311, %v3375
    %v3408 = vmul.f32 %v3312, %v3376
    %v3409 = vmul.f32 %v3313, %v3377
    %v3410 = vmul.f32 %v3314, %v3378
    %v3411 = vmul.f32 %v3315, %v3379
    %v3412 = vmul.f32 %v3316, %v3380
    %v3413 = vmul.f32 %v3317, %v3381
    %v3414 = vmul.f32 %v3318, %v3382
    %v3415 = vmul.f32 %v3319, %v3383
    %v3416 = vmul.f32 %v3320, %v3384
    %v3417 = vmul.f32 %v3321, %v3385
    %v3418 = vmul.f32 %v3322, %v3386
    %v3419 = vmul.f32 %v3323, %v3387
    %v3420 = vmul.f32 %v3324, %v3388
    %v3421 = vld [vmem:[%s3] sm:$0xff]
    %v3422 = vld [vmem:[%s3 + $0x8] sm:$0xff]
    %v3423 = vld [vmem:[%s3 + $0x10] sm:$0xff]
    %v3424 = vld [vmem:[%s3 + $0x18] sm:$0xff]
    %v3425 = vld [vmem:[%s3 + $0x20] sm:$0xff]
    %v3426 = vld [vmem:[%s3 + $0x28] sm:$0xff]
    %v3427 = vld [vmem:[%s3 + $0x30] sm:$0xff]
    %v3428 = vld [vmem:[%s3 + $0x38] sm:$0xff]
    %v3429 = vld [vmem:[%s3 + $0x40] sm:$0xff]
    %v3430 = vld [vmem:[%s3 + $0x48] sm:$0xff]
    %v3431 = vld [vmem:[%s3 + $0x50] sm:$0xff]
    %v3432 = vld [vmem:[%s3 + $0x58] sm:$0xff]
    %v3433 = vld [vmem:[%s3 + $0x60] sm:$0xff]
    %v3434 = vld [vmem:[%s3 + $0x68] sm:$0xff]
    %v3435 = vld [vmem:[%s3 + $0x70] sm:$0xff]
    %v3436 = vld [vmem:[%s3 + $0x78] sm:$0xff]
    %v3437 = vld [vmem:[%s3 + $0x80] sm:$0xff]
    %v3438 = vld [vmem:[%s3 + $0x88] sm:$0xff]
    %v3439 = vld [vmem:[%s3 + $0x90] sm:$0xff]
    %v3440 = vld [vmem:[%s3 + $0x98] sm:$0xff]
    %v3441 = vld [vmem:[%s3 + $0xa0] sm:$0xff]
    %v3442 = vld [vmem:[%s3 + $0xa8] sm:$0xff]
    %v3443 = vld [vmem:[%s3 + $0xb0] sm:$0xff]
    %v3444 = vld [vmem:[%s3 + $0xb8] sm:$0xff]
    %v3445 = vld [vmem:[%s3 + $0xc0] sm:$0xff]
    %v3446 = vld [vmem:[%s3 + $0xc8] sm:$0xff]
    %v3447 = vld [vmem:[%s3 + $0xd0] sm:$0xff]
    %v3448 = vld [vmem:[%s3 + $0xd8] sm:$0xff]
    %v3449 = vld [vmem:[%s3 + $0xe0] sm:$0xff]
    %v3450 = vld [vmem:[%s3 + $0xe8] sm:$0xff]
    %v3451 = vld [vmem:[%s3 + $0xf0] sm:$0xff]
    %v3452 = vld [vmem:[%s3 + $0xf8] sm:$0xff]
    %v3453 = vmul.f32 %v3133, %v3389
    %v3454 = vmul.f32 %v3134, %v3390
    %v3455 = vmul.f32 %v3135, %v3391
    %v3456 = vmul.f32 %v3136, %v3392
    %v3457 = vmul.f32 %v3137, %v3393
    %v3458 = vmul.f32 %v3138, %v3394
    %v3459 = vmul.f32 %v3139, %v3395
    %v3460 = vmul.f32 %v3140, %v3396
    %v3461 = vmul.f32 %v3141, %v3397
    %v3462 = vmul.f32 %v3142, %v3398
    %v3463 = vmul.f32 %v3143, %v3399
    %v3464 = vmul.f32 %v3144, %v3400
    %v3465 = vmul.f32 %v3145, %v3401
    %v3466 = vmul.f32 %v3146, %v3402
    %v3467 = vmul.f32 %v3147, %v3403
    %v3468 = vmul.f32 %v3148, %v3404
    %v3469 = vmul.f32 %v3149, %v3405
    %v3470 = vmul.f32 %v3150, %v3406
    %v3471 = vmul.f32 %v3151, %v3407
    %v3472 = vmul.f32 %v3152, %v3408
    %v3473 = vmul.f32 %v3153, %v3409
    %v3474 = vmul.f32 %v3154, %v3410
    %v3475 = vmul.f32 %v3155, %v3411
    %v3476 = vmul.f32 %v3156, %v3412
    %v3477 = vmul.f32 %v3157, %v3413
    %v3478 = vmul.f32 %v3158, %v3414
    %v3479 = vmul.f32 %v3159, %v3415
    %v3480 = vmul.f32 %v3160, %v3416
    %v3481 = vmul.f32 %v3161, %v3417
    %v3482 = vmul.f32 %v3162, %v3418
    %v3483 = vmul.f32 %v3163, %v3419
    %v3484 = vmul.f32 %v3164, %v3420
    %v3485 = vsub.f32 %v3421, %v3453
    %v3486 = vsub.f32 %v3422, %v3454
    %v3487 = vsub.f32 %v3423, %v3455
    %v3488 = vsub.f32 %v3424, %v3456
    %v3489 = vsub.f32 %v3425, %v3457
    %v3490 = vsub.f32 %v3426, %v3458
    %v3491 = vsub.f32 %v3427, %v3459
    %v3492 = vsub.f32 %v3428, %v3460
    %v3493 = vsub.f32 %v3429, %v3461
    %v3494 = vsub.f32 %v3430, %v3462
    %v3495 = vsub.f32 %v3431, %v3463
    %v3496 = vsub.f32 %v3432, %v3464
    %v3497 = vsub.f32 %v3433, %v3465
    %v3498 = vsub.f32 %v3434, %v3466
    %v3499 = vsub.f32 %v3435, %v3467
    %v3500 = vsub.f32 %v3436, %v3468
    %v3501 = vsub.f32 %v3437, %v3469
    %v3502 = vsub.f32 %v3438, %v3470
    %v3503 = vsub.f32 %v3439, %v3471
    %v3504 = vsub.f32 %v3440, %v3472
    %v3505 = vsub.f32 %v3441, %v3473
    %v3506 = vsub.f32 %v3442, %v3474
    %v3507 = vsub.f32 %v3443, %v3475
    %v3508 = vsub.f32 %v3444, %v3476
    %v3509 = vsub.f32 %v3445, %v3477
    %v3510 = vsub.f32 %v3446, %v3478
    %v3511 = vsub.f32 %v3447, %v3479
    %v3512 = vsub.f32 %v3448, %v3480
    %v3513 = vsub.f32 %v3449, %v3481
    %v3514 = vsub.f32 %v3450, %v3482
    %v3515 = vsub.f32 %v3451, %v3483
    %v3516 = vsub.f32 %v3452, %v3484
    %3518 = vset.pattern.permute.xlu0 0
    %3519 = vperm.xlu0 %3518, %v3389
    %v3520 = vpop.permute.xlu0 %3519
    %3523 = vset.pattern.permute.xlu0 0
    %3524 = vperm.xlu0 %3523, %v3390
    %v3525 = vpop.permute.xlu0 %3524
    %3528 = vset.pattern.permute.xlu0 0
    %3529 = vperm.xlu0 %3528, %v3391
    %v3530 = vpop.permute.xlu0 %3529
    %3533 = vset.pattern.permute.xlu0 0
    %3534 = vperm.xlu0 %3533, %v3392
    %v3535 = vpop.permute.xlu0 %3534
    %3538 = vset.pattern.permute.xlu0 0
    %3539 = vperm.xlu0 %3538, %v3393
    %v3540 = vpop.permute.xlu0 %3539
    %3543 = vset.pattern.permute.xlu0 0
    %3544 = vperm.xlu0 %3543, %v3394
    %v3545 = vpop.permute.xlu0 %3544
    %3548 = vset.pattern.permute.xlu0 0
    %3549 = vperm.xlu0 %3548, %v3395
    %v3550 = vpop.permute.xlu0 %3549
    %3553 = vset.pattern.permute.xlu0 0
    %3554 = vperm.xlu0 %3553, %v3396
    %v3555 = vpop.permute.xlu0 %3554
    %3558 = vset.pattern.permute.xlu0 0
    %3559 = vperm.xlu0 %3558, %v3397
    %v3560 = vpop.permute.xlu0 %3559
    %3563 = vset.pattern.permute.xlu0 0
    %3564 = vperm.xlu0 %3563, %v3398
    %v3565 = vpop.permute.xlu0 %3564
    %3568 = vset.pattern.permute.xlu0 0
    %3569 = vperm.xlu0 %3568, %v3399
    %v3570 = vpop.permute.xlu0 %3569
    %3573 = vset.pattern.permute.xlu0 0
    %3574 = vperm.xlu0 %3573, %v3400
    %v3575 = vpop.permute.xlu0 %3574
    %3578 = vset.pattern.permute.xlu0 0
    %3579 = vperm.xlu0 %3578, %v3401
    %v3580 = vpop.permute.xlu0 %3579
    %3583 = vset.pattern.permute.xlu0 0
    %3584 = vperm.xlu0 %3583, %v3402
    %v3585 = vpop.permute.xlu0 %3584
    %3588 = vset.pattern.permute.xlu0 0
    %3589 = vperm.xlu0 %3588, %v3403
    %v3590 = vpop.permute.xlu0 %3589
    %3593 = vset.pattern.permute.xlu0 0
    %3594 = vperm.xlu0 %3593, %v3404
    %v3595 = vpop.permute.xlu0 %3594
    %3598 = vset.pattern.permute.xlu0 0
    %3599 = vperm.xlu0 %3598, %v3405
    %v3600 = vpop.permute.xlu0 %3599
    %3603 = vset.pattern.permute.xlu0 0
    %3604 = vperm.xlu0 %3603, %v3406
    %v3605 = vpop.permute.xlu0 %3604
    %3608 = vset.pattern.permute.xlu0 0
    %3609 = vperm.xlu0 %3608, %v3407
    %v3610 = vpop.permute.xlu0 %3609
    %3613 = vset.pattern.permute.xlu0 0
    %3614 = vperm.xlu0 %3613, %v3408
    %v3615 = vpop.permute.xlu0 %3614
    %3618 = vset.pattern.permute.xlu0 0
    %3619 = vperm.xlu0 %3618, %v3409
    %v3620 = vpop.permute.xlu0 %3619
    %3623 = vset.pattern.permute.xlu0 0
    %3624 = vperm.xlu0 %3623, %v3410
    %v3625 = vpop.permute.xlu0 %3624
    %3628 = vset.pattern.permute.xlu0 0
    %3629 = vperm.xlu0 %3628, %v3411
    %v3630 = vpop.permute.xlu0 %3629
    %3633 = vset.pattern.permute.xlu0 0
    %3634 = vperm.xlu0 %3633, %v3412
    %v3635 = vpop.permute.xlu0 %3634
    %3638 = vset.pattern.permute.xlu0 0
    %3639 = vperm.xlu0 %3638, %v3413
    %v3640 = vpop.permute.xlu0 %3639
    %3643 = vset.pattern.permute.xlu0 0
    %3644 = vperm.xlu0 %3643, %v3414
    %v3645 = vpop.permute.xlu0 %3644
    %3648 = vset.pattern.permute.xlu0 0
    %3649 = vperm.xlu0 %3648, %v3415
    %v3650 = vpop.permute.xlu0 %3649
    %3653 = vset.pattern.permute.xlu0 0
    %3654 = vperm.xlu0 %3653, %v3416
    %v3655 = vpop.permute.xlu0 %3654
    %3658 = vset.pattern.permute.xlu0 0
    %3659 = vperm.xlu0 %3658, %v3417
    %v3660 = vpop.permute.xlu0 %3659
    %3663 = vset.pattern.permute.xlu0 0
    %3664 = vperm.xlu0 %3663, %v3418
    %v3665 = vpop.permute.xlu0 %3664
    %3668 = vset.pattern.permute.xlu0 0
    %3669 = vperm.xlu0 %3668, %v3419
    %v3670 = vpop.permute.xlu0 %3669
    %3673 = vset.pattern.permute.xlu0 0
    %3674 = vperm.xlu0 %3673, %v3420
    %v3675 = vpop.permute.xlu0 %3674
    %v3677 = vmul.f32 %v2719, %v3520
    %v3678 = vmul.f32 %v2721, %v3520
    %v3679 = vmul.f32 %v2723, %v3525
    %v3680 = vmul.f32 %v2725, %v3525
    %v3681 = vmul.f32 %v2729, %v3530
    %v3682 = vmul.f32 %v2731, %v3530
    %v3683 = vmul.f32 %v2733, %v3535
    %v3684 = vmul.f32 %v2735, %v3535
    %v3685 = vmul.f32 %v2739, %v3540
    %v3686 = vmul.f32 %v2741, %v3540
    %v3687 = vmul.f32 %v2743, %v3545
    %v3688 = vmul.f32 %v2745, %v3545
    %v3689 = vmul.f32 %v2749, %v3550
    %v3690 = vmul.f32 %v2751, %v3550
    %v3691 = vmul.f32 %v2753, %v3555
    %v3692 = vmul.f32 %v2755, %v3555
    %v3693 = vmul.f32 %v2759, %v3560
    %v3694 = vmul.f32 %v2761, %v3560
    %v3695 = vmul.f32 %v2763, %v3565
    %v3696 = vmul.f32 %v2765, %v3565
    %v3697 = vmul.f32 %v2769, %v3570
    %v3698 = vmul.f32 %v2771, %v3570
    %v3699 = vmul.f32 %v2773, %v3575
    %v3700 = vmul.f32 %v2775, %v3575
    %v3701 = vmul.f32 %v2779, %v3580
    %v3702 = vmul.f32 %v2781, %v3580
    %v3703 = vmul.f32 %v2783, %v3585
    %v3704 = vmul.f32 %v2785, %v3585
    %v3705 = vmul.f32 %v2789, %v3590
    %v3706 = vmul.f32 %v2791, %v3590
    %v3707 = vmul.f32 %v2793, %v3595
    %v3708 = vmul.f32 %v2795, %v3595
    %v3709 = vmul.f32 %v2799, %v3600
    %v3710 = vmul.f32 %v2801, %v3600
    %v3711 = vmul.f32 %v2803, %v3605
    %v3712 = vmul.f32 %v2805, %v3605
    %v3713 = vmul.f32 %v2809, %v3610
    %v3714 = vmul.f32 %v2811, %v3610
    %v3715 = vmul.f32 %v2813, %v3615
    %v3716 = vmul.f32 %v2815, %v3615
    %v3717 = vmul.f32 %v2819, %v3620
    %v3718 = vmul.f32 %v2821, %v3620
    %v3719 = vmul.f32 %v2823, %v3625
    %v3720 = vmul.f32 %v2825, %v3625
    %v3721 = vmul.f32 %v2829, %v3630
    %v3722 = vmul.f32 %v2831, %v3630
    %v3723 = vmul.f32 %v2833, %v3635
    %v3724 = vmul.f32 %v2835, %v3635
    %v3725 = vmul.f32 %v2839, %v3640
    %v3726 = vmul.f32 %v2841, %v3640
    %v3727 = vmul.f32 %v2843, %v3645
    %v3728 = vmul.f32 %v2845, %v3645
    %v3729 = vmul.f32 %v2849, %v3650
    %v3730 = vmul.f32 %v2851, %v3650
    %v3731 = vmul.f32 %v2853, %v3655
    %v3732 = vmul.f32 %v2855, %v3655
    %v3733 = vmul.f32 %v2859, %v3660
    %v3734 = vmul.f32 %v2861, %v3660
    %v3735 = vmul.f32 %v2863, %v3665
    %v3736 = vmul.f32 %v2865, %v3665
    %v3737 = vmul.f32 %v2869, %v3670
    %v3738 = vmul.f32 %v2871, %v3670
    %v3739 = vmul.f32 %v2873, %v3675
    %v3740 = vmul.f32 %v2875, %v3675
    %3742 = vset.pattern.permute.xlu0 0
    %3743 = vperm.xlu0 %3742, %v3485
    %v3744 = vpop.permute.xlu0 %3743
    %3747 = vset.pattern.permute.xlu0 0
    %3748 = vperm.xlu0 %3747, %v3486
    %v3749 = vpop.permute.xlu0 %3748
    %3752 = vset.pattern.permute.xlu0 0
    %3753 = vperm.xlu0 %3752, %v3487
    %v3754 = vpop.permute.xlu0 %3753
    %3757 = vset.pattern.permute.xlu0 0
    %3758 = vperm.xlu0 %3757, %v3488
    %v3759 = vpop.permute.xlu0 %3758
    %3762 = vset.pattern.permute.xlu0 0
    %3763 = vperm.xlu0 %3762, %v3489
    %v3764 = vpop.permute.xlu0 %3763
    %3767 = vset.pattern.permute.xlu0 0
    %3768 = vperm.xlu0 %3767, %v3490
    %v3769 = vpop.permute.xlu0 %3768
    %3772 = vset.pattern.permute.xlu0 0
    %3773 = vperm.xlu0 %3772, %v3491
    %v3774 = vpop.permute.xlu0 %3773
    %3777 = vset.pattern.permute.xlu0 0
    %3778 = vperm.xlu0 %3777, %v3492
    %v3779 = vpop.permute.xlu0 %3778
    %3782 = vset.pattern.permute.xlu0 0
    %3783 = vperm.xlu0 %3782, %v3493
    %v3784 = vpop.permute.xlu0 %3783
    %3787 = vset.pattern.permute.xlu0 0
    %3788 = vperm.xlu0 %3787, %v3494
    %v3789 = vpop.permute.xlu0 %3788
    %3792 = vset.pattern.permute.xlu0 0
    %3793 = vperm.xlu0 %3792, %v3495
    %v3794 = vpop.permute.xlu0 %3793
    %3797 = vset.pattern.permute.xlu0 0
    %3798 = vperm.xlu0 %3797, %v3496
    %v3799 = vpop.permute.xlu0 %3798
    %3802 = vset.pattern.permute.xlu0 0
    %3803 = vperm.xlu0 %3802, %v3497
    %v3804 = vpop.permute.xlu0 %3803
    %3807 = vset.pattern.permute.xlu0 0
    %3808 = vperm.xlu0 %3807, %v3498
    %v3809 = vpop.permute.xlu0 %3808
    %3812 = vset.pattern.permute.xlu0 0
    %3813 = vperm.xlu0 %3812, %v3499
    %v3814 = vpop.permute.xlu0 %3813
    %3817 = vset.pattern.permute.xlu0 0
    %3818 = vperm.xlu0 %3817, %v3500
    %v3819 = vpop.permute.xlu0 %3818
    %3822 = vset.pattern.permute.xlu0 0
    %3823 = vperm.xlu0 %3822, %v3501
    %v3824 = vpop.permute.xlu0 %3823
    %3827 = vset.pattern.permute.xlu0 0
    %3828 = vperm.xlu0 %3827, %v3502
    %v3829 = vpop.permute.xlu0 %3828
    %3832 = vset.pattern.permute.xlu0 0
    %3833 = vperm.xlu0 %3832, %v3503
    %v3834 = vpop.permute.xlu0 %3833
    %3837 = vset.pattern.permute.xlu0 0
    %3838 = vperm.xlu0 %3837, %v3504
    %v3839 = vpop.permute.xlu0 %3838
    %3842 = vset.pattern.permute.xlu0 0
    %3843 = vperm.xlu0 %3842, %v3505
    %v3844 = vpop.permute.xlu0 %3843
    %3847 = vset.pattern.permute.xlu0 0
    %3848 = vperm.xlu0 %3847, %v3506
    %v3849 = vpop.permute.xlu0 %3848
    %3852 = vset.pattern.permute.xlu0 0
    %3853 = vperm.xlu0 %3852, %v3507
    %v3854 = vpop.permute.xlu0 %3853
    %3857 = vset.pattern.permute.xlu0 0
    %3858 = vperm.xlu0 %3857, %v3508
    %v3859 = vpop.permute.xlu0 %3858
    %3862 = vset.pattern.permute.xlu0 0
    %3863 = vperm.xlu0 %3862, %v3509
    %v3864 = vpop.permute.xlu0 %3863
    %3867 = vset.pattern.permute.xlu0 0
    %3868 = vperm.xlu0 %3867, %v3510
    %v3869 = vpop.permute.xlu0 %3868
    %3872 = vset.pattern.permute.xlu0 0
    %3873 = vperm.xlu0 %3872, %v3511
    %v3874 = vpop.permute.xlu0 %3873
    %3877 = vset.pattern.permute.xlu0 0
    %3878 = vperm.xlu0 %3877, %v3512
    %v3879 = vpop.permute.xlu0 %3878
    %3882 = vset.pattern.permute.xlu0 0
    %3883 = vperm.xlu0 %3882, %v3513
    %v3884 = vpop.permute.xlu0 %3883
    %3887 = vset.pattern.permute.xlu0 0
    %3888 = vperm.xlu0 %3887, %v3514
    %v3889 = vpop.permute.xlu0 %3888
    %3892 = vset.pattern.permute.xlu0 0
    %3893 = vperm.xlu0 %3892, %v3515
    %v3894 = vpop.permute.xlu0 %3893
    %3897 = vset.pattern.permute.xlu0 0
    %3898 = vperm.xlu0 %3897, %v3516
    %v3899 = vpop.permute.xlu0 %3898
    %v3901 = vadd.f32 %v3677, %v3744
    %v3902 = vadd.f32 %v3678, %v3744
    %v3903 = vadd.f32 %v3679, %v3749
    %v3904 = vadd.f32 %v3680, %v3749
    %v3905 = vadd.f32 %v3681, %v3754
    %v3906 = vadd.f32 %v3682, %v3754
    %v3907 = vadd.f32 %v3683, %v3759
    %v3908 = vadd.f32 %v3684, %v3759
    %v3909 = vadd.f32 %v3685, %v3764
    %v3910 = vadd.f32 %v3686, %v3764
    %v3911 = vadd.f32 %v3687, %v3769
    %v3912 = vadd.f32 %v3688, %v3769
    %v3913 = vadd.f32 %v3689, %v3774
    %v3914 = vadd.f32 %v3690, %v3774
    %v3915 = vadd.f32 %v3691, %v3779
    %v3916 = vadd.f32 %v3692, %v3779
    %v3917 = vadd.f32 %v3693, %v3784
    %v3918 = vadd.f32 %v3694, %v3784
    %v3919 = vadd.f32 %v3695, %v3789
    %v3920 = vadd.f32 %v3696, %v3789
    %v3921 = vadd.f32 %v3697, %v3794
    %v3922 = vadd.f32 %v3698, %v3794
    %v3923 = vadd.f32 %v3699, %v3799
    %v3924 = vadd.f32 %v3700, %v3799
    %v3925 = vadd.f32 %v3701, %v3804
    %v3926 = vadd.f32 %v3702, %v3804
    %v3927 = vadd.f32 %v3703, %v3809
    %v3928 = vadd.f32 %v3704, %v3809
    %v3929 = vadd.f32 %v3705, %v3814
    %v3930 = vadd.f32 %v3706, %v3814
    %v3931 = vadd.f32 %v3707, %v3819
    %v3932 = vadd.f32 %v3708, %v3819
    %v3933 = vadd.f32 %v3709, %v3824
    %v3934 = vadd.f32 %v3710, %v3824
    %v3935 = vadd.f32 %v3711, %v3829
    %v3936 = vadd.f32 %v3712, %v3829
    %v3937 = vadd.f32 %v3713, %v3834
    %v3938 = vadd.f32 %v3714, %v3834
    %v3939 = vadd.f32 %v3715, %v3839
    %v3940 = vadd.f32 %v3716, %v3839
    %v3941 = vadd.f32 %v3717, %v3844
    %v3942 = vadd.f32 %v3718, %v3844
    %v3943 = vadd.f32 %v3719, %v3849
    %v3944 = vadd.f32 %v3720, %v3849
    %v3945 = vadd.f32 %v3721, %v3854
    %v3946 = vadd.f32 %v3722, %v3854
    %v3947 = vadd.f32 %v3723, %v3859
    %v3948 = vadd.f32 %v3724, %v3859
    %v3949 = vadd.f32 %v3725, %v3864
    %v3950 = vadd.f32 %v3726, %v3864
    %v3951 = vadd.f32 %v3727, %v3869
    %v3952 = vadd.f32 %v3728, %v3869
    %v3953 = vadd.f32 %v3729, %v3874
    %v3954 = vadd.f32 %v3730, %v3874
    %v3955 = vadd.f32 %v3731, %v3879
    %v3956 = vadd.f32 %v3732, %v3879
    %v3957 = vadd.f32 %v3733, %v3884
    %v3958 = vadd.f32 %v3734, %v3884
    %v3959 = vadd.f32 %v3735, %v3889
    %v3960 = vadd.f32 %v3736, %v3889
    %v3961 = vadd.f32 %v3737, %v3894
    %v3962 = vadd.f32 %v3738, %v3894
    %v3963 = vadd.f32 %v3739, %v3899
    %v3964 = vadd.f32 %v3740, %v3899
    %3965 = vst [vmem:[#allocation2] sm:$0xff] %v3901
    %3966 = vst [vmem:[#allocation2 + $0x8] sm:$0xff] %v3902
    %3967 = vst [vmem:[#allocation2 + $0x10] sm:$0xff] %v3903
    %3968 = vst [vmem:[#allocation2 + $0x18] sm:$0xff] %v3904
    %3969 = vst [vmem:[#allocation2 + $0x20] sm:$0xff] %v3905
    %3970 = vst [vmem:[#allocation2 + $0x28] sm:$0xff] %v3906
    %3971 = vst [vmem:[#allocation2 + $0x30] sm:$0xff] %v3907
    %3972 = vst [vmem:[#allocation2 + $0x38] sm:$0xff] %v3908
    %3973 = vst [vmem:[#allocation2 + $0x40] sm:$0xff] %v3909
    %3974 = vst [vmem:[#allocation2 + $0x48] sm:$0xff] %v3910
    %3975 = vst [vmem:[#allocation2 + $0x50] sm:$0xff] %v3911
    %3976 = vst [vmem:[#allocation2 + $0x58] sm:$0xff] %v3912
    %3977 = vst [vmem:[#allocation2 + $0x60] sm:$0xff] %v3913
    %3978 = vst [vmem:[#allocation2 + $0x68] sm:$0xff] %v3914
    %3979 = vst [vmem:[#allocation2 + $0x70] sm:$0xff] %v3915
    %3980 = vst [vmem:[#allocation2 + $0x78] sm:$0xff] %v3916
    %3981 = vst [vmem:[#allocation2 + $0x80] sm:$0xff] %v3917
    %3982 = vst [vmem:[#allocation2 + $0x88] sm:$0xff] %v3918
    %3983 = vst [vmem:[#allocation2 + $0x90] sm:$0xff] %v3919
    %3984 = vst [vmem:[#allocation2 + $0x98] sm:$0xff] %v3920
    %3985 = vst [vmem:[#allocation2 + $0xa0] sm:$0xff] %v3921
    %3986 = vst [vmem:[#allocation2 + $0xa8] sm:$0xff] %v3922
    %3987 = vst [vmem:[#allocation2 + $0xb0] sm:$0xff] %v3923
    %3988 = vst [vmem:[#allocation2 + $0xb8] sm:$0xff] %v3924
    %3989 = vst [vmem:[#allocation2 + $0xc0] sm:$0xff] %v3925
    %3990 = vst [vmem:[#allocation2 + $0xc8] sm:$0xff] %v3926
    %3991 = vst [vmem:[#allocation2 + $0xd0] sm:$0xff] %v3927
    %3992 = vst [vmem:[#allocation2 + $0xd8] sm:$0xff] %v3928
    %3993 = vst [vmem:[#allocation2 + $0xe0] sm:$0xff] %v3929
    %3994 = vst [vmem:[#allocation2 + $0xe8] sm:$0xff] %v3930
    %3995 = vst [vmem:[#allocation2 + $0xf0] sm:$0xff] %v3931
    %3996 = vst [vmem:[#allocation2 + $0xf8] sm:$0xff] %v3932
    %3997 = vst [vmem:[#allocation2 + $0x100] sm:$0xff] %v3933
    %3998 = vst [vmem:[#allocation2 + $0x108] sm:$0xff] %v3934
    %3999 = vst [vmem:[#allocation2 + $0x110] sm:$0xff] %v3935
    %4000 = vst [vmem:[#allocation2 + $0x118] sm:$0xff] %v3936
    %4001 = vst [vmem:[#allocation2 + $0x120] sm:$0xff] %v3937
    %4002 = vst [vmem:[#allocation2 + $0x128] sm:$0xff] %v3938
    %4003 = vst [vmem:[#allocation2 + $0x130] sm:$0xff] %v3939
    %4004 = vst [vmem:[#allocation2 + $0x138] sm:$0xff] %v3940
    %4005 = vst [vmem:[#allocation2 + $0x140] sm:$0xff] %v3941
    %4006 = vst [vmem:[#allocation2 + $0x148] sm:$0xff] %v3942
    %4007 = vst [vmem:[#allocation2 + $0x150] sm:$0xff] %v3943
    %4008 = vst [vmem:[#allocation2 + $0x158] sm:$0xff] %v3944
    %4009 = vst [vmem:[#allocation2 + $0x160] sm:$0xff] %v3945
    %4010 = vst [vmem:[#allocation2 + $0x168] sm:$0xff] %v3946
    %4011 = vst [vmem:[#allocation2 + $0x170] sm:$0xff] %v3947
    %4012 = vst [vmem:[#allocation2 + $0x178] sm:$0xff] %v3948
    %4013 = vst [vmem:[#allocation2 + $0x180] sm:$0xff] %v3949
    %4014 = vst [vmem:[#allocation2 + $0x188] sm:$0xff] %v3950
    %4015 = vst [vmem:[#allocation2 + $0x190] sm:$0xff] %v3951
    %4016 = vst [vmem:[#allocation2 + $0x198] sm:$0xff] %v3952
    %4017 = vst [vmem:[#allocation2 + $0x1a0] sm:$0xff] %v3953
    %4018 = vst [vmem:[#allocation2 + $0x1a8] sm:$0xff] %v3954
    %4019 = vst [vmem:[#allocation2 + $0x1b0] sm:$0xff] %v3955
    %4020 = vst [vmem:[#allocation2 + $0x1b8] sm:$0xff] %v3956
    %4021 = vst [vmem:[#allocation2 + $0x1c0] sm:$0xff] %v3957
    %4022 = vst [vmem:[#allocation2 + $0x1c8] sm:$0xff] %v3958
    %4023 = vst [vmem:[#allocation2 + $0x1d0] sm:$0xff] %v3959
    %4024 = vst [vmem:[#allocation2 + $0x1d8] sm:$0xff] %v3960
    %4025 = vst [vmem:[#allocation2 + $0x1e0] sm:$0xff] %v3961
    %4026 = vst [vmem:[#allocation2 + $0x1e8] sm:$0xff] %v3962
    %4027 = vst [vmem:[#allocation2 + $0x1f0] sm:$0xff] %v3963
    %4028 = vst [vmem:[#allocation2 + $0x1f8] sm:$0xff] %v3964
    // Predicated region
    $region18: #{tpu_custom_call.1} parent=1 // pred_check
      _
    $region19: #{tpu_custom_call.1} parent=1 // pred_check_branch
      %4030 = sbr.rel (0) target = $region21
    $region20: #{tpu_custom_call.1} parent=1 // pred_region
      %s4032 = ssub.s32 8192, 8192
      %4033 = vsyncadd [#allocation3], %s4032
      %s4034 = sshll.u32 [#allocation2], 4
      %s4035 = int_to_ptr.vmem [resolvable:$true] %s4034
      %4040 = dma.vmem_to_hbm [thread:$0]  %s4035, 8192, %s4, [#allocation3], 256, 256, 16
    $region21: #{tpu_custom_call.1} parent=1 // pred_fallthru
      _
    // Predicated region
    $region22: #{tpu_custom_call.1} parent=1 // pred_check
      _
    $region23: #{tpu_custom_call.1} parent=1 // pred_check_branch
      %4042 = sbr.rel (0) target = $region25
    $region24: #{tpu_custom_call.1} parent=1 // pred_region
      %4043 = dma.done [#allocation3], 8192
    $region25: #{tpu_custom_call.1} parent=1 // pred_fallthru
      _
    %4044 = vsyncpa [#allocation3], 1

</llo_original>
